<compile_context>
chip_gen: v7x
topology: tpu7x:2x2x1
jax: 0.10.0
libtpu: 0.0.40
codegen_flags: <defaults>
</compile_context>

<pallas_src>
import functools

import jax
import jax.numpy as jnp
from jax.experimental import pallas as pl
from jax.experimental.pallas import tpu as pltpu

EPS = 1e-5


def _round_up(v, m):
    return (v + m - 1) // m * m


# ----------------------------------------------------------------------------
# helpers (host side)
# ----------------------------------------------------------------------------
def interp_matrix(s_in, s_out):
    """(s_out, s_in) bilinear interpolation matrix, align_corners=True."""
    i = jnp.arange(s_out, dtype=jnp.float32)
    src = i * (s_in - 1) / (s_out - 1)
    lo = jnp.clip(jnp.floor(src).astype(jnp.int32), 0, s_in - 2)
    frac = src - lo.astype(jnp.float32)
    u = jnp.zeros((s_out, s_in), jnp.float32)
    u = u.at[jnp.arange(s_out), lo].add(1.0 - frac)
    u = u.at[jnp.arange(s_out), lo + 1].add(frac)
    return u


def conv3x3_weight_matrix(w):
    """torch (Cout, Cin, 3, 3) -> (Cout, 9*Cin), columns ordered (ky, kx, ci)."""
    cout, cin = w.shape[0], w.shape[1]
    return jnp.transpose(w, (0, 2, 3, 1)).reshape(cout, 9 * cin)


# ----------------------------------------------------------------------------
# BatchNorm2d batch statistics for BN#1 (training-mode forward), tiled reduce.
# Emits per-channel scale = gamma*rsqrt(var+eps) and shift = beta - mean*scale.
# Grid axis is a carried reduction -> "arbitrary".
# ----------------------------------------------------------------------------
def _bn_stats_kernel(x_ref, g_ref, b_ref, scale_ref, shift_ref, s_acc, ss_acc,
                     *, inv_count):
    n = pl.program_id(0)

    @pl.when(n == 0)
    def _():
        s_acc[...] = jnp.zeros_like(s_acc)
        ss_acc[...] = jnp.zeros_like(ss_acc)

    x = x_ref[0]                                             # (Cp, L)
    s_acc[...] += jnp.sum(x, axis=1, keepdims=True)          # (Cp, 1)
    ss_acc[...] += jnp.sum(x * x, axis=1, keepdims=True)     # (Cp, 1)

    @pl.when(n == pl.num_programs(0) - 1)
    def _():
        mean = s_acc[...] * inv_count
        var = ss_acc[...] * inv_count - mean * mean          # biased, like torch
        scale = g_ref[...] * jax.lax.rsqrt(var + EPS)
        scale_ref[...] = scale
        shift_ref[...] = b_ref[...] - mean * scale


def bn_scale_shift(x_ncl, gamma_col, beta_col):
    n, c, l = x_ncl.shape
    kernel = functools.partial(_bn_stats_kernel, inv_count=1.0 / float(n * l))
    return pl.pallas_call(
        kernel,
        out_shape=(jax.ShapeDtypeStruct((c, 1), jnp.float32),
                   jax.ShapeDtypeStruct((c, 1), jnp.float32)),
        grid=(n,),
        in_specs=[
            pl.BlockSpec((1, c, l), lambda i: (i, 0, 0)),
            pl.BlockSpec((c, 1), lambda i: (0, 0)),
            pl.BlockSpec((c, 1), lambda i: (0, 0)),
        ],
        out_specs=(pl.BlockSpec((c, 1), lambda i: (0, 0)),
                   pl.BlockSpec((c, 1), lambda i: (0, 0))),
        scratch_shapes=[pltpu.VMEM((c, 1), jnp.float32),
                        pltpu.VMEM((c, 1), jnp.float32)],
        compiler_params=pltpu.CompilerParams(
            dimension_semantics=("arbitrary",)),
    )(x_ncl, gamma_col, beta_col)


# ----------------------------------------------------------------------------
# in-register im2col for a 3x3 / stride-1 / pad-1 conv on a (Cp, H*W) slab.
# Taps are static lane shifts of the flat slab + border masks; no HBM traffic.
# With Cp a multiple of 8, the 9-piece concat is sublane-tile aligned.
# ----------------------------------------------------------------------------
def _conv3x3_taps(flat, h, w):
    del h
    c, l = flat.shape                                        # l == h * w
    lane = jax.lax.broadcasted_iota(jnp.int32, (c, l), 1)
    col = lane % w
    has_up = lane >= w               # row h-1 exists
    has_dn = lane < l - w            # row h+1 exists
    has_lt = col >= 1                # col w-1 exists
    has_rt = col < (w - 1)           # col w+1 exists

    parts = []
    for dy in (-1, 0, 1):
        for dx in (-1, 0, 1):
            s = dy * w + dx
            # tap[i] = flat[i + s]  (wrapped values are masked out below)
            tap = flat if s == 0 else jnp.roll(flat, -s, axis=1)
            valid = None
            for cond, needed in ((has_up, dy < 0), (has_dn, dy > 0),
                                 (has_lt, dx < 0), (has_rt, dx > 0)):
                if needed:
                    valid = cond if valid is None else jnp.logical_and(valid, cond)
            if valid is not None:
                tap = jnp.where(valid, tap, 0.0)
            parts.append(tap)
    return jnp.concatenate(parts, axis=0)                    # (9*Cp, L)


# ----------------------------------------------------------------------------
# front kernel (per batch element):
#   path 1: upsample(x) -> 1x1 conv                       -> x1 (Coutp, L2)
#   path 2: BN#1+ReLU(x) -> upsample -> conv3_1           -> y1 (Cp,    L2)
#   plus:   per-batch partial (sum, sumsq) of y1 for BN#2 -> stats (Cp, 2)
# Both upsample operands are stacked into ONE MXU matmul (M = 2*Cp).
# ----------------------------------------------------------------------------
def _front_kernel(x_ref, u2t_ref, scale_ref, shift_ref,
                  w1_ref, b1_ref, w31_ref, b31_ref,
                  x1_ref, y1_ref, stats_ref, *, cp, h2, w2):
    x = x_ref[0]                                             # (Cp, H*W)

    # fused BN#1 affine + ReLU
    a = jnp.maximum(x * scale_ref[...] + shift_ref[...], 0.0)

    # stacked bilinear x2 upsample: one matmul, M = 2*Cp, K = H*W, N = H2*W2
    z = jnp.concatenate([x, a], axis=0)                      # (2Cp, H*W)
    up = jnp.dot(z, u2t_ref[...], preferred_element_type=jnp.float32)  # (2Cp, L2)
    upx = up[:cp]                                            # static, tile-aligned
    upa = up[cp:]

    # path 1: 1x1 conv
    x1_ref[0] = (jnp.dot(w1_ref[...], upx, preferred_element_type=jnp.float32)
                 + b1_ref[...])

    # path 2: 3x3 conv as a single K = 9*Cp contraction over in-register taps
    taps = _conv3x3_taps(upa, h2, w2)                        # (9Cp, L2)
    y1 = (jnp.dot(w31_ref[...], taps, preferred_element_type=jnp.float32)
          + b31_ref[...])
    y1_ref[0] = y1

    # per-batch PARTIAL BN#2 statistics (valid under "parallel": each grid step
    # writes only its own output block; no shared accumulator).
    sums = jnp.sum(y1, axis=1, keepdims=True)                # (Cp, 1)
    sumsq = jnp.sum(y1 * y1, axis=1, keepdims=True)          # (Cp, 1)
    stats_ref[0] = jnp.concatenate([sums, sumsq], axis=1)    # (Cp, 2)


def front_pass(x_ncl, u2t, scale1, shift1, w1m, b1c, w31m, b31c, h2, w2):
    n, cp, l = x_ncl.shape
    l2 = h2 * w2
    coutp = w1m.shape[0]
    kernel = functools.partial(_front_kernel, cp=cp, h2=h2, w2=w2)
    flops = n * 2 * ((2 * cp) * l * l2 + coutp * cp * l2 + cp * (9 * cp) * l2)
    bytes_accessed = 4 * (x_ncl.size + u2t.size + w1m.size + w31m.size
                          + n * (coutp + cp) * l2 + n * cp * 2)
    return pl.pallas_call(
        kernel,
        out_shape=(jax.ShapeDtypeStruct((n, coutp, l2), jnp.float32),
                   jax.ShapeDtypeStruct((n, cp, l2), jnp.float32),
                   jax.ShapeDtypeStruct((n, cp, 2), jnp.float32)),
        grid=(n,),
        in_specs=[
            pl.BlockSpec((1, cp, l), lambda i: (i, 0, 0)),
            pl.BlockSpec((l, l2), lambda i: (0, 0)),
            pl.BlockSpec((cp, 1), lambda i: (0, 0)),
            pl.BlockSpec((cp, 1), lambda i: (0, 0)),
            pl.BlockSpec((coutp, cp), lambda i: (0, 0)),
            pl.BlockSpec((coutp, 1), lambda i: (0, 0)),
            pl.BlockSpec((cp, 9 * cp), lambda i: (0, 0)),
            pl.BlockSpec((cp, 1), lambda i: (0, 0)),
        ],
        out_specs=(pl.BlockSpec((1, coutp, l2), lambda i: (i, 0, 0)),
                   pl.BlockSpec((1, cp, l2), lambda i: (i, 0, 0)),
                   pl.BlockSpec((1, cp, 2), lambda i: (i, 0, 0))),
        compiler_params=pltpu.CompilerParams(
            dimension_semantics=("parallel",)),
        cost_estimate=pl.CostEstimate(flops=int(flops), transcendentals=0,
                                      bytes_accessed=int(bytes_accessed)),
    )(x_ncl, u2t, scale1, shift1, w1m, b1c, w31m, b31c)


# ----------------------------------------------------------------------------
# back kernel (per batch element):
#   BN#2+ReLU(y1) -> conv3_2 -> + x1 residual   -> out (Coutp, L2)
# The residual x1 is aliased to the output buffer (read-before-write per block).
# ----------------------------------------------------------------------------
def _back_kernel(y_ref, scale_ref, shift_ref, w32_ref, b32_ref, x1_ref,
                 o_ref, *, h2, w2):
    a = jnp.maximum(y_ref[0] * scale_ref[...] + shift_ref[...], 0.0)   # (Cp, L2)
    taps = _conv3x3_taps(a, h2, w2)                                    # (9Cp, L2)
    o_ref[0] = (jnp.dot(w32_ref[...], taps, preferred_element_type=jnp.float32)
                + b32_ref[...] + x1_ref[0])


def back_pass(y_ncl, scale2, shift2, w32m, b32c, x1, h2, w2):
    n, cp, l2 = y_ncl.shape
    coutp = w32m.shape[0]
    kernel = functools.partial(_back_kernel, h2=h2, w2=w2)
    flops = n * 2 * coutp * (9 * cp) * l2
    bytes_accessed = 4 * (y_ncl.size + x1.size + w32m.size + n * coutp * l2)
    return pl.pallas_call(
        kernel,
        out_shape=jax.ShapeDtypeStruct((n, coutp, l2), jnp.float32),
        grid=(n,),
        in_specs=[
            pl.BlockSpec((1, cp, l2), lambda i: (i, 0, 0)),
            pl.BlockSpec((cp, 1), lambda i: (0, 0)),
            pl.BlockSpec((cp, 1), lambda i: (0, 0)),
            pl.BlockSpec((coutp, 9 * cp), lambda i: (0, 0)),
            pl.BlockSpec((coutp, 1), lambda i: (0, 0)),
            pl.BlockSpec((1, coutp, l2), lambda i: (i, 0, 0)),
        ],
        out_specs=pl.BlockSpec((1, coutp, l2), lambda i: (i, 0, 0)),
        input_output_aliases={5: 0},                        # x1 buffer -> out
        compiler_params=pltpu.CompilerParams(
            dimension_semantics=("parallel",)),
        cost_estimate=pl.CostEstimate(flops=int(flops), transcendentals=0,
                                      bytes_accessed=int(bytes_accessed)),
    )(y_ncl, scale2, shift2, w32m, b32c, x1)


# ----------------------------------------------------------------------------
# GBlockUp forward
# ----------------------------------------------------------------------------
def gblock_up_forward(x_nchw, params, u2t):
    n, cin, h, w = x_nchw.shape
    h2, w2 = 2 * h, 2 * w
    l2 = h2 * w2
    cout = params["w1"].shape[0]
    cp = _round_up(cin, 8)          # pad channels to a sublane multiple
    coutp = _round_up(cout, 8)

    # host-side prep: zero-pad channels (exact zeros in K / zero output rows,
    # so results are unchanged) and build matmul-shaped weights.
    x_rows = jnp.pad(x_nchw, ((0, 0), (0, cp - cin), (0, 0), (0, 0))
                     ).reshape(n, cp, h * w)

    gamma_p = jnp.concatenate([params["gamma"],
                               jnp.ones((cp - cin,), jnp.float32)])
    beta_p = jnp.concatenate([params["beta"],
                              jnp.zeros((cp - cin,), jnp.float32)])

    w1m = jnp.pad(params["w1"][:, :, 0, 0],
                  ((0, coutp - cout), (0, cp - cin)))               # (Coutp, Cp)
    b1c = jnp.pad(params["b1"], (0, coutp - cout)).reshape(coutp, 1)
    w31m = conv3x3_weight_matrix(
        jnp.pad(params["w31"],
                ((0, cp - cin), (0, cp - cin), (0, 0), (0, 0))))    # (Cp, 9Cp)
    b31c = jnp.pad(params["b31"], (0, cp - cin)).reshape(cp, 1)
    w32m = conv3x3_weight_matrix(
        jnp.pad(params["w32"],
                ((0, coutp - cout), (0, cp - cin), (0, 0), (0, 0))))  # (Coutp, 9Cp)
    b32c = jnp.pad(params["b32"], (0, coutp - cout)).reshape(coutp, 1)

    # BN #1 batch statistics (training-mode forward) folded to scale/shift.
    scale1, shift1 = bn_scale_shift(x_rows, gamma_p.reshape(cp, 1),
                                    beta_p.reshape(cp, 1))

    # fused: [upsample -> conv1] + [BN#1+ReLU -> upsample -> conv3_1] + BN#2 partials
    x1, y1, stats = front_pass(x_rows, u2t, scale1, shift1,
                               w1m, b1c, w31m, b31c, h2, w2)

    # BN #2 (same gamma/beta: the module reuses one self.BN) from the per-batch
    # partial sums emitted by the front kernel — no second full read of y1.
    inv_cnt = 1.0 / float(n * l2)
    mean = jnp.sum(stats[:, :, 0], axis=0) * inv_cnt                 # (Cp,)
    var = jnp.sum(stats[:, :, 1], axis=0) * inv_cnt - mean * mean    # biased
    # TODO(synk): E[x^2]-mean^2 in f32 can cancel at production scale; use a
    # shifted / Welford-style accumulation there.
    scale2 = (gamma_p * jax.lax.rsqrt(var + EPS)).reshape(cp, 1)
    shift2 = beta_p.reshape(cp, 1) - mean.reshape(cp, 1) * scale2

    # fused: BN#2+ReLU -> conv3_2 -> + x1 residual (output aliases x1's buffer)
    out_p = back_pass(y1, scale2, shift2, w32m, b32c, x1, h2, w2)
    return out_p[:, :cout].reshape(n, cout, h2, w2)


# ----------------------------------------------------------------------------
# pure-JAX reference (same semantics) for verification
# ----------------------------------------------------------------------------
def gblock_up_reference(x, params, uh, uw):
    uwt = uw.T

    def up(z):
        return jnp.einsum("oh,nchw,wp->ncop", uh, z, uwt)

    def bnr(z):
        mean = jnp.mean(z, axis=(0, 2, 3), keepdims=True)
        var = jnp.var(z, axis=(0, 2, 3), keepdims=True)     # biased, torch train BN
        g = params["gamma"].reshape(1, -1, 1, 1)
        b = params["beta"].reshape(1, -1, 1, 1)
        return jnp.maximum((z - mean) / jnp.sqrt(var + EPS) * g + b, 0.0)

    def conv(z, w, b, pad):
        out = jax.lax.conv_general_dilated(
            z, w, (1, 1), [(pad, pad), (pad, pad)],
            dimension_numbers=("NCHW", "OIHW", "NCHW"))
        return out + b.reshape(1, -1, 1, 1)

    x1 = conv(up(x), params["w1"], params["b1"], 0)
    x2 = bnr(x)
    x2 = up(x2)
    x2 = conv(x2, params["w31"], params["b31"], 1)
    x2 = bnr(x2)
    x2 = conv(x2, params["w32"], params["b32"], 1)
    return x1 + x2


if __name__ == "__main__":
    # TODO(synk): BatchNorm running_mean/running_var buffer updates (a training-time
    # side effect) are not modeled; only the forward normalization is computed.
    N, C_IN, C_OUT, H, W = 2, 4, 8, 16, 16
    keys = jax.random.split(jax.random.PRNGKey(0), 9)

    x = jax.random.normal(keys[0], (N, C_IN, H, W), jnp.float32)
    params = {
        "gamma": 1.0 + 0.1 * jax.random.normal(keys[1], (C_IN,), jnp.float32),
        "beta": 0.1 * jax.random.normal(keys[2], (C_IN,), jnp.float32),
        "w1": 0.2 * jax.random.normal(keys[3], (C_OUT, C_IN, 1, 1), jnp.float32),
        "b1": 0.1 * jax.random.normal(keys[4], (C_OUT,), jnp.float32),
        "w31": 0.2 * jax.random.normal(keys[5], (C_IN, C_IN, 3, 3), jnp.float32),
        "b31": 0.1 * jax.random.normal(keys[6], (C_IN,), jnp.float32),
        "w32": 0.2 * jax.random.normal(keys[7], (C_OUT, C_IN, 3, 3), jnp.float32),
        "b32": 0.1 * jax.random.normal(keys[8], (C_OUT,), jnp.float32),
    }

    uh = interp_matrix(H, 2 * H)                 # (2H, H)
    uw = interp_matrix(W, 2 * W)                 # (2W, W)
    u2t = jnp.kron(uh, uw).T                     # (H*W, 2H*2W) whole-slab upsample

    fwd = jax.jit(functools.partial(gblock_up_forward, params=params, u2t=u2t))
    out = jax.block_until_ready(fwd(x))

    ref = gblock_up_reference(x, params, uh, uw)
    assert out.shape == (N, C_OUT, 2 * H, 2 * W), out.shape
    err = float(jnp.max(jnp.abs(out - ref)))
    assert jnp.allclose(out, ref, rtol=1e-3, atol=1e-3), err
    print("KERNEL_OK")
</pallas_src>

<mosaic_0001>
module attributes {stable_mosaic.version = 11 : i64} {
  func.func @_bn_stats_kernel(%arg0: i32, %arg1: memref<1x8x256xf32, #tpu.memory_space<vmem>>, %arg2: memref<8x1xf32, #tpu.memory_space<vmem>>, %arg3: memref<8x1xf32, #tpu.memory_space<vmem>>, %arg4: memref<8x1xf32, #tpu.memory_space<vmem>>, %arg5: memref<8x1xf32, #tpu.memory_space<vmem>>, %arg6: memref<8x1xf32, #tpu.memory_space<vmem>>, %arg7: memref<8x1xf32, #tpu.memory_space<vmem>>) attributes {dimension_semantics = [#tpu.dimension_semantics<arbitrary>], iteration_bounds = array<i64: 2>, scalar_prefetch = 0 : i64, scratch_operands = 2 : i64, tpu.core_type = #tpu.core_type<tc>, window_params = [{transform_indices = @transform_0, window_bounds = array<i64: 1, 8, 256>}, {pipeline_mode = #tpu.pipeline_mode<synchronous>, transform_indices = @transform_1, window_bounds = array<i64: 8, 1>}, {pipeline_mode = #tpu.pipeline_mode<synchronous>, transform_indices = @transform_2, window_bounds = array<i64: 8, 1>}, {pipeline_mode = #tpu.pipeline_mode<synchronous>, transform_indices = @transform_3, window_bounds = array<i64: 8, 1>}, {pipeline_mode = #tpu.pipeline_mode<synchronous>, transform_indices = @transform_4, window_bounds = array<i64: 8, 1>}]} {
    %c0_i32 = arith.constant 0 : i32
    %0 = arith.cmpi eq, %arg0, %c0_i32 : i32
    %1 = arith.extui %0 : i1 to i32
    %c0_i32_0 = arith.constant 0 : i32
    %2 = arith.cmpi ne, %1, %c0_i32_0 : i32
    scf.if %2 {
      %cst_13 = arith.constant 0.000000e+00 : f32
      %19 = vector.broadcast %cst_13 : f32 to vector<8x1xf32>
      %c0_14 = arith.constant 0 : index
      %c0_15 = arith.constant 0 : index
      %20 = vector.load %arg6[%c0_14, %c0_15] : memref<8x1xf32, #tpu.memory_space<vmem>>, vector<8x1xf32>
      tpu.vector_store %arg6[%c0_14, %c0_15], %19 {strides = array<i32>} : memref<8x1xf32, #tpu.memory_space<vmem>>, vector<8x1xf32>,
      %cst_16 = arith.constant 0.000000e+00 : f32
      %21 = vector.broadcast %cst_16 : f32 to vector<8x1xf32>
      %c0_17 = arith.constant 0 : index
      %c0_18 = arith.constant 0 : index
      %22 = vector.load %arg7[%c0_17, %c0_18] : memref<8x1xf32, #tpu.memory_space<vmem>>, vector<8x1xf32>
      tpu.vector_store %arg7[%c0_17, %c0_18], %21 {strides = array<i32>} : memref<8x1xf32, #tpu.memory_space<vmem>>, vector<8x1xf32>,
    } else {
    }
    %c0 = arith.constant 0 : index
    %c0_1 = arith.constant 0 : index
    %c0_2 = arith.constant 0 : index
    %3 = vector.load %arg1[%c0, %c0_1, %c0_2] : memref<1x8x256xf32, #tpu.memory_space<vmem>>, vector<1x8x256xf32>
    %4 = vector.shape_cast %3 : vector<1x8x256xf32> to vector<8x256xf32>
    %c0_3 = arith.constant 0 : index
    %c0_4 = arith.constant 0 : index
    %5 = vector.load %arg6[%c0_3, %c0_4] : memref<8x1xf32, #tpu.memory_space<vmem>>, vector<8x1xf32>
    %cst = arith.constant dense<0.000000e+00> : vector<8xf32>
    %6 = vector.multi_reduction <add>, %4, %cst [1] : vector<8x256xf32> to vector<8xf32>
    %7 = vector.shape_cast %6 : vector<8xf32> to vector<8x1xf32>
    %8 = arith.addf %5, %7 : vector<8x1xf32>
    %c0_5 = arith.constant 0 : index
    %c0_6 = arith.constant 0 : index
    %9 = vector.load %arg6[%c0_5, %c0_6] : memref<8x1xf32, #tpu.memory_space<vmem>>, vector<8x1xf32>
    tpu.vector_store %arg6[%c0_5, %c0_6], %8 {strides = array<i32>} : memref<8x1xf32, #tpu.memory_space<vmem>>, vector<8x1xf32>,
    %c0_7 = arith.constant 0 : index
    %c0_8 = arith.constant 0 : index
    %10 = vector.load %arg7[%c0_7, %c0_8] : memref<8x1xf32, #tpu.memory_space<vmem>>, vector<8x1xf32>
    %11 = arith.mulf %4, %4 : vector<8x256xf32>
    %cst_9 = arith.constant dense<0.000000e+00> : vector<8xf32>
    %12 = vector.multi_reduction <add>, %11, %cst_9 [1] : vector<8x256xf32> to vector<8xf32>
    %13 = vector.shape_cast %12 : vector<8xf32> to vector<8x1xf32>
    %14 = arith.addf %10, %13 : vector<8x1xf32>
    %c0_10 = arith.constant 0 : index
    %c0_11 = arith.constant 0 : index
    %15 = vector.load %arg7[%c0_10, %c0_11] : memref<8x1xf32, #tpu.memory_space<vmem>>, vector<8x1xf32>
    tpu.vector_store %arg7[%c0_10, %c0_11], %14 {strides = array<i32>} : memref<8x1xf32, #tpu.memory_space<vmem>>, vector<8x1xf32>,
    %c1_i32 = arith.constant 1 : i32
    %16 = arith.cmpi eq, %arg0, %c1_i32 : i32
    %17 = arith.extui %16 : i1 to i32
    %c0_i32_12 = arith.constant 0 : i32
    %18 = arith.cmpi ne, %17, %c0_i32_12 : i32
    scf.if %18 {
      %c0_13 = arith.constant 0 : index
      %c0_14 = arith.constant 0 : index
      %19 = vector.load %arg6[%c0_13, %c0_14] : memref<8x1xf32, #tpu.memory_space<vmem>>, vector<8x1xf32>
      %cst_15 = arith.constant 0.001953125 : f32
      %20 = vector.broadcast %cst_15 : f32 to vector<8x1xf32>
      %21 = arith.mulf %19, %20 : vector<8x1xf32>
      %c0_16 = arith.constant 0 : index
      %c0_17 = arith.constant 0 : index
      %22 = vector.load %arg7[%c0_16, %c0_17] : memref<8x1xf32, #tpu.memory_space<vmem>>, vector<8x1xf32>
      %cst_18 = arith.constant 0.001953125 : f32
      %23 = vector.broadcast %cst_18 : f32 to vector<8x1xf32>
      %24 = arith.mulf %22, %23 : vector<8x1xf32>
      %25 = arith.mulf %21, %21 : vector<8x1xf32>
      %26 = arith.subf %24, %25 : vector<8x1xf32>
      %c0_19 = arith.constant 0 : index
      %c0_20 = arith.constant 0 : index
      %27 = vector.load %arg2[%c0_19, %c0_20] : memref<8x1xf32, #tpu.memory_space<vmem>>, vector<8x1xf32>
      %cst_21 = arith.constant 9.99999974E-6 : f32
      %28 = vector.broadcast %cst_21 : f32 to vector<8x1xf32>
      %29 = arith.addf %26, %28 : vector<8x1xf32>
      %30 = math.rsqrt %29 : vector<8x1xf32>
      %31 = arith.mulf %27, %30 : vector<8x1xf32>
      %c0_22 = arith.constant 0 : index
      %c0_23 = arith.constant 0 : index
      %32 = vector.load %arg4[%c0_22, %c0_23] : memref<8x1xf32, #tpu.memory_space<vmem>>, vector<8x1xf32>
      tpu.vector_store %arg4[%c0_22, %c0_23], %31 {strides = array<i32>} : memref<8x1xf32, #tpu.memory_space<vmem>>, vector<8x1xf32>,
      %c0_24 = arith.constant 0 : index
      %c0_25 = arith.constant 0 : index
      %33 = vector.load %arg3[%c0_24, %c0_25] : memref<8x1xf32, #tpu.memory_space<vmem>>, vector<8x1xf32>
      %34 = arith.mulf %21, %31 : vector<8x1xf32>
      %35 = arith.subf %33, %34 : vector<8x1xf32>
      %c0_26 = arith.constant 0 : index
      %c0_27 = arith.constant 0 : index
      %36 = vector.load %arg5[%c0_26, %c0_27] : memref<8x1xf32, #tpu.memory_space<vmem>>, vector<8x1xf32>
      tpu.vector_store %arg5[%c0_26, %c0_27], %35 {strides = array<i32>} : memref<8x1xf32, #tpu.memory_space<vmem>>, vector<8x1xf32>,
    } else {
    }
    return
  }
  func.func @transform_0(%arg0: i32) -> (i32, i32, i32) {
    %c0_i32 = arith.constant 0 : i32
    %c0_i32_0 = arith.constant 0 : i32
    %c0_i32_1 = arith.constant 0 : i32
    return %arg0, %c0_i32, %c0_i32_0 : i32, i32, i32
  }
  func.func @transform_1(%arg0: i32) -> (i32, i32) {
    %c0_i32 = arith.constant 0 : i32
    %c0_i32_0 = arith.constant 0 : i32
    %c0_i32_1 = arith.constant 0 : i32
    return %c0_i32, %c0_i32_0 : i32, i32
  }
  func.func @transform_2(%arg0: i32) -> (i32, i32) {
    %c0_i32 = arith.constant 0 : i32
    %c0_i32_0 = arith.constant 0 : i32
    %c0_i32_1 = arith.constant 0 : i32
    return %c0_i32, %c0_i32_0 : i32, i32
  }
  func.func @transform_3(%arg0: i32) -> (i32, i32) {
    %c0_i32 = arith.constant 0 : i32
    %c0_i32_0 = arith.constant 0 : i32
    %c0_i32_1 = arith.constant 0 : i32
    return %c0_i32, %c0_i32_0 : i32, i32
  }
  func.func @transform_4(%arg0: i32) -> (i32, i32) {
    %c0_i32 = arith.constant 0 : i32
    %c0_i32_0 = arith.constant 0 : i32
    %c0_i32_1 = arith.constant 0 : i32
    return %c0_i32, %c0_i32_0 : i32, i32
  }
}

module attributes {stable_mosaic.version = 11 : i64} {
  func.func @_front_kernel(%arg0: i32, %arg1: memref<1x8x256xf32, #tpu.memory_space<vmem>>, %arg2: memref<256x1024xf32, #tpu.memory_space<vmem>>, %arg3: memref<8x1xf32, #tpu.memory_space<vmem>>, %arg4: memref<8x1xf32, #tpu.memory_space<vmem>>, %arg5: memref<8x8xf32, #tpu.memory_space<vmem>>, %arg6: memref<8x1xf32, #tpu.memory_space<vmem>>, %arg7: memref<8x72xf32, #tpu.memory_space<vmem>>, %arg8: memref<8x1xf32, #tpu.memory_space<vmem>>, %arg9: memref<1x8x1024xf32, #tpu.memory_space<vmem>>, %arg10: memref<1x8x1024xf32, #tpu.memory_space<vmem>>, %arg11: memref<1x8x2xf32, #tpu.memory_space<vmem>>) attributes {dimension_semantics = [#tpu.dimension_semantics<parallel>], iteration_bounds = array<i64: 2>, scalar_prefetch = 0 : i64, scratch_operands = 0 : i64, tpu.core_type = #tpu.core_type<tc>, window_params = [{transform_indices = @transform_0, window_bounds = array<i64: 1, 8, 256>}, {pipeline_mode = #tpu.pipeline_mode<synchronous>, transform_indices = @transform_1, window_bounds = array<i64: 256, 1024>}, {pipeline_mode = #tpu.pipeline_mode<synchronous>, transform_indices = @transform_2, window_bounds = array<i64: 8, 1>}, {pipeline_mode = #tpu.pipeline_mode<synchronous>, transform_indices = @transform_3, window_bounds = array<i64: 8, 1>}, {pipeline_mode = #tpu.pipeline_mode<synchronous>, transform_indices = @transform_4, window_bounds = array<i64: 8, 8>}, {pipeline_mode = #tpu.pipeline_mode<synchronous>, transform_indices = @transform_5, window_bounds = array<i64: 8, 1>}, {pipeline_mode = #tpu.pipeline_mode<synchronous>, transform_indices = @transform_6, window_bounds = array<i64: 8, 72>}, {pipeline_mode = #tpu.pipeline_mode<synchronous>, transform_indices = @transform_7, window_bounds = array<i64: 8, 1>}, {transform_indices = @transform_8, window_bounds = array<i64: 1, 8, 1024>}, {transform_indices = @transform_9, window_bounds = array<i64: 1, 8, 1024>}, {transform_indices = @transform_10, window_bounds = array<i64: 1, 8, 2>}]} {
    %c0 = arith.constant 0 : index
    %c0_0 = arith.constant 0 : index
    %c0_1 = arith.constant 0 : index
    %0 = vector.load %arg1[%c0, %c0_0, %c0_1] : memref<1x8x256xf32, #tpu.memory_space<vmem>>, vector<1x8x256xf32>
    %1 = vector.shape_cast %0 : vector<1x8x256xf32> to vector<8x256xf32>
    %c0_2 = arith.constant 0 : index
    %c0_3 = arith.constant 0 : index
    %2 = vector.load %arg3[%c0_2, %c0_3] : memref<8x1xf32, #tpu.memory_space<vmem>>, vector<8x1xf32>
    %3 = vector.broadcast %2 : vector<8x1xf32> to vector<8x256xf32>
    %4 = arith.mulf %1, %3 : vector<8x256xf32>
    %c0_4 = arith.constant 0 : index
    %c0_5 = arith.constant 0 : index
    %5 = vector.load %arg4[%c0_4, %c0_5] : memref<8x1xf32, #tpu.memory_space<vmem>>, vector<8x1xf32>
    %6 = vector.broadcast %5 : vector<8x1xf32> to vector<8x256xf32>
    %7 = arith.addf %4, %6 : vector<8x256xf32>
    %cst = arith.constant 0.000000e+00 : f32
    %8 = vector.broadcast %cst : f32 to vector<8x256xf32>
    %9 = arith.maximumf %7, %8 : vector<8x256xf32>
    %10 = tpu.concatenate %1, %9 in 0 : vector<8x256xf32>, vector<8x256xf32> -> vector<16x256xf32>
    %c0_6 = arith.constant 0 : index
    %c0_7 = arith.constant 0 : index
    %11 = vector.load %arg2[%c0_6, %c0_7] : memref<256x1024xf32, #tpu.memory_space<vmem>>, vector<256x1024xf32>
    %cst_8 = arith.constant dense<0.000000e+00> : vector<16x1024xf32>
    %12 = tpu.matmul %10, %11, %cst_8 {dimension_numbers = #tpu.dot_dimension_numbers<[1], [0], [0], [1], [0, 0, 1, 1], [], []>} : vector<16x256xf32>, vector<256x1024xf32>, vector<16x1024xf32> -> vector<16x1024xf32>
    %13 = vector.extract_strided_slice %12 {offsets = [0, 0], sizes = [8, 1024], strides = [1, 1]} : vector<16x1024xf32> to vector<8x1024xf32>
    %14 = vector.extract_strided_slice %12 {offsets = [8, 0], sizes = [8, 1024], strides = [1, 1]} : vector<16x1024xf32> to vector<8x1024xf32>
    %c0_9 = arith.constant 0 : index
    %c0_10 = arith.constant 0 : index
    %15 = vector.load %arg5[%c0_9, %c0_10] : memref<8x8xf32, #tpu.memory_space<vmem>>, vector<8x8xf32>
    %cst_11 = arith.constant dense<0.000000e+00> : vector<8x1024xf32>
    %16 = tpu.matmul %15, %13, %cst_11 {dimension_numbers = #tpu.dot_dimension_numbers<[1], [0], [0], [1], [0, 0, 1, 1], [], []>} : vector<8x8xf32>, vector<8x1024xf32>, vector<8x1024xf32> -> vector<8x1024xf32>
    %c0_12 = arith.constant 0 : index
    %c0_13 = arith.constant 0 : index
    %17 = vector.load %arg6[%c0_12, %c0_13] : memref<8x1xf32, #tpu.memory_space<vmem>>, vector<8x1xf32>
    %18 = vector.broadcast %17 : vector<8x1xf32> to vector<8x1024xf32>
    %19 = arith.addf %16, %18 : vector<8x1024xf32>
    %c0_14 = arith.constant 0 : index
    %c0_15 = arith.constant 0 : index
    %c0_16 = arith.constant 0 : index
    %20 = vector.load %arg9[%c0_14, %c0_15, %c0_16] : memref<1x8x1024xf32, #tpu.memory_space<vmem>>, vector<1x8x1024xf32>
    %21 = vector.shape_cast %20 : vector<1x8x1024xf32> to vector<8x1024xf32>
    %22 = vector.shape_cast %19 : vector<8x1024xf32> to vector<1x8x1024xf32>
    tpu.vector_store %arg9[%c0_14, %c0_15, %c0_16], %22 {strides = array<i32>} : memref<1x8x1024xf32, #tpu.memory_space<vmem>>, vector<1x8x1024xf32>,
    %23 = tpu.iota {dimensions = array<i32: 1>} : vector<8x1024xi32>
    %c32_i32 = arith.constant 32 : i32
    %c0_i32 = arith.constant 0 : i32
    %24 = arith.cmpi eq, %c32_i32, %c0_i32 : i32
    %c1_i32 = arith.constant 1 : i32
    %25 = arith.select %24, %c1_i32, %c32_i32 : i32
    %26 = vector.broadcast %25 : i32 to vector<8x1024xi32>
    %27 = arith.remsi %23, %26 : vector<8x1024xi32>
    %c0_i32_17 = arith.constant 0 : i32
    %28 = vector.broadcast %c0_i32_17 : i32 to vector<8x1024xi32>
    %29 = arith.cmpi ne, %27, %28 : vector<8x1024xi32>
    %c0_i32_18 = arith.constant 0 : i32
    %30 = vector.broadcast %c0_i32_18 : i32 to vector<8x1024xi32>
    %31 = arith.cmpi slt, %27, %30 : vector<8x1024xi32>
    %c0_i32_19 = arith.constant 0 : i32
    %32 = arith.cmpi slt, %25, %c0_i32_19 : i32
    %33 = vector.broadcast %32 : i1 to vector<8x1024xi1>
    %34 = vector.broadcast %33 : vector<8x1024xi1> to vector<8x1024xi1>
    %35 = arith.xori %31, %34 : vector<8x1024xi1>
    %36 = arith.andi %35, %29 : vector<8x1024xi1>
    %37 = vector.broadcast %25 : i32 to vector<8x1024xi32>
    %38 = arith.addi %27, %37 : vector<8x1024xi32>
    %39 = arith.select %36, %38, %27 : vector<8x1024xi1>, vector<8x1024xi32>
    %c32_i32_20 = arith.constant 32 : i32
    %40 = vector.broadcast %c32_i32_20 : i32 to vector<8x1024xi32>
    %41 = arith.cmpi sge, %23, %40 : vector<8x1024xi32>
    %c992_i32 = arith.constant 992 : i32
    %42 = vector.broadcast %c992_i32 : i32 to vector<8x1024xi32>
    %43 = arith.cmpi slt, %23, %42 : vector<8x1024xi32>
    %c1_i32_21 = arith.constant 1 : i32
    %44 = vector.broadcast %c1_i32_21 : i32 to vector<8x1024xi32>
    %45 = arith.cmpi sge, %39, %44 : vector<8x1024xi32>
    %c31_i32 = arith.constant 31 : i32
    %46 = vector.broadcast %c31_i32 : i32 to vector<8x1024xi32>
    %47 = arith.cmpi slt, %39, %46 : vector<8x1024xi32>
    %48 = vector.extract_strided_slice %14 {offsets = [0, 991], sizes = [8, 33], strides = [1, 1]} : vector<8x1024xf32> to vector<8x33xf32>
    %49 = vector.extract_strided_slice %14 {offsets = [0, 0], sizes = [8, 991], strides = [1, 1]} : vector<8x1024xf32> to vector<8x991xf32>
    %50 = tpu.concatenate %48, %49 in 1 : vector<8x33xf32>, vector<8x991xf32> -> vector<8x1024xf32>
    %51 = arith.andi %41, %45 : vector<8x1024xi1>
    %cst_22 = arith.constant 0.000000e+00 : f32
    %52 = vector.broadcast %cst_22 : f32 to vector<8x1024xf32>
    %53 = arith.select %51, %50, %52 : vector<8x1024xi1>, vector<8x1024xf32>
    %54 = vector.extract_strided_slice %14 {offsets = [0, 992], sizes = [8, 32], strides = [1, 1]} : vector<8x1024xf32> to vector<8x32xf32>
    %55 = vector.extract_strided_slice %14 {offsets = [0, 0], sizes = [8, 992], strides = [1, 1]} : vector<8x1024xf32> to vector<8x992xf32>
    %56 = tpu.concatenate %54, %55 in 1 : vector<8x32xf32>, vector<8x992xf32> -> vector<8x1024xf32>
    %cst_23 = arith.constant 0.000000e+00 : f32
    %57 = vector.broadcast %cst_23 : f32 to vector<8x1024xf32>
    %58 = arith.select %41, %56, %57 : vector<8x1024xi1>, vector<8x1024xf32>
    %59 = vector.extract_strided_slice %14 {offsets = [0, 993], sizes = [8, 31], strides = [1, 1]} : vector<8x1024xf32> to vector<8x31xf32>
    %60 = vector.extract_strided_slice %14 {offsets = [0, 0], sizes = [8, 993], strides = [1, 1]} : vector<8x1024xf32> to vector<8x993xf32>
    %61 = tpu.concatenate %59, %60 in 1 : vector<8x31xf32>, vector<8x993xf32> -> vector<8x1024xf32>
    %62 = arith.andi %41, %47 : vector<8x1024xi1>
    %cst_24 = arith.constant 0.000000e+00 : f32
    %63 = vector.broadcast %cst_24 : f32 to vector<8x1024xf32>
    %64 = arith.select %62, %61, %63 : vector<8x1024xi1>, vector<8x1024xf32>
    %65 = vector.extract_strided_slice %14 {offsets = [0, 1023], sizes = [8, 1], strides = [1, 1]} : vector<8x1024xf32> to vector<8x1xf32>
    %66 = vector.extract_strided_slice %14 {offsets = [0, 0], sizes = [8, 1023], strides = [1, 1]} : vector<8x1024xf32> to vector<8x1023xf32>
    %67 = tpu.concatenate %65, %66 in 1 : vector<8x1xf32>, vector<8x1023xf32> -> vector<8x1024xf32>
    %cst_25 = arith.constant 0.000000e+00 : f32
    %68 = vector.broadcast %cst_25 : f32 to vector<8x1024xf32>
    %69 = arith.select %45, %67, %68 : vector<8x1024xi1>, vector<8x1024xf32>
    %70 = vector.extract_strided_slice %14 {offsets = [0, 1], sizes = [8, 1023], strides = [1, 1]} : vector<8x1024xf32> to vector<8x1023xf32>
    %71 = vector.extract_strided_slice %14 {offsets = [0, 0], sizes = [8, 1], strides = [1, 1]} : vector<8x1024xf32> to vector<8x1xf32>
    %72 = tpu.concatenate %70, %71 in 1 : vector<8x1023xf32>, vector<8x1xf32> -> vector<8x1024xf32>
    %cst_26 = arith.constant 0.000000e+00 : f32
    %73 = vector.broadcast %cst_26 : f32 to vector<8x1024xf32>
    %74 = arith.select %47, %72, %73 : vector<8x1024xi1>, vector<8x1024xf32>
    %75 = vector.extract_strided_slice %14 {offsets = [0, 31], sizes = [8, 993], strides = [1, 1]} : vector<8x1024xf32> to vector<8x993xf32>
    %76 = vector.extract_strided_slice %14 {offsets = [0, 0], sizes = [8, 31], strides = [1, 1]} : vector<8x1024xf32> to vector<8x31xf32>
    %77 = tpu.concatenate %75, %76 in 1 : vector<8x993xf32>, vector<8x31xf32> -> vector<8x1024xf32>
    %78 = arith.andi %43, %45 : vector<8x1024xi1>
    %cst_27 = arith.constant 0.000000e+00 : f32
    %79 = vector.broadcast %cst_27 : f32 to vector<8x1024xf32>
    %80 = arith.select %78, %77, %79 : vector<8x1024xi1>, vector<8x1024xf32>
    %81 = vector.extract_strided_slice %14 {offsets = [0, 32], sizes = [8, 992], strides = [1, 1]} : vector<8x1024xf32> to vector<8x992xf32>
    %82 = vector.extract_strided_slice %14 {offsets = [0, 0], sizes = [8, 32], strides = [1, 1]} : vector<8x1024xf32> to vector<8x32xf32>
    %83 = tpu.concatenate %81, %82 in 1 : vector<8x992xf32>, vector<8x32xf32> -> vector<8x1024xf32>
    %cst_28 = arith.constant 0.000000e+00 : f32
    %84 = vector.broadcast %cst_28 : f32 to vector<8x1024xf32>
    %85 = arith.select %43, %83, %84 : vector<8x1024xi1>, vector<8x1024xf32>
    %86 = vector.extract_strided_slice %14 {offsets = [0, 33], sizes = [8, 991], strides = [1, 1]} : vector<8x1024xf32> to vector<8x991xf32>
    %87 = vector.extract_strided_slice %14 {offsets = [0, 0], sizes = [8, 33], strides = [1, 1]} : vector<8x1024xf32> to vector<8x33xf32>
    %88 = tpu.concatenate %86, %87 in 1 : vector<8x991xf32>, vector<8x33xf32> -> vector<8x1024xf32>
    %89 = arith.andi %43, %47 : vector<8x1024xi1>
    %cst_29 = arith.constant 0.000000e+00 : f32
    %90 = vector.broadcast %cst_29 : f32 to vector<8x1024xf32>
    %91 = arith.select %89, %88, %90 : vector<8x1024xi1>, vector<8x1024xf32>
    %92 = tpu.concatenate %53, %58, %64, %69, %14, %74, %80, %85, %91 in 0 : vector<8x1024xf32>, vector<8x1024xf32>, vector<8x1024xf32>, vector<8x1024xf32>, vector<8x1024xf32>, vector<8x1024xf32>, vector<8x1024xf32>, vector<8x1024xf32>, vector<8x1024xf32> -> vector<72x1024xf32>
    %c0_30 = arith.constant 0 : index
    %c0_31 = arith.constant 0 : index
    %93 = vector.load %arg7[%c0_30, %c0_31] : memref<8x72xf32, #tpu.memory_space<vmem>>, vector<8x72xf32>
    %cst_32 = arith.constant dense<0.000000e+00> : vector<8x1024xf32>
    %94 = tpu.matmul %93, %92, %cst_32 {dimension_numbers = #tpu.dot_dimension_numbers<[1], [0], [0], [1], [0, 0, 1, 1], [], []>} : vector<8x72xf32>, vector<72x1024xf32>, vector<8x1024xf32> -> vector<8x1024xf32>
    %c0_33 = arith.constant 0 : index
    %c0_34 = arith.constant 0 : index
    %95 = vector.load %arg8[%c0_33, %c0_34] : memref<8x1xf32, #tpu.memory_space<vmem>>, vector<8x1xf32>
    %96 = vector.broadcast %95 : vector<8x1xf32> to vector<8x1024xf32>
    %97 = arith.addf %94, %96 : vector<8x1024xf32>
    %c0_35 = arith.constant 0 : index
    %c0_36 = arith.constant 0 : index
    %c0_37 = arith.constant 0 : index
    %98 = vector.load %arg10[%c0_35, %c0_36, %c0_37] : memref<1x8x1024xf32, #tpu.memory_space<vmem>>, vector<1x8x1024xf32>
    %99 = vector.shape_cast %98 : vector<1x8x1024xf32> to vector<8x1024xf32>
    %100 = vector.shape_cast %97 : vector<8x1024xf32> to vector<1x8x1024xf32>
    tpu.vector_store %arg10[%c0_35, %c0_36, %c0_37], %100 {strides = array<i32>} : memref<1x8x1024xf32, #tpu.memory_space<vmem>>, vector<1x8x1024xf32>,
    %cst_38 = arith.constant dense<0.000000e+00> : vector<8xf32>
    %101 = vector.multi_reduction <add>, %97, %cst_38 [1] : vector<8x1024xf32> to vector<8xf32>
    %102 = vector.shape_cast %101 : vector<8xf32> to vector<8x1xf32>
    %103 = arith.mulf %97, %97 : vector<8x1024xf32>
    %cst_39 = arith.constant dense<0.000000e+00> : vector<8xf32>
    %104 = vector.multi_reduction <add>, %103, %cst_39 [1] : vector<8x1024xf32> to vector<8xf32>
    %105 = vector.shape_cast %104 : vector<8xf32> to vector<8x1xf32>
    %106 = tpu.concatenate %102, %105 in 1 : vector<8x1xf32>, vector<8x1xf32> -> vector<8x2xf32>
    %c0_40 = arith.constant 0 : index
    %c0_41 = arith.constant 0 : index
    %c0_42 = arith.constant 0 : index
    %107 = vector.load %arg11[%c0_40, %c0_41, %c0_42] : memref<1x8x2xf32, #tpu.memory_space<vmem>>, vector<1x8x2xf32>
    %108 = vector.shape_cast %107 : vector<1x8x2xf32> to vector<8x2xf32>
    %109 = vector.shape_cast %106 : vector<8x2xf32> to vector<1x8x2xf32>
    tpu.vector_store %arg11[%c0_40, %c0_41, %c0_42], %109 {strides = array<i32>} : memref<1x8x2xf32, #tpu.memory_space<vmem>>, vector<1x8x2xf32>,
    return
  }
  func.func @transform_0(%arg0: i32) -> (i32, i32, i32) {
    %c0_i32 = arith.constant 0 : i32
    %c0_i32_0 = arith.constant 0 : i32
    %c0_i32_1 = arith.constant 0 : i32
    return %arg0, %c0_i32, %c0_i32_0 : i32, i32, i32
  }
  func.func @transform_1(%arg0: i32) -> (i32, i32) {
    %c0_i32 = arith.constant 0 : i32
    %c0_i32_0 = arith.constant 0 : i32
    %c0_i32_1 = arith.constant 0 : i32
    return %c0_i32, %c0_i32_0 : i32, i32
  }
  func.func @transform_2(%arg0: i32) -> (i32, i32) {
    %c0_i32 = arith.constant 0 : i32
    %c0_i32_0 = arith.constant 0 : i32
    %c0_i32_1 = arith.constant 0 : i32
    return %c0_i32, %c0_i32_0 : i32, i32
  }
  func.func @transform_3(%arg0: i32) -> (i32, i32) {
    %c0_i32 = arith.constant 0 : i32
    %c0_i32_0 = arith.constant 0 : i32
    %c0_i32_1 = arith.constant 0 : i32
    return %c0_i32, %c0_i32_0 : i32, i32
  }
  func.func @transform_4(%arg0: i32) -> (i32, i32) {
    %c0_i32 = arith.constant 0 : i32
    %c0_i32_0 = arith.constant 0 : i32
    %c0_i32_1 = arith.constant 0 : i32
    return %c0_i32, %c0_i32_0 : i32, i32
  }
  func.func @transform_5(%arg0: i32) -> (i32, i32) {
    %c0_i32 = arith.constant 0 : i32
    %c0_i32_0 = arith.constant 0 : i32
    %c0_i32_1 = arith.constant 0 : i32
    return %c0_i32, %c0_i32_0 : i32, i32
  }
  func.func @transform_6(%arg0: i32) -> (i32, i32) {
    %c0_i32 = arith.constant 0 : i32
    %c0_i32_0 = arith.constant 0 : i32
    %c0_i32_1 = arith.constant 0 : i32
    return %c0_i32, %c0_i32_0 : i32, i32
  }
  func.func @transform_7(%arg0: i32) -> (i32, i32) {
    %c0_i32 = arith.constant 0 : i32
    %c0_i32_0 = arith.constant 0 : i32
    %c0_i32_1 = arith.constant 0 : i32
    return %c0_i32, %c0_i32_0 : i32, i32
  }
  func.func @transform_8(%arg0: i32) -> (i32, i32, i32) {
    %c0_i32 = arith.constant 0 : i32
    %c0_i32_0 = arith.constant 0 : i32
    %c0_i32_1 = arith.constant 0 : i32
    return %arg0, %c0_i32, %c0_i32_0 : i32, i32, i32
  }
  func.func @transform_9(%arg0: i32) -> (i32, i32, i32) {
    %c0_i32 = arith.constant 0 : i32
    %c0_i32_0 = arith.constant 0 : i32
    %c0_i32_1 = arith.constant 0 : i32
    return %arg0, %c0_i32, %c0_i32_0 : i32, i32, i32
  }
  func.func @transform_10(%arg0: i32) -> (i32, i32, i32) {
    %c0_i32 = arith.constant 0 : i32
    %c0_i32_0 = arith.constant 0 : i32
    %c0_i32_1 = arith.constant 0 : i32
    return %arg0, %c0_i32, %c0_i32_0 : i32, i32, i32
  }
}

module attributes {stable_mosaic.version = 11 : i64} {
  func.func @_back_kernel(%arg0: i32, %arg1: memref<1x8x1024xf32, #tpu.memory_space<vmem>>, %arg2: memref<8x1xf32, #tpu.memory_space<vmem>>, %arg3: memref<8x1xf32, #tpu.memory_space<vmem>>, %arg4: memref<8x72xf32, #tpu.memory_space<vmem>>, %arg5: memref<8x1xf32, #tpu.memory_space<vmem>>, %arg6: memref<1x8x1024xf32, #tpu.memory_space<vmem>>, %arg7: memref<1x8x1024xf32, #tpu.memory_space<vmem>>) attributes {dimension_semantics = [#tpu.dimension_semantics<parallel>], iteration_bounds = array<i64: 2>, scalar_prefetch = 0 : i64, scratch_operands = 0 : i64, tpu.core_type = #tpu.core_type<tc>, window_params = [{transform_indices = @transform_0, window_bounds = array<i64: 1, 8, 1024>}, {pipeline_mode = #tpu.pipeline_mode<synchronous>, transform_indices = @transform_1, window_bounds = array<i64: 8, 1>}, {pipeline_mode = #tpu.pipeline_mode<synchronous>, transform_indices = @transform_2, window_bounds = array<i64: 8, 1>}, {pipeline_mode = #tpu.pipeline_mode<synchronous>, transform_indices = @transform_3, window_bounds = array<i64: 8, 72>}, {pipeline_mode = #tpu.pipeline_mode<synchronous>, transform_indices = @transform_4, window_bounds = array<i64: 8, 1>}, {transform_indices = @transform_5, window_bounds = array<i64: 1, 8, 1024>}, {transform_indices = @transform_6, window_bounds = array<i64: 1, 8, 1024>}]} {
    %c0 = arith.constant 0 : index
    %c0_0 = arith.constant 0 : index
    %c0_1 = arith.constant 0 : index
    %0 = vector.load %arg1[%c0, %c0_0, %c0_1] : memref<1x8x1024xf32, #tpu.memory_space<vmem>>, vector<1x8x1024xf32>
    %1 = vector.shape_cast %0 : vector<1x8x1024xf32> to vector<8x1024xf32>
    %c0_2 = arith.constant 0 : index
    %c0_3 = arith.constant 0 : index
    %2 = vector.load %arg2[%c0_2, %c0_3] : memref<8x1xf32, #tpu.memory_space<vmem>>, vector<8x1xf32>
    %3 = vector.broadcast %2 : vector<8x1xf32> to vector<8x1024xf32>
    %4 = arith.mulf %1, %3 : vector<8x1024xf32>
    %c0_4 = arith.constant 0 : index
    %c0_5 = arith.constant 0 : index
    %5 = vector.load %arg3[%c0_4, %c0_5] : memref<8x1xf32, #tpu.memory_space<vmem>>, vector<8x1xf32>
    %6 = vector.broadcast %5 : vector<8x1xf32> to vector<8x1024xf32>
    %7 = arith.addf %4, %6 : vector<8x1024xf32>
    %cst = arith.constant 0.000000e+00 : f32
    %8 = vector.broadcast %cst : f32 to vector<8x1024xf32>
    %9 = arith.maximumf %7, %8 : vector<8x1024xf32>
    %10 = tpu.iota {dimensions = array<i32: 1>} : vector<8x1024xi32>
    %c32_i32 = arith.constant 32 : i32
    %c0_i32 = arith.constant 0 : i32
    %11 = arith.cmpi eq, %c32_i32, %c0_i32 : i32
    %c1_i32 = arith.constant 1 : i32
    %12 = arith.select %11, %c1_i32, %c32_i32 : i32
    %13 = vector.broadcast %12 : i32 to vector<8x1024xi32>
    %14 = arith.remsi %10, %13 : vector<8x1024xi32>
    %c0_i32_6 = arith.constant 0 : i32
    %15 = vector.broadcast %c0_i32_6 : i32 to vector<8x1024xi32>
    %16 = arith.cmpi ne, %14, %15 : vector<8x1024xi32>
    %c0_i32_7 = arith.constant 0 : i32
    %17 = vector.broadcast %c0_i32_7 : i32 to vector<8x1024xi32>
    %18 = arith.cmpi slt, %14, %17 : vector<8x1024xi32>
    %c0_i32_8 = arith.constant 0 : i32
    %19 = arith.cmpi slt, %12, %c0_i32_8 : i32
    %20 = vector.broadcast %19 : i1 to vector<8x1024xi1>
    %21 = vector.broadcast %20 : vector<8x1024xi1> to vector<8x1024xi1>
    %22 = arith.xori %18, %21 : vector<8x1024xi1>
    %23 = arith.andi %22, %16 : vector<8x1024xi1>
    %24 = vector.broadcast %12 : i32 to vector<8x1024xi32>
    %25 = arith.addi %14, %24 : vector<8x1024xi32>
    %26 = arith.select %23, %25, %14 : vector<8x1024xi1>, vector<8x1024xi32>
    %c32_i32_9 = arith.constant 32 : i32
    %27 = vector.broadcast %c32_i32_9 : i32 to vector<8x1024xi32>
    %28 = arith.cmpi sge, %10, %27 : vector<8x1024xi32>
    %c992_i32 = arith.constant 992 : i32
    %29 = vector.broadcast %c992_i32 : i32 to vector<8x1024xi32>
    %30 = arith.cmpi slt, %10, %29 : vector<8x1024xi32>
    %c1_i32_10 = arith.constant 1 : i32
    %31 = vector.broadcast %c1_i32_10 : i32 to vector<8x1024xi32>
    %32 = arith.cmpi sge, %26, %31 : vector<8x1024xi32>
    %c31_i32 = arith.constant 31 : i32
    %33 = vector.broadcast %c31_i32 : i32 to vector<8x1024xi32>
    %34 = arith.cmpi slt, %26, %33 : vector<8x1024xi32>
    %35 = vector.extract_strided_slice %9 {offsets = [0, 991], sizes = [8, 33], strides = [1, 1]} : vector<8x1024xf32> to vector<8x33xf32>
    %36 = vector.extract_strided_slice %9 {offsets = [0, 0], sizes = [8, 991], strides = [1, 1]} : vector<8x1024xf32> to vector<8x991xf32>
    %37 = tpu.concatenate %35, %36 in 1 : vector<8x33xf32>, vector<8x991xf32> -> vector<8x1024xf32>
    %38 = arith.andi %28, %32 : vector<8x1024xi1>
    %cst_11 = arith.constant 0.000000e+00 : f32
    %39 = vector.broadcast %cst_11 : f32 to vector<8x1024xf32>
    %40 = arith.select %38, %37, %39 : vector<8x1024xi1>, vector<8x1024xf32>
    %41 = vector.extract_strided_slice %9 {offsets = [0, 992], sizes = [8, 32], strides = [1, 1]} : vector<8x1024xf32> to vector<8x32xf32>
    %42 = vector.extract_strided_slice %9 {offsets = [0, 0], sizes = [8, 992], strides = [1, 1]} : vector<8x1024xf32> to vector<8x992xf32>
    %43 = tpu.concatenate %41, %42 in 1 : vector<8x32xf32>, vector<8x992xf32> -> vector<8x1024xf32>
    %cst_12 = arith.constant 0.000000e+00 : f32
    %44 = vector.broadcast %cst_12 : f32 to vector<8x1024xf32>
    %45 = arith.select %28, %43, %44 : vector<8x1024xi1>, vector<8x1024xf32>
    %46 = vector.extract_strided_slice %9 {offsets = [0, 993], sizes = [8, 31], strides = [1, 1]} : vector<8x1024xf32> to vector<8x31xf32>
    %47 = vector.extract_strided_slice %9 {offsets = [0, 0], sizes = [8, 993], strides = [1, 1]} : vector<8x1024xf32> to vector<8x993xf32>
    %48 = tpu.concatenate %46, %47 in 1 : vector<8x31xf32>, vector<8x993xf32> -> vector<8x1024xf32>
    %49 = arith.andi %28, %34 : vector<8x1024xi1>
    %cst_13 = arith.constant 0.000000e+00 : f32
    %50 = vector.broadcast %cst_13 : f32 to vector<8x1024xf32>
    %51 = arith.select %49, %48, %50 : vector<8x1024xi1>, vector<8x1024xf32>
    %52 = vector.extract_strided_slice %9 {offsets = [0, 1023], sizes = [8, 1], strides = [1, 1]} : vector<8x1024xf32> to vector<8x1xf32>
    %53 = vector.extract_strided_slice %9 {offsets = [0, 0], sizes = [8, 1023], strides = [1, 1]} : vector<8x1024xf32> to vector<8x1023xf32>
    %54 = tpu.concatenate %52, %53 in 1 : vector<8x1xf32>, vector<8x1023xf32> -> vector<8x1024xf32>
    %cst_14 = arith.constant 0.000000e+00 : f32
    %55 = vector.broadcast %cst_14 : f32 to vector<8x1024xf32>
    %56 = arith.select %32, %54, %55 : vector<8x1024xi1>, vector<8x1024xf32>
    %57 = vector.extract_strided_slice %9 {offsets = [0, 1], sizes = [8, 1023], strides = [1, 1]} : vector<8x1024xf32> to vector<8x1023xf32>
    %58 = vector.extract_strided_slice %9 {offsets = [0, 0], sizes = [8, 1], strides = [1, 1]} : vector<8x1024xf32> to vector<8x1xf32>
    %59 = tpu.concatenate %57, %58 in 1 : vector<8x1023xf32>, vector<8x1xf32> -> vector<8x1024xf32>
    %cst_15 = arith.constant 0.000000e+00 : f32
    %60 = vector.broadcast %cst_15 : f32 to vector<8x1024xf32>
    %61 = arith.select %34, %59, %60 : vector<8x1024xi1>, vector<8x1024xf32>
    %62 = vector.extract_strided_slice %9 {offsets = [0, 31], sizes = [8, 993], strides = [1, 1]} : vector<8x1024xf32> to vector<8x993xf32>
    %63 = vector.extract_strided_slice %9 {offsets = [0, 0], sizes = [8, 31], strides = [1, 1]} : vector<8x1024xf32> to vector<8x31xf32>
    %64 = tpu.concatenate %62, %63 in 1 : vector<8x993xf32>, vector<8x31xf32> -> vector<8x1024xf32>
    %65 = arith.andi %30, %32 : vector<8x1024xi1>
    %cst_16 = arith.constant 0.000000e+00 : f32
    %66 = vector.broadcast %cst_16 : f32 to vector<8x1024xf32>
    %67 = arith.select %65, %64, %66 : vector<8x1024xi1>, vector<8x1024xf32>
    %68 = vector.extract_strided_slice %9 {offsets = [0, 32], sizes = [8, 992], strides = [1, 1]} : vector<8x1024xf32> to vector<8x992xf32>
    %69 = vector.extract_strided_slice %9 {offsets = [0, 0], sizes = [8, 32], strides = [1, 1]} : vector<8x1024xf32> to vector<8x32xf32>
    %70 = tpu.concatenate %68, %69 in 1 : vector<8x992xf32>, vector<8x32xf32> -> vector<8x1024xf32>
    %cst_17 = arith.constant 0.000000e+00 : f32
    %71 = vector.broadcast %cst_17 : f32 to vector<8x1024xf32>
    %72 = arith.select %30, %70, %71 : vector<8x1024xi1>, vector<8x1024xf32>
    %73 = vector.extract_strided_slice %9 {offsets = [0, 33], sizes = [8, 991], strides = [1, 1]} : vector<8x1024xf32> to vector<8x991xf32>
    %74 = vector.extract_strided_slice %9 {offsets = [0, 0], sizes = [8, 33], strides = [1, 1]} : vector<8x1024xf32> to vector<8x33xf32>
    %75 = tpu.concatenate %73, %74 in 1 : vector<8x991xf32>, vector<8x33xf32> -> vector<8x1024xf32>
    %76 = arith.andi %30, %34 : vector<8x1024xi1>
    %cst_18 = arith.constant 0.000000e+00 : f32
    %77 = vector.broadcast %cst_18 : f32 to vector<8x1024xf32>
    %78 = arith.select %76, %75, %77 : vector<8x1024xi1>, vector<8x1024xf32>
    %79 = tpu.concatenate %40, %45, %51, %56, %9, %61, %67, %72, %78 in 0 : vector<8x1024xf32>, vector<8x1024xf32>, vector<8x1024xf32>, vector<8x1024xf32>, vector<8x1024xf32>, vector<8x1024xf32>, vector<8x1024xf32>, vector<8x1024xf32>, vector<8x1024xf32> -> vector<72x1024xf32>
    %c0_19 = arith.constant 0 : index
    %c0_20 = arith.constant 0 : index
    %80 = vector.load %arg4[%c0_19, %c0_20] : memref<8x72xf32, #tpu.memory_space<vmem>>, vector<8x72xf32>
    %cst_21 = arith.constant dense<0.000000e+00> : vector<8x1024xf32>
    %81 = tpu.matmul %80, %79, %cst_21 {dimension_numbers = #tpu.dot_dimension_numbers<[1], [0], [0], [1], [0, 0, 1, 1], [], []>} : vector<8x72xf32>, vector<72x1024xf32>, vector<8x1024xf32> -> vector<8x1024xf32>
    %c0_22 = arith.constant 0 : index
    %c0_23 = arith.constant 0 : index
    %82 = vector.load %arg5[%c0_22, %c0_23] : memref<8x1xf32, #tpu.memory_space<vmem>>, vector<8x1xf32>
    %83 = vector.broadcast %82 : vector<8x1xf32> to vector<8x1024xf32>
    %84 = arith.addf %81, %83 : vector<8x1024xf32>
    %c0_24 = arith.constant 0 : index
    %c0_25 = arith.constant 0 : index
    %c0_26 = arith.constant 0 : index
    %85 = vector.load %arg6[%c0_24, %c0_25, %c0_26] : memref<1x8x1024xf32, #tpu.memory_space<vmem>>, vector<1x8x1024xf32>
    %86 = vector.shape_cast %85 : vector<1x8x1024xf32> to vector<8x1024xf32>
    %87 = arith.addf %84, %86 : vector<8x1024xf32>
    %c0_27 = arith.constant 0 : index
    %c0_28 = arith.constant 0 : index
    %c0_29 = arith.constant 0 : index
    %88 = vector.load %arg7[%c0_27, %c0_28, %c0_29] : memref<1x8x1024xf32, #tpu.memory_space<vmem>>, vector<1x8x1024xf32>
    %89 = vector.shape_cast %88 : vector<1x8x1024xf32> to vector<8x1024xf32>
    %90 = vector.shape_cast %87 : vector<8x1024xf32> to vector<1x8x1024xf32>
    tpu.vector_store %arg7[%c0_27, %c0_28, %c0_29], %90 {strides = array<i32>} : memref<1x8x1024xf32, #tpu.memory_space<vmem>>, vector<1x8x1024xf32>,
    return
  }
  func.func @transform_0(%arg0: i32) -> (i32, i32, i32) {
    %c0_i32 = arith.constant 0 : i32
    %c0_i32_0 = arith.constant 0 : i32
    %c0_i32_1 = arith.constant 0 : i32
    return %arg0, %c0_i32, %c0_i32_0 : i32, i32, i32
  }
  func.func @transform_1(%arg0: i32) -> (i32, i32) {
    %c0_i32 = arith.constant 0 : i32
    %c0_i32_0 = arith.constant 0 : i32
    %c0_i32_1 = arith.constant 0 : i32
    return %c0_i32, %c0_i32_0 : i32, i32
  }
  func.func @transform_2(%arg0: i32) -> (i32, i32) {
    %c0_i32 = arith.constant 0 : i32
    %c0_i32_0 = arith.constant 0 : i32
    %c0_i32_1 = arith.constant 0 : i32
    return %c0_i32, %c0_i32_0 : i32, i32
  }
  func.func @transform_3(%arg0: i32) -> (i32, i32) {
    %c0_i32 = arith.constant 0 : i32
    %c0_i32_0 = arith.constant 0 : i32
    %c0_i32_1 = arith.constant 0 : i32
    return %c0_i32, %c0_i32_0 : i32, i32
  }
  func.func @transform_4(%arg0: i32) -> (i32, i32) {
    %c0_i32 = arith.constant 0 : i32
    %c0_i32_0 = arith.constant 0 : i32
    %c0_i32_1 = arith.constant 0 : i32
    return %c0_i32, %c0_i32_0 : i32, i32
  }
  func.func @transform_5(%arg0: i32) -> (i32, i32, i32) {
    %c0_i32 = arith.constant 0 : i32
    %c0_i32_0 = arith.constant 0 : i32
    %c0_i32_1 = arith.constant 0 : i32
    return %arg0, %c0_i32, %c0_i32_0 : i32, i32, i32
  }
  func.func @transform_6(%arg0: i32) -> (i32, i32, i32) {
    %c0_i32 = arith.constant 0 : i32
    %c0_i32_0 = arith.constant 0 : i32
    %c0_i32_1 = arith.constant 0 : i32
    return %arg0, %c0_i32, %c0_i32_0 : i32, i32, i32
  }
}

</mosaic_0001>

<llo_original>
// kernel: gblock_up_forward.3
$region0: #{gblock_up_forward.3}
  #allocation0 [shape = 'u32[]', space=smem, size = 0x4, offset = 0x4, fixed_abs, tag = 'smem constant byte address 0x4 - core index']
  #allocation1 [shape = 'u32[144,128]{1,0:T(1,128)}', space=vmem, size = 0x12000, scoped, tag = 'internal scratch']
  #allocation2 [shape = 'f32[8,1]{1,0:T(8,128)}', space=vmem, size = 0x1000, scoped, tag = 'scratch operand']
  #allocation3 [shape = 'f32[8,1]{1,0:T(8,128)}', space=vmem, size = 0x1000, scoped, tag = 'scratch operand']
  %s0 = inlined_call_operand.vmem [shape: f32[2,8,256], index: 0, kind: input, shape index: {}]
  %s1 = inlined_call_operand.vmem [shape: f32[8,1], index: 1, kind: input, shape index: {}]
  %s2 = inlined_call_operand.vmem [shape: f32[8,1], index: 2, kind: input, shape index: {}]
  %s3 = inlined_call_operand.vmem [shape: f32[8,1], index: 3, kind: output, shape index: {0}]
  %s4 = inlined_call_operand.vmem [shape: f32[8,1], index: 4, kind: output, shape index: {1}]
  %5 = xla_tuple %s3, %s4
  %s6 = sld [smem:[#allocation0]]
  $region61: #{gblock_up_forward.3} parent=0
    _
  %s8 = ssub.s32 1, %s6
  %s9 = scalar_select 0, %s8, %s6
  loop: start=0, step=1, limit=4
  $region2: #{gblock_up_forward.3} parent=0 // loop_pre_header
    _
  $region3: #{gblock_up_forward.3} parent=0 // loop_header
    %s11 = sphi 0, %s15
    %p12 = scmp.ge.s32.totalorder %s11, 4
    %s21 = sphi 0, %s23
    %s24 = sphi 0, %s21
    %s25 = sphi 0, %s24
    %s41 = sphi 0, %s25
    %s45 = sphi 0, %s45
    %s47 = sphi 0, %s45
    %s48 = sphi 0, %s47
    %s62 = sphi 0, %s48
    %s66 = sphi 0, %s66
    %s68 = sphi 0, %s66
    %s69 = sphi 0, %s68
    %s83 = sphi 0, %s69
    %s87 = sphi 0, %s87
    %s89 = sphi 0, %s87
    %s90 = sphi 0, %s89
    %s104 = sphi 0, %s90
    %s108 = sphi 0, %s108
    %s110 = sphi 0, %s108
    %s111 = sphi 0, %s110
    %s125 = sphi 0, %s111
  $region4: #{gblock_up_forward.3} parent=0 // loop_header_branch
    %14 = sbr.rel (%p12) target = $region8
  $region5: #{gblock_up_forward.3} parent=0 // loop_body
    %s16 = ssub.s32 %s11, 1
    %s17 = ssub.s32 %s11, 2
    %s18 = sadd.s32 %s11, 1
    %s19 = ssub.s32 %s11, %s18
    %p20 = scmp.eq.s32.totalorder %s19, 0
    %s22 = sadd.s32 %s21, 1
    %s23 = scalar_select %p20, %s21, %s22
    %p26 = pneg %p20
    %p27 = scmp.eq.s32.totalorder %s11, 1
    %p28 = por %p26, %p27
    %p29 = scmp.ne.s32.totalorder %s21, %s24
    %p30 = scmp.eq.s32.totalorder %s11, 0
    %p31 = por %p29, %p30
    %p32 = scmp.ne.s32.totalorder %s21, %s24
    %p33 = scmp.eq.s32.totalorder %s16, 1
    %p34 = por %p32, %p33
    %p35 = scmp.ne.s32.totalorder %s24, %s25
    %p36 = scmp.eq.s32.totalorder %s16, 0
    %p37 = por %p35, %p36
    %p38 = scmp.ne.s32.totalorder %s24, %s25
    %p39 = scmp.eq.s32.totalorder %s17, 1
    %p40 = por %p38, %p39
    %p42 = scmp.ne.s32.totalorder %s25, %s41
    %p43 = scmp.eq.s32.totalorder %s17, 0
    %p44 = por %p42, %p43
    %s46 = sadd.s32 %s45, 1
    %p49 = scmp.eq.s32.totalorder %s11, 1
    %p50 = scmp.ne.s32.totalorder %s45, %s47
    %p51 = scmp.eq.s32.totalorder %s11, 0
    %p52 = por %p50, %p51
    %p53 = scmp.ne.s32.totalorder %s45, %s47
    %p54 = scmp.eq.s32.totalorder %s16, 1
    %p55 = por %p53, %p54
    %p56 = scmp.ne.s32.totalorder %s47, %s48
    %p57 = scmp.eq.s32.totalorder %s16, 0
    %p58 = por %p56, %p57
    %p59 = scmp.ne.s32.totalorder %s47, %s48
    %p60 = scmp.eq.s32.totalorder %s17, 1
    %p61 = por %p59, %p60
    %p63 = scmp.ne.s32.totalorder %s48, %s62
    %p64 = scmp.eq.s32.totalorder %s17, 0
    %p65 = por %p63, %p64
    %s67 = sadd.s32 %s66, 1
    %p70 = scmp.eq.s32.totalorder %s11, 1
    %p71 = scmp.ne.s32.totalorder %s66, %s68
    %p72 = scmp.eq.s32.totalorder %s11, 0
    %p73 = por %p71, %p72
    %p74 = scmp.ne.s32.totalorder %s66, %s68
    %p75 = scmp.eq.s32.totalorder %s16, 1
    %p76 = por %p74, %p75
    %p77 = scmp.ne.s32.totalorder %s68, %s69
    %p78 = scmp.eq.s32.totalorder %s16, 0
    %p79 = por %p77, %p78
    %p80 = scmp.ne.s32.totalorder %s68, %s69
    %p81 = scmp.eq.s32.totalorder %s17, 1
    %p82 = por %p80, %p81
    %p84 = scmp.ne.s32.totalorder %s69, %s83
    %p85 = scmp.eq.s32.totalorder %s17, 0
    %p86 = por %p84, %p85
    %s88 = sadd.s32 %s87, 1
    %p91 = scmp.eq.s32.totalorder %s11, 1
    %p92 = scmp.ne.s32.totalorder %s87, %s89
    %p93 = scmp.eq.s32.totalorder %s11, 0
    %p94 = por %p92, %p93
    %p95 = scmp.ne.s32.totalorder %s87, %s89
    %p96 = scmp.eq.s32.totalorder %s16, 1
    %p97 = por %p95, %p96
    %p98 = scmp.ne.s32.totalorder %s89, %s90
    %p99 = scmp.eq.s32.totalorder %s16, 0
    %p100 = por %p98, %p99
    %p101 = scmp.ne.s32.totalorder %s89, %s90
    %p102 = scmp.eq.s32.totalorder %s17, 1
    %p103 = por %p101, %p102
    %p105 = scmp.ne.s32.totalorder %s90, %s104
    %p106 = scmp.eq.s32.totalorder %s17, 0
    %p107 = por %p105, %p106
    %s109 = sadd.s32 %s108, 1
    %p112 = scmp.eq.s32.totalorder %s11, 1
    %p113 = scmp.ne.s32.totalorder %s108, %s110
    %p114 = scmp.eq.s32.totalorder %s11, 0
    %p115 = por %p113, %p114
    %p116 = scmp.ne.s32.totalorder %s108, %s110
    %p117 = scmp.eq.s32.totalorder %s16, 1
    %p118 = por %p116, %p117
    %p119 = scmp.ne.s32.totalorder %s110, %s111
    %p120 = scmp.eq.s32.totalorder %s16, 0
    %p121 = por %p119, %p120
    %p122 = scmp.ne.s32.totalorder %s110, %s111
    %p123 = scmp.eq.s32.totalorder %s17, 1
    %p124 = por %p122, %p123
    %p126 = scmp.ne.s32.totalorder %s111, %s125
    %p127 = scmp.eq.s32.totalorder %s17, 0
    %p128 = por %p126, %p127
    %p129 = scmp.le.s32.totalorder 1, %s11
    %p130 = scmp.lt.s32.totalorder %s11, 3
    %p131 = pnand %p129, %p130
    %p132 = pneg %p131
    // Predicated region
    $region9: #{gblock_up_forward.3} parent=5 // pred_check
      _
    $region10: #{gblock_up_forward.3} parent=5 // pred_check_branch
      %134 = sbr.rel (%p131) target = $region12
    $region11: #{gblock_up_forward.3} parent=5 // pred_region
      %s135 = ssub.s32 %s11, 1
      // Predicated region
      $region13: #{gblock_up_forward.3} parent=11 // pred_check
        %p136 = pneg %p58
      $region14: #{gblock_up_forward.3} parent=11 // pred_check_branch
        %138 = sbr.rel (%p136) target = $region16
      $region15: #{gblock_up_forward.3} parent=11 // pred_region
        _
      $region16: #{gblock_up_forward.3} parent=11 // pred_fallthru
        _
      // Predicated region
      $region17: #{gblock_up_forward.3} parent=11 // pred_check
        %p139 = pneg %p79
      $region18: #{gblock_up_forward.3} parent=11 // pred_check_branch
        %141 = sbr.rel (%p139) target = $region20
      $region19: #{gblock_up_forward.3} parent=11 // pred_region
        _
      $region20: #{gblock_up_forward.3} parent=11 // pred_fallthru
        _
    $region12: #{gblock_up_forward.3} parent=5 // pred_fallthru
      _
    %p142 = scmp.lt.s32.totalorder %s11, 2
    // Predicated region
    $region21: #{gblock_up_forward.3} parent=5 // pred_check
      %p143 = pneg %p142
    $region22: #{gblock_up_forward.3} parent=5 // pred_check_branch
      %145 = sbr.rel (%p143) target = $region24
    $region23: #{gblock_up_forward.3} parent=5 // pred_region
      // Predicated region
      $region25: #{gblock_up_forward.3} parent=23 // pred_check
        %p146 = pneg %p31
      $region26: #{gblock_up_forward.3} parent=23 // pred_check_branch
        %148 = sbr.rel (%p146) target = $region28
      $region27: #{gblock_up_forward.3} parent=23 // pred_region
        %p149 = scmp.lt.s32.totalorder %s11, 1
        %s150 = scalar_select %p149, %s11, 1
        %s151 = smul.addr %s150, 2
        %s152 = smul.addr %s151, 8
        %s153 = scalar_lea.vmem %s0, %s152
      $region28: #{gblock_up_forward.3} parent=23 // pred_fallthru
        _
    $region24: #{gblock_up_forward.3} parent=5 // pred_fallthru
      _
    %p154 = scmp.le.s32.totalorder 1, %s11
    %p155 = scmp.lt.s32.totalorder %s11, 3
    %p156 = pnand %p154, %p155
    %p157 = pneg %p156
    // Predicated region
    $region29: #{gblock_up_forward.3} parent=5 // pred_check
      _
    $region30: #{gblock_up_forward.3} parent=5 // pred_check_branch
      %159 = sbr.rel (%p156) target = $region32
    $region31: #{gblock_up_forward.3} parent=5 // pred_region
      %s160 = ssub.s32 %s11, 1
      %p161 = scmp.lt.s32.totalorder %s16, 1
      %s162 = scalar_select %p161, %s16, 1
      %s163 = smul.addr %s162, 2
      %s164 = smul.addr %s163, 8
      %s165 = scalar_lea.vmem %s0, %s164
      %p166 = pneg %p37
      %p167 = pneg %p34
      %p168 = pneg %p58
      %p169 = pneg %p55
      %p170 = pneg %p79
      %p171 = pneg %p76
      %p172 = pneg %p100
      %p173 = pneg %p97
      %p174 = pneg %p121
      %p175 = pneg %p118
      %p176 = scmp.lt.s32.totalorder %s16, 1
      %s177 = scalar_select %p176, %s16, 1
      %s178 = smul.addr %s177, 2
      %s179 = smul.addr %s178, 8
      %s180 = scalar_lea.vmem %s0, %s179
      %p181 = scmp.eq.s32.totalorder %s16, 0
      // Predicated region
      $region33: #{gblock_up_forward.3} parent=31 // pred_check
        %p182 = pneg %p181
      $region34: #{gblock_up_forward.3} parent=31 // pred_check_branch
        %184 = sbr.rel (%p182) target = $region36
      $region35: #{gblock_up_forward.3} parent=31 // pred_region
        %vm185 = vcmask 7168
        %186 = vst.msk [vmem:[#allocation2] sm:$0xff] %vm185, 0.0
        %187 = vst.msk [vmem:[#allocation3] sm:$0xff] %vm185, 0.0
      $region36: #{gblock_up_forward.3} parent=31 // pred_fallthru
        _
      %v188 = vld [vmem:[%s180] sm:$0xff]
      %v189 = vld [vmem:[%s180 + $0x8] sm:$0xff]
      %v190 = vld [vmem:[#allocation2] sm:$0xff]
      %v191 = vadd.f32 %v188, %v189
      %192 = vadd.xlane.f32.xlu0 %v191
      %v193 = vpop.xlane.xlu0 %192
      %v194 = vadd.f32 %v190, %v193
      %vm195 = vcmask 7168
      %196 = vst.msk [vmem:[#allocation2] sm:$0xff] %vm195, %v194
      %v197 = vld [vmem:[#allocation3] sm:$0xff]
      %v198 = vmul.f32 %v188, %v188
      %v199 = vmul.f32 %v189, %v189
      %v200 = vadd.f32 %v198, %v199
      %201 = vadd.xlane.f32.xlu0 %v200
      %v202 = vpop.xlane.xlu0 %201
      %v203 = vadd.f32 %v197, %v202
      %204 = vst.msk [vmem:[#allocation3] sm:$0xff] %vm195, %v203
      %p205 = scmp.eq.s32.totalorder %s16, 1
      // Predicated region
      $region37: #{gblock_up_forward.3} parent=31 // pred_check
        %p206 = pneg %p205
      $region38: #{gblock_up_forward.3} parent=31 // pred_check_branch
        %208 = sbr.rel (%p206) target = $region40
      $region39: #{gblock_up_forward.3} parent=31 // pred_region
        %v209 = vld [vmem:[#allocation2] sm:$0xff]
        %v210 = vmul.f32 %v209, 0.001953125
        %v211 = vld [vmem:[#allocation3] sm:$0xff]
        %v212 = vmul.f32 %v211, 0.001953125
        %v213 = vmul.f32 %v210, %v210
        %v214 = vsub.f32 %v212, %v213
        %v215 = vld [vmem:[%s1] sm:$0xff]
        %v216 = vadd.f32 %v214, 1e-05
        %v217 = vrsqrt.pop %v216
        %v218 = vmul.f32 %v215, %v217
        %219 = vst.msk [vmem:[%s3] sm:$0xff] %vm195, %v218
        %v220 = vld [vmem:[%s2] sm:$0xff]
        %v221 = vmul.f32 %v210, %v218
        %v222 = vsub.f32 %v220, %v221
        %223 = vst.msk [vmem:[%s4] sm:$0xff] %vm195, %v222
      $region40: #{gblock_up_forward.3} parent=31 // pred_fallthru
        _
      // Predicated region
      $region41: #{gblock_up_forward.3} parent=31 // pred_check
        %p224 = pneg %p97
      $region42: #{gblock_up_forward.3} parent=31 // pred_check_branch
        %226 = sbr.rel (%p224) target = $region44
      $region43: #{gblock_up_forward.3} parent=31 // pred_region
        _
      $region44: #{gblock_up_forward.3} parent=31 // pred_fallthru
        _
      // Predicated region
      $region45: #{gblock_up_forward.3} parent=31 // pred_check
        %p227 = pneg %p118
      $region46: #{gblock_up_forward.3} parent=31 // pred_check_branch
        %229 = sbr.rel (%p227) target = $region48
      $region47: #{gblock_up_forward.3} parent=31 // pred_region
        _
      $region48: #{gblock_up_forward.3} parent=31 // pred_fallthru
        _
      // Predicated region
      $region49: #{gblock_up_forward.3} parent=31 // pred_check
        %p230 = pneg %p97
      $region50: #{gblock_up_forward.3} parent=31 // pred_check_branch
        %232 = sbr.rel (%p230) target = $region52
      $region51: #{gblock_up_forward.3} parent=31 // pred_region
        _
      $region52: #{gblock_up_forward.3} parent=31 // pred_fallthru
        _
      // Predicated region
      $region53: #{gblock_up_forward.3} parent=31 // pred_check
        %p233 = pneg %p118
      $region54: #{gblock_up_forward.3} parent=31 // pred_check_branch
        %235 = sbr.rel (%p233) target = $region56
      $region55: #{gblock_up_forward.3} parent=31 // pred_region
        _
      $region56: #{gblock_up_forward.3} parent=31 // pred_fallthru
        _
    $region32: #{gblock_up_forward.3} parent=5 // pred_fallthru
      _
    %p236 = scmp.le.s32.totalorder 2, %s11
    // Predicated region
    $region57: #{gblock_up_forward.3} parent=5 // pred_check
      %p237 = pneg %p236
    $region58: #{gblock_up_forward.3} parent=5 // pred_check_branch
      %239 = sbr.rel (%p237) target = $region60
    $region59: #{gblock_up_forward.3} parent=5 // pred_region
      %s240 = ssub.s32 %s11, 2
    $region60: #{gblock_up_forward.3} parent=5 // pred_fallthru
      _
  $region6: #{gblock_up_forward.3} parent=0 // loop_footer
    %s15 = sadd.s32 1, %s11
  $region7: #{gblock_up_forward.3} parent=0 // loop_footer_branch
    %10 = sbr.rel target = $region3
  $region8: #{gblock_up_forward.3} parent=0 // loop_exit
    _

// kernel: gblock_up_forward.4
$region0: #{gblock_up_forward.4}
  #allocation0 [shape = 'u32[]', space=smem, size = 0x4, offset = 0x4, fixed_abs, tag = 'smem constant byte address 0x4 - core index']
  #allocation1 [shape = 'u32[144,128]{1,0:T(1,128)}', space=vmem, size = 0x12000, scoped, tag = 'internal scratch']
  %s0 = inlined_call_operand.vmem [shape: f32[2,8,256], index: 0, kind: input, shape index: {}]
  %s1 = inlined_call_operand.hbm [shape: f32[256,1024], index: 1, kind: input, shape index: {}]
  %s2 = inlined_call_operand.vmem [shape: f32[8,1], index: 2, kind: input, shape index: {}]
  %s3 = inlined_call_operand.vmem [shape: f32[8,1], index: 3, kind: input, shape index: {}]
  %s4 = inlined_call_operand.vmem [shape: f32[8,8], index: 4, kind: input, shape index: {}]
  %s5 = inlined_call_operand.vmem [shape: f32[8,1], index: 5, kind: input, shape index: {}]
  %s6 = inlined_call_operand.vmem [shape: f32[8,72], index: 6, kind: input, shape index: {}]
  %s7 = inlined_call_operand.vmem [shape: f32[8,1], index: 7, kind: input, shape index: {}]
  %s8 = inlined_call_operand.vmem [shape: f32[2,8,1024], index: 8, kind: output, shape index: {0}]
  %s9 = inlined_call_operand.vmem [shape: f32[2,8,1024], index: 9, kind: output, shape index: {1}]
  %s10 = inlined_call_operand.vmem [shape: f32[2,8,2], index: 10, kind: output, shape index: {2}]
  %11 = xla_tuple %s8, %s9, %s10
  %s12 = sld [smem:[#allocation0]]
  $region85: #{gblock_up_forward.4} parent=0
    _
  %s14 = ssub.s32 1, %s12
  %s15 = scalar_select 0, %s14, %s12
  $region1: #{gblock_up_forward.4} parent=0
    #allocation2 [shape = 'u8[1048576]{0}', space=vmem, size = 0x100000, scoped, tag = 'input window, operand 1, single buffered']
    #allocation3 [shape = 's32[2]{0}', space=sflag, size = 0x8, scoped, tag = 'scoped memory for gblock_up_forward.4']
    %16 = vsyncpa [#allocation3], 0
    loop: start=0, step=1, limit=4
    $region2: #{gblock_up_forward.4} parent=1 // loop_pre_header
      _
    $region3: #{gblock_up_forward.4} parent=1 // loop_header
      %s18 = sphi 0, %s22
      %p19 = scmp.ge.s32.totalorder %s18, 4
      %s28 = sphi 0, %s30
      %s31 = sphi 0, %s28
      %s32 = sphi 0, %s31
      %s48 = sphi 0, %s32
      %s52 = sphi 0, %s52
      %s54 = sphi 0, %s52
      %s55 = sphi 0, %s54
      %s69 = sphi 0, %s55
      %s73 = sphi 0, %s73
      %s75 = sphi 0, %s73
      %s76 = sphi 0, %s75
      %s90 = sphi 0, %s76
      %s94 = sphi 0, %s94
      %s96 = sphi 0, %s94
      %s97 = sphi 0, %s96
      %s111 = sphi 0, %s97
      %s115 = sphi 0, %s115
      %s117 = sphi 0, %s115
      %s118 = sphi 0, %s117
      %s132 = sphi 0, %s118
      %s136 = sphi 0, %s136
      %s138 = sphi 0, %s136
      %s139 = sphi 0, %s138
      %s153 = sphi 0, %s139
      %s157 = sphi 0, %s157
      %s159 = sphi 0, %s157
      %s160 = sphi 0, %s159
      %s174 = sphi 0, %s160
      %s178 = sphi 0, %s178
      %s180 = sphi 0, %s178
      %s181 = sphi 0, %s180
      %s195 = sphi 0, %s181
      %s201 = sphi 0, %s203
      %s204 = sphi 0, %s201
      %s205 = sphi 0, %s204
      %s221 = sphi 0, %s205
      %s227 = sphi 0, %s229
      %s230 = sphi 0, %s227
      %s231 = sphi 0, %s230
      %s247 = sphi 0, %s231
      %s253 = sphi 0, %s255
      %s256 = sphi 0, %s253
      %s257 = sphi 0, %s256
      %s273 = sphi 0, %s257
    $region4: #{gblock_up_forward.4} parent=1 // loop_header_branch
      %21 = sbr.rel (%p19) target = $region8
    $region5: #{gblock_up_forward.4} parent=1 // loop_body
      %s23 = ssub.s32 %s18, 1
      %s24 = ssub.s32 %s18, 2
      %s25 = sadd.s32 %s18, 1
      %s26 = ssub.s32 %s18, %s25
      %p27 = scmp.eq.s32.totalorder %s26, 0
      %s29 = sadd.s32 %s28, 1
      %s30 = scalar_select %p27, %s28, %s29
      %p33 = pneg %p27
      %p34 = scmp.eq.s32.totalorder %s18, 1
      %p35 = por %p33, %p34
      %p36 = scmp.ne.s32.totalorder %s28, %s31
      %p37 = scmp.eq.s32.totalorder %s18, 0
      %p38 = por %p36, %p37
      %p39 = scmp.ne.s32.totalorder %s28, %s31
      %p40 = scmp.eq.s32.totalorder %s23, 1
      %p41 = por %p39, %p40
      %p42 = scmp.ne.s32.totalorder %s31, %s32
      %p43 = scmp.eq.s32.totalorder %s23, 0
      %p44 = por %p42, %p43
      %p45 = scmp.ne.s32.totalorder %s31, %s32
      %p46 = scmp.eq.s32.totalorder %s24, 1
      %p47 = por %p45, %p46
      %p49 = scmp.ne.s32.totalorder %s32, %s48
      %p50 = scmp.eq.s32.totalorder %s24, 0
      %p51 = por %p49, %p50
      %s53 = sadd.s32 %s52, 1
      %p56 = scmp.eq.s32.totalorder %s18, 1
      %p57 = scmp.ne.s32.totalorder %s52, %s54
      %p58 = scmp.eq.s32.totalorder %s18, 0
      %p59 = por %p57, %p58
      %p60 = scmp.ne.s32.totalorder %s52, %s54
      %p61 = scmp.eq.s32.totalorder %s23, 1
      %p62 = por %p60, %p61
      %p63 = scmp.ne.s32.totalorder %s54, %s55
      %p64 = scmp.eq.s32.totalorder %s23, 0
      %p65 = por %p63, %p64
      %p66 = scmp.ne.s32.totalorder %s54, %s55
      %p67 = scmp.eq.s32.totalorder %s24, 1
      %p68 = por %p66, %p67
      %p70 = scmp.ne.s32.totalorder %s55, %s69
      %p71 = scmp.eq.s32.totalorder %s24, 0
      %p72 = por %p70, %p71
      %s74 = sadd.s32 %s73, 1
      %p77 = scmp.eq.s32.totalorder %s18, 1
      %p78 = scmp.ne.s32.totalorder %s73, %s75
      %p79 = scmp.eq.s32.totalorder %s18, 0
      %p80 = por %p78, %p79
      %p81 = scmp.ne.s32.totalorder %s73, %s75
      %p82 = scmp.eq.s32.totalorder %s23, 1
      %p83 = por %p81, %p82
      %p84 = scmp.ne.s32.totalorder %s75, %s76
      %p85 = scmp.eq.s32.totalorder %s23, 0
      %p86 = por %p84, %p85
      %p87 = scmp.ne.s32.totalorder %s75, %s76
      %p88 = scmp.eq.s32.totalorder %s24, 1
      %p89 = por %p87, %p88
      %p91 = scmp.ne.s32.totalorder %s76, %s90
      %p92 = scmp.eq.s32.totalorder %s24, 0
      %p93 = por %p91, %p92
      %s95 = sadd.s32 %s94, 1
      %p98 = scmp.eq.s32.totalorder %s18, 1
      %p99 = scmp.ne.s32.totalorder %s94, %s96
      %p100 = scmp.eq.s32.totalorder %s18, 0
      %p101 = por %p99, %p100
      %p102 = scmp.ne.s32.totalorder %s94, %s96
      %p103 = scmp.eq.s32.totalorder %s23, 1
      %p104 = por %p102, %p103
      %p105 = scmp.ne.s32.totalorder %s96, %s97
      %p106 = scmp.eq.s32.totalorder %s23, 0
      %p107 = por %p105, %p106
      %p108 = scmp.ne.s32.totalorder %s96, %s97
      %p109 = scmp.eq.s32.totalorder %s24, 1
      %p110 = por %p108, %p109
      %p112 = scmp.ne.s32.totalorder %s97, %s111
      %p113 = scmp.eq.s32.totalorder %s24, 0
      %p114 = por %p112, %p113
      %s116 = sadd.s32 %s115, 1
      %p119 = scmp.eq.s32.totalorder %s18, 1
      %p120 = scmp.ne.s32.totalorder %s115, %s117
      %p121 = scmp.eq.s32.totalorder %s18, 0
      %p122 = por %p120, %p121
      %p123 = scmp.ne.s32.totalorder %s115, %s117
      %p124 = scmp.eq.s32.totalorder %s23, 1
      %p125 = por %p123, %p124
      %p126 = scmp.ne.s32.totalorder %s117, %s118
      %p127 = scmp.eq.s32.totalorder %s23, 0
      %p128 = por %p126, %p127
      %p129 = scmp.ne.s32.totalorder %s117, %s118
      %p130 = scmp.eq.s32.totalorder %s24, 1
      %p131 = por %p129, %p130
      %p133 = scmp.ne.s32.totalorder %s118, %s132
      %p134 = scmp.eq.s32.totalorder %s24, 0
      %p135 = por %p133, %p134
      %s137 = sadd.s32 %s136, 1
      %p140 = scmp.eq.s32.totalorder %s18, 1
      %p141 = scmp.ne.s32.totalorder %s136, %s138
      %p142 = scmp.eq.s32.totalorder %s18, 0
      %p143 = por %p141, %p142
      %p144 = scmp.ne.s32.totalorder %s136, %s138
      %p145 = scmp.eq.s32.totalorder %s23, 1
      %p146 = por %p144, %p145
      %p147 = scmp.ne.s32.totalorder %s138, %s139
      %p148 = scmp.eq.s32.totalorder %s23, 0
      %p149 = por %p147, %p148
      %p150 = scmp.ne.s32.totalorder %s138, %s139
      %p151 = scmp.eq.s32.totalorder %s24, 1
      %p152 = por %p150, %p151
      %p154 = scmp.ne.s32.totalorder %s139, %s153
      %p155 = scmp.eq.s32.totalorder %s24, 0
      %p156 = por %p154, %p155
      %s158 = sadd.s32 %s157, 1
      %p161 = scmp.eq.s32.totalorder %s18, 1
      %p162 = scmp.ne.s32.totalorder %s157, %s159
      %p163 = scmp.eq.s32.totalorder %s18, 0
      %p164 = por %p162, %p163
      %p165 = scmp.ne.s32.totalorder %s157, %s159
      %p166 = scmp.eq.s32.totalorder %s23, 1
      %p167 = por %p165, %p166
      %p168 = scmp.ne.s32.totalorder %s159, %s160
      %p169 = scmp.eq.s32.totalorder %s23, 0
      %p170 = por %p168, %p169
      %p171 = scmp.ne.s32.totalorder %s159, %s160
      %p172 = scmp.eq.s32.totalorder %s24, 1
      %p173 = por %p171, %p172
      %p175 = scmp.ne.s32.totalorder %s160, %s174
      %p176 = scmp.eq.s32.totalorder %s24, 0
      %p177 = por %p175, %p176
      %s179 = sadd.s32 %s178, 1
      %p182 = scmp.eq.s32.totalorder %s18, 1
      %p183 = scmp.ne.s32.totalorder %s178, %s180
      %p184 = scmp.eq.s32.totalorder %s18, 0
      %p185 = por %p183, %p184
      %p186 = scmp.ne.s32.totalorder %s178, %s180
      %p187 = scmp.eq.s32.totalorder %s23, 1
      %p188 = por %p186, %p187
      %p189 = scmp.ne.s32.totalorder %s180, %s181
      %p190 = scmp.eq.s32.totalorder %s23, 0
      %p191 = por %p189, %p190
      %p192 = scmp.ne.s32.totalorder %s180, %s181
      %p193 = scmp.eq.s32.totalorder %s24, 1
      %p194 = por %p192, %p193
      %p196 = scmp.ne.s32.totalorder %s181, %s195
      %p197 = scmp.eq.s32.totalorder %s24, 0
      %p198 = por %p196, %p197
      %s199 = ssub.s32 %s18, %s25
      %p200 = scmp.eq.s32.totalorder %s199, 0
      %s202 = sadd.s32 %s201, 1
      %s203 = scalar_select %p200, %s201, %s202
      %p206 = pneg %p200
      %p207 = scmp.eq.s32.totalorder %s18, 1
      %p208 = por %p206, %p207
      %p209 = scmp.ne.s32.totalorder %s201, %s204
      %p210 = scmp.eq.s32.totalorder %s18, 0
      %p211 = por %p209, %p210
      %p212 = scmp.ne.s32.totalorder %s201, %s204
      %p213 = scmp.eq.s32.totalorder %s23, 1
      %p214 = por %p212, %p213
      %p215 = scmp.ne.s32.totalorder %s204, %s205
      %p216 = scmp.eq.s32.totalorder %s23, 0
      %p217 = por %p215, %p216
      %p218 = scmp.ne.s32.totalorder %s204, %s205
      %p219 = scmp.eq.s32.totalorder %s24, 1
      %p220 = por %p218, %p219
      %p222 = scmp.ne.s32.totalorder %s205, %s221
      %p223 = scmp.eq.s32.totalorder %s24, 0
      %p224 = por %p222, %p223
      %s225 = ssub.s32 %s18, %s25
      %p226 = scmp.eq.s32.totalorder %s225, 0
      %s228 = sadd.s32 %s227, 1
      %s229 = scalar_select %p226, %s227, %s228
      %p232 = pneg %p226
      %p233 = scmp.eq.s32.totalorder %s18, 1
      %p234 = por %p232, %p233
      %p235 = scmp.ne.s32.totalorder %s227, %s230
      %p236 = scmp.eq.s32.totalorder %s18, 0
      %p237 = por %p235, %p236
      %p238 = scmp.ne.s32.totalorder %s227, %s230
      %p239 = scmp.eq.s32.totalorder %s23, 1
      %p240 = por %p238, %p239
      %p241 = scmp.ne.s32.totalorder %s230, %s231
      %p242 = scmp.eq.s32.totalorder %s23, 0
      %p243 = por %p241, %p242
      %p244 = scmp.ne.s32.totalorder %s230, %s231
      %p245 = scmp.eq.s32.totalorder %s24, 1
      %p246 = por %p244, %p245
      %p248 = scmp.ne.s32.totalorder %s231, %s247
      %p249 = scmp.eq.s32.totalorder %s24, 0
      %p250 = por %p248, %p249
      %s251 = ssub.s32 %s18, %s25
      %p252 = scmp.eq.s32.totalorder %s251, 0
      %s254 = sadd.s32 %s253, 1
      %s255 = scalar_select %p252, %s253, %s254
      %p258 = pneg %p252
      %p259 = scmp.eq.s32.totalorder %s18, 1
      %p260 = por %p258, %p259
      %p261 = scmp.ne.s32.totalorder %s253, %s256
      %p262 = scmp.eq.s32.totalorder %s18, 0
      %p263 = por %p261, %p262
      %p264 = scmp.ne.s32.totalorder %s253, %s256
      %p265 = scmp.eq.s32.totalorder %s23, 1
      %p266 = por %p264, %p265
      %p267 = scmp.ne.s32.totalorder %s256, %s257
      %p268 = scmp.eq.s32.totalorder %s23, 0
      %p269 = por %p267, %p268
      %p270 = scmp.ne.s32.totalorder %s256, %s257
      %p271 = scmp.eq.s32.totalorder %s24, 1
      %p272 = por %p270, %p271
      %p274 = scmp.ne.s32.totalorder %s257, %s273
      %p275 = scmp.eq.s32.totalorder %s24, 0
      %p276 = por %p274, %p275
      %p277 = scmp.le.s32.totalorder 1, %s18
      %p278 = scmp.lt.s32.totalorder %s18, 3
      %p279 = pnand %p277, %p278
      %p280 = pneg %p279
      // Predicated region
      $region9: #{gblock_up_forward.4} parent=5 // pred_check
        _
      $region10: #{gblock_up_forward.4} parent=5 // pred_check_branch
        %282 = sbr.rel (%p279) target = $region12
      $region11: #{gblock_up_forward.4} parent=5 // pred_region
        %s283 = ssub.s32 %s18, 1
        // Predicated region
        $region13: #{gblock_up_forward.4} parent=11 // pred_check
          %p284 = pneg %p65
        $region14: #{gblock_up_forward.4} parent=11 // pred_check_branch
          %286 = sbr.rel (%p284) target = $region16
        $region15: #{gblock_up_forward.4} parent=11 // pred_region
          %s288 = ssub.s32 32768, 32768
          %289 = vsyncadd [#allocation3], %s288
          %s290 = sshll.u32 [#allocation2], 4
          %s291 = int_to_ptr.vmem [resolvable:$true] %s290
          %296 = dma.hbm_to_vmem [thread:$0]  %s1, 32768, %s291, [#allocation3], 1024, 1024, 64
        $region16: #{gblock_up_forward.4} parent=11 // pred_fallthru
          _
        // Predicated region
        $region17: #{gblock_up_forward.4} parent=11 // pred_check
          %p297 = pneg %p86
        $region18: #{gblock_up_forward.4} parent=11 // pred_check_branch
          %299 = sbr.rel (%p297) target = $region20
        $region19: #{gblock_up_forward.4} parent=11 // pred_region
          _
        $region20: #{gblock_up_forward.4} parent=11 // pred_fallthru
          _
        // Predicated region
        $region21: #{gblock_up_forward.4} parent=11 // pred_check
          %p300 = pneg %p107
        $region22: #{gblock_up_forward.4} parent=11 // pred_check_branch
          %302 = sbr.rel (%p300) target = $region24
        $region23: #{gblock_up_forward.4} parent=11 // pred_region
          _
        $region24: #{gblock_up_forward.4} parent=11 // pred_fallthru
          _
        // Predicated region
        $region25: #{gblock_up_forward.4} parent=11 // pred_check
          %p303 = pneg %p128
        $region26: #{gblock_up_forward.4} parent=11 // pred_check_branch
          %305 = sbr.rel (%p303) target = $region28
        $region27: #{gblock_up_forward.4} parent=11 // pred_region
          _
        $region28: #{gblock_up_forward.4} parent=11 // pred_fallthru
          _
        // Predicated region
        $region29: #{gblock_up_forward.4} parent=11 // pred_check
          %p306 = pneg %p149
        $region30: #{gblock_up_forward.4} parent=11 // pred_check_branch
          %308 = sbr.rel (%p306) target = $region32
        $region31: #{gblock_up_forward.4} parent=11 // pred_region
          _
        $region32: #{gblock_up_forward.4} parent=11 // pred_fallthru
          _
        // Predicated region
        $region33: #{gblock_up_forward.4} parent=11 // pred_check
          %p309 = pneg %p170
        $region34: #{gblock_up_forward.4} parent=11 // pred_check_branch
          %311 = sbr.rel (%p309) target = $region36
        $region35: #{gblock_up_forward.4} parent=11 // pred_region
          _
        $region36: #{gblock_up_forward.4} parent=11 // pred_fallthru
          _
        // Predicated region
        $region37: #{gblock_up_forward.4} parent=11 // pred_check
          %p312 = pneg %p191
        $region38: #{gblock_up_forward.4} parent=11 // pred_check_branch
          %314 = sbr.rel (%p312) target = $region40
        $region39: #{gblock_up_forward.4} parent=11 // pred_region
          _
        $region40: #{gblock_up_forward.4} parent=11 // pred_fallthru
          _
      $region12: #{gblock_up_forward.4} parent=5 // pred_fallthru
        _
      %p315 = scmp.lt.s32.totalorder %s18, 2
      // Predicated region
      $region41: #{gblock_up_forward.4} parent=5 // pred_check
        %p316 = pneg %p315
      $region42: #{gblock_up_forward.4} parent=5 // pred_check_branch
        %318 = sbr.rel (%p316) target = $region44
      $region43: #{gblock_up_forward.4} parent=5 // pred_region
        // Predicated region
        $region45: #{gblock_up_forward.4} parent=43 // pred_check
          %p319 = pneg %p38
        $region46: #{gblock_up_forward.4} parent=43 // pred_check_branch
          %321 = sbr.rel (%p319) target = $region48
        $region47: #{gblock_up_forward.4} parent=43 // pred_region
          %p322 = scmp.lt.s32.totalorder %s18, 1
          %s323 = scalar_select %p322, %s18, 1
          %s324 = smul.addr %s323, 2
          %s325 = smul.addr %s324, 8
          %s326 = scalar_lea.vmem %s0, %s325
        $region48: #{gblock_up_forward.4} parent=43 // pred_fallthru
          _
      $region44: #{gblock_up_forward.4} parent=5 // pred_fallthru
        _
      %p327 = scmp.le.s32.totalorder 1, %s18
      %p328 = scmp.lt.s32.totalorder %s18, 3
      %p329 = pnand %p327, %p328
      %p330 = pneg %p329
      // Predicated region
      $region49: #{gblock_up_forward.4} parent=5 // pred_check
        _
      $region50: #{gblock_up_forward.4} parent=5 // pred_check_branch
        %332 = sbr.rel (%p329) target = $region52
      $region51: #{gblock_up_forward.4} parent=5 // pred_region
        %s333 = ssub.s32 %s18, 1
        // Predicated region
        $region53: #{gblock_up_forward.4} parent=51 // pred_check
          %p334 = pneg %p65
        $region54: #{gblock_up_forward.4} parent=51 // pred_check_branch
          %336 = sbr.rel (%p334) target = $region56
        $region55: #{gblock_up_forward.4} parent=51 // pred_region
          %337 = dma.done [#allocation3], 32768
        $region56: #{gblock_up_forward.4} parent=51 // pred_fallthru
          _
        %p338 = scmp.lt.s32.totalorder %s23, 1
        %s339 = scalar_select %p338, %s23, 1
        %s340 = smul.addr %s339, 2
        %s341 = smul.addr %s340, 8
        %s342 = scalar_lea.vmem %s0, %s341
        %p343 = pneg %p44
        %p344 = pneg %p41
        %p345 = pneg %p65
        %p346 = pneg %p62
        %p347 = pneg %p86
        %p348 = pneg %p83
        %p349 = pneg %p107
        %p350 = pneg %p104
        %p351 = pneg %p128
        %p352 = pneg %p125
        %p353 = pneg %p149
        %p354 = pneg %p146
        %p355 = pneg %p170
        %p356 = pneg %p167
        %p357 = pneg %p191
        %p358 = pneg %p188
        %p359 = pneg %p217
        %p360 = pneg %p214
        %p361 = scmp.lt.s32.totalorder %s23, 1
        %s362 = scalar_select %p361, %s23, 1
        %s363 = smul.addr %s362, 8
        %s364 = smul.addr %s363, 8
        %s365 = scalar_lea.vmem %s8, %s364
        %p366 = pneg %p243
        %p367 = pneg %p240
        %p368 = scmp.lt.s32.totalorder %s23, 1
        %s369 = scalar_select %p368, %s23, 1
        %s370 = smul.addr %s369, 8
        %s371 = smul.addr %s370, 8
        %s372 = scalar_lea.vmem %s9, %s371
        %p373 = pneg %p269
        %p374 = pneg %p266
        %p375 = scmp.lt.s32.totalorder %s23, 1
        %s376 = scalar_select %p375, %s23, 1
        %s377 = smul.addr %s376, 8
        %s378 = scalar_lea.vmem %s10, %s377
        %p379 = scmp.lt.s32.totalorder %s23, 1
        %s380 = scalar_select %p379, %s23, 1
        %s381 = smul.addr %s380, 2
        %s382 = smul.addr %s381, 8
        %s383 = scalar_lea.vmem %s0, %s382
        %p384 = scmp.lt.s32.totalorder %s23, 1
        %s385 = scalar_select %p384, %s23, 1
        %s386 = smul.addr %s385, 8
        %s387 = smul.addr %s386, 8
        %s388 = scalar_lea.vmem %s8, %s387
        %p389 = scmp.lt.s32.totalorder %s23, 1
        %s390 = scalar_select %p389, %s23, 1
        %s391 = smul.addr %s390, 8
        %s392 = smul.addr %s391, 8
        %s393 = scalar_lea.vmem %s9, %s392
        %p394 = scmp.lt.s32.totalorder %s23, 1
        %s395 = scalar_select %p394, %s23, 1
        %s396 = smul.addr %s395, 8
        %s397 = scalar_lea.vmem %s10, %s396
        %v398 = vld [vmem:[%s383] sm:$0xff]
        %v399 = vld [vmem:[%s383 + $0x8] sm:$0xff]
        %v400 = vld [vmem:[%s2] sm:$0xff]
        %402 = vset.pattern.permute.xlu0 0
        %403 = vperm.xlu0 %402, %v400
        %v404 = vpop.permute.xlu0 %403
        %v406 = vmul.f32 %v398, %v404
        %v407 = vmul.f32 %v399, %v404
        %v408 = vld [vmem:[%s3] sm:$0xff]
        %410 = vset.pattern.permute.xlu0 0
        %411 = vperm.xlu0 %410, %v408
        %v412 = vpop.permute.xlu0 %411
        %v414 = vadd.f32 %v406, %v412
        %v415 = vadd.f32 %v407, %v412
        %v416 = vmax.f32 %v414, 0.0
        %v417 = vmax.f32 %v415, 0.0
        %v418 = vld [vmem:[#allocation2] sm:$0xff]
        %v419 = vld [vmem:[#allocation2 + $0x8] sm:$0xff]
        %v420 = vld [vmem:[#allocation2 + $0x10] sm:$0xff]
        %v421 = vld [vmem:[#allocation2 + $0x18] sm:$0xff]
        %v422 = vld [vmem:[#allocation2 + $0x20] sm:$0xff]
        %v423 = vld [vmem:[#allocation2 + $0x28] sm:$0xff]
        %v424 = vld [vmem:[#allocation2 + $0x30] sm:$0xff]
        %v425 = vld [vmem:[#allocation2 + $0x38] sm:$0xff]
        %v426 = vld [vmem:[#allocation2 + $0x40] sm:$0xff]
        %v427 = vld [vmem:[#allocation2 + $0x48] sm:$0xff]
        %v428 = vld [vmem:[#allocation2 + $0x50] sm:$0xff]
        %v429 = vld [vmem:[#allocation2 + $0x58] sm:$0xff]
        %v430 = vld [vmem:[#allocation2 + $0x60] sm:$0xff]
        %v431 = vld [vmem:[#allocation2 + $0x68] sm:$0xff]
        %v432 = vld [vmem:[#allocation2 + $0x70] sm:$0xff]
        %v433 = vld [vmem:[#allocation2 + $0x78] sm:$0xff]
        %v434 = vld [vmem:[#allocation2 + $0x80] sm:$0xff]
        %v435 = vld [vmem:[#allocation2 + $0x88] sm:$0xff]
        %v436 = vld [vmem:[#allocation2 + $0x90] sm:$0xff]
        %v437 = vld [vmem:[#allocation2 + $0x98] sm:$0xff]
        %v438 = vld [vmem:[#allocation2 + $0xa0] sm:$0xff]
        %v439 = vld [vmem:[#allocation2 + $0xa8] sm:$0xff]
        %v440 = vld [vmem:[#allocation2 + $0xb0] sm:$0xff]
        %v441 = vld [vmem:[#allocation2 + $0xb8] sm:$0xff]
        %v442 = vld [vmem:[#allocation2 + $0xc0] sm:$0xff]
        %v443 = vld [vmem:[#allocation2 + $0xc8] sm:$0xff]
        %v444 = vld [vmem:[#allocation2 + $0xd0] sm:$0xff]
        %v445 = vld [vmem:[#allocation2 + $0xd8] sm:$0xff]
        %v446 = vld [vmem:[#allocation2 + $0xe0] sm:$0xff]
        %v447 = vld [vmem:[#allocation2 + $0xe8] sm:$0xff]
        %v448 = vld [vmem:[#allocation2 + $0xf0] sm:$0xff]
        %v449 = vld [vmem:[#allocation2 + $0xf8] sm:$0xff]
        %v450 = vld [vmem:[#allocation2 + $0x100] sm:$0xff]
        %v451 = vld [vmem:[#allocation2 + $0x108] sm:$0xff]
        %v452 = vld [vmem:[#allocation2 + $0x110] sm:$0xff]
        %v453 = vld [vmem:[#allocation2 + $0x118] sm:$0xff]
        %v454 = vld [vmem:[#allocation2 + $0x120] sm:$0xff]
        %v455 = vld [vmem:[#allocation2 + $0x128] sm:$0xff]
        %v456 = vld [vmem:[#allocation2 + $0x130] sm:$0xff]
        %v457 = vld [vmem:[#allocation2 + $0x138] sm:$0xff]
        %v458 = vld [vmem:[#allocation2 + $0x140] sm:$0xff]
        %v459 = vld [vmem:[#allocation2 + $0x148] sm:$0xff]
        %v460 = vld [vmem:[#allocation2 + $0x150] sm:$0xff]
        %v461 = vld [vmem:[#allocation2 + $0x158] sm:$0xff]
        %v462 = vld [vmem:[#allocation2 + $0x160] sm:$0xff]
        %v463 = vld [vmem:[#allocation2 + $0x168] sm:$0xff]
        %v464 = vld [vmem:[#allocation2 + $0x170] sm:$0xff]
        %v465 = vld [vmem:[#allocation2 + $0x178] sm:$0xff]
        %v466 = vld [vmem:[#allocation2 + $0x180] sm:$0xff]
        %v467 = vld [vmem:[#allocation2 + $0x188] sm:$0xff]
        %v468 = vld [vmem:[#allocation2 + $0x190] sm:$0xff]
        %v469 = vld [vmem:[#allocation2 + $0x198] sm:$0xff]
        %v470 = vld [vmem:[#allocation2 + $0x1a0] sm:$0xff]
        %v471 = vld [vmem:[#allocation2 + $0x1a8] sm:$0xff]
        %v472 = vld [vmem:[#allocation2 + $0x1b0] sm:$0xff]
        %v473 = vld [vmem:[#allocation2 + $0x1b8] sm:$0xff]
        %v474 = vld [vmem:[#allocation2 + $0x1c0] sm:$0xff]
        %v475 = vld [vmem:[#allocation2 + $0x1c8] sm:$0xff]
        %v476 = vld [vmem:[#allocation2 + $0x1d0] sm:$0xff]
        %v477 = vld [vmem:[#allocation2 + $0x1d8] sm:$0xff]
        %v478 = vld [vmem:[#allocation2 + $0x1e0] sm:$0xff]
        %v479 = vld [vmem:[#allocation2 + $0x1e8] sm:$0xff]
        %v480 = vld [vmem:[#allocation2 + $0x1f0] sm:$0xff]
        %v481 = vld [vmem:[#allocation2 + $0x1f8] sm:$0xff]
        %v482 = vld [vmem:[#allocation2 + $0x200] sm:$0xff]
        %v483 = vld [vmem:[#allocation2 + $0x208] sm:$0xff]
        %v484 = vld [vmem:[#allocation2 + $0x210] sm:$0xff]
        %v485 = vld [vmem:[#allocation2 + $0x218] sm:$0xff]
        %v486 = vld [vmem:[#allocation2 + $0x220] sm:$0xff]
        %v487 = vld [vmem:[#allocation2 + $0x228] sm:$0xff]
        %v488 = vld [vmem:[#allocation2 + $0x230] sm:$0xff]
        %v489 = vld [vmem:[#allocation2 + $0x238] sm:$0xff]
        %v490 = vld [vmem:[#allocation2 + $0x240] sm:$0xff]
        %v491 = vld [vmem:[#allocation2 + $0x248] sm:$0xff]
        %v492 = vld [vmem:[#allocation2 + $0x250] sm:$0xff]
        %v493 = vld [vmem:[#allocation2 + $0x258] sm:$0xff]
        %v494 = vld [vmem:[#allocation2 + $0x260] sm:$0xff]
        %v495 = vld [vmem:[#allocation2 + $0x268] sm:$0xff]
        %v496 = vld [vmem:[#allocation2 + $0x270] sm:$0xff]
        %v497 = vld [vmem:[#allocation2 + $0x278] sm:$0xff]
        %v498 = vld [vmem:[#allocation2 + $0x280] sm:$0xff]
        %v499 = vld [vmem:[#allocation2 + $0x288] sm:$0xff]
        %v500 = vld [vmem:[#allocation2 + $0x290] sm:$0xff]
        %v501 = vld [vmem:[#allocation2 + $0x298] sm:$0xff]
        %v502 = vld [vmem:[#allocation2 + $0x2a0] sm:$0xff]
        %v503 = vld [vmem:[#allocation2 + $0x2a8] sm:$0xff]
        %v504 = vld [vmem:[#allocation2 + $0x2b0] sm:$0xff]
        %v505 = vld [vmem:[#allocation2 + $0x2b8] sm:$0xff]
        %v506 = vld [vmem:[#allocation2 + $0x2c0] sm:$0xff]
        %v507 = vld [vmem:[#allocation2 + $0x2c8] sm:$0xff]
        %v508 = vld [vmem:[#allocation2 + $0x2d0] sm:$0xff]
        %v509 = vld [vmem:[#allocation2 + $0x2d8] sm:$0xff]
        %v510 = vld [vmem:[#allocation2 + $0x2e0] sm:$0xff]
        %v511 = vld [vmem:[#allocation2 + $0x2e8] sm:$0xff]
        %v512 = vld [vmem:[#allocation2 + $0x2f0] sm:$0xff]
        %v513 = vld [vmem:[#allocation2 + $0x2f8] sm:$0xff]
        %v514 = vld [vmem:[#allocation2 + $0x300] sm:$0xff]
        %v515 = vld [vmem:[#allocation2 + $0x308] sm:$0xff]
        %v516 = vld [vmem:[#allocation2 + $0x310] sm:$0xff]
        %v517 = vld [vmem:[#allocation2 + $0x318] sm:$0xff]
        %v518 = vld [vmem:[#allocation2 + $0x320] sm:$0xff]
        %v519 = vld [vmem:[#allocation2 + $0x328] sm:$0xff]
        %v520 = vld [vmem:[#allocation2 + $0x330] sm:$0xff]
        %v521 = vld [vmem:[#allocation2 + $0x338] sm:$0xff]
        %v522 = vld [vmem:[#allocation2 + $0x340] sm:$0xff]
        %v523 = vld [vmem:[#allocation2 + $0x348] sm:$0xff]
        %v524 = vld [vmem:[#allocation2 + $0x350] sm:$0xff]
        %v525 = vld [vmem:[#allocation2 + $0x358] sm:$0xff]
        %v526 = vld [vmem:[#allocation2 + $0x360] sm:$0xff]
        %v527 = vld [vmem:[#allocation2 + $0x368] sm:$0xff]
        %v528 = vld [vmem:[#allocation2 + $0x370] sm:$0xff]
        %v529 = vld [vmem:[#allocation2 + $0x378] sm:$0xff]
        %v530 = vld [vmem:[#allocation2 + $0x380] sm:$0xff]
        %v531 = vld [vmem:[#allocation2 + $0x388] sm:$0xff]
        %v532 = vld [vmem:[#allocation2 + $0x390] sm:$0xff]
        %v533 = vld [vmem:[#allocation2 + $0x398] sm:$0xff]
        %v534 = vld [vmem:[#allocation2 + $0x3a0] sm:$0xff]
        %v535 = vld [vmem:[#allocation2 + $0x3a8] sm:$0xff]
        %v536 = vld [vmem:[#allocation2 + $0x3b0] sm:$0xff]
        %v537 = vld [vmem:[#allocation2 + $0x3b8] sm:$0xff]
        %v538 = vld [vmem:[#allocation2 + $0x3c0] sm:$0xff]
        %v539 = vld [vmem:[#allocation2 + $0x3c8] sm:$0xff]
        %v540 = vld [vmem:[#allocation2 + $0x3d0] sm:$0xff]
        %v541 = vld [vmem:[#allocation2 + $0x3d8] sm:$0xff]
        %v542 = vld [vmem:[#allocation2 + $0x3e0] sm:$0xff]
        %v543 = vld [vmem:[#allocation2 + $0x3e8] sm:$0xff]
        %v544 = vld [vmem:[#allocation2 + $0x3f0] sm:$0xff]
        %v545 = vld [vmem:[#allocation2 + $0x3f8] sm:$0xff]
        %v546 = vld [vmem:[#allocation2 + $0x400] sm:$0xff]
        %v547 = vld [vmem:[#allocation2 + $0x408] sm:$0xff]
        %v548 = vld [vmem:[#allocation2 + $0x410] sm:$0xff]
        %v549 = vld [vmem:[#allocation2 + $0x418] sm:$0xff]
        %v550 = vld [vmem:[#allocation2 + $0x420] sm:$0xff]
        %v551 = vld [vmem:[#allocation2 + $0x428] sm:$0xff]
        %v552 = vld [vmem:[#allocation2 + $0x430] sm:$0xff]
        %v553 = vld [vmem:[#allocation2 + $0x438] sm:$0xff]
        %v554 = vld [vmem:[#allocation2 + $0x440] sm:$0xff]
        %v555 = vld [vmem:[#allocation2 + $0x448] sm:$0xff]
        %v556 = vld [vmem:[#allocation2 + $0x450] sm:$0xff]
        %v557 = vld [vmem:[#allocation2 + $0x458] sm:$0xff]
        %v558 = vld [vmem:[#allocation2 + $0x460] sm:$0xff]
        %v559 = vld [vmem:[#allocation2 + $0x468] sm:$0xff]
        %v560 = vld [vmem:[#allocation2 + $0x470] sm:$0xff]
        %v561 = vld [vmem:[#allocation2 + $0x478] sm:$0xff]
        %v562 = vld [vmem:[#allocation2 + $0x480] sm:$0xff]
        %v563 = vld [vmem:[#allocation2 + $0x488] sm:$0xff]
        %v564 = vld [vmem:[#allocation2 + $0x490] sm:$0xff]
        %v565 = vld [vmem:[#allocation2 + $0x498] sm:$0xff]
        %v566 = vld [vmem:[#allocation2 + $0x4a0] sm:$0xff]
        %v567 = vld [vmem:[#allocation2 + $0x4a8] sm:$0xff]
        %v568 = vld [vmem:[#allocation2 + $0x4b0] sm:$0xff]
        %v569 = vld [vmem:[#allocation2 + $0x4b8] sm:$0xff]
        %v570 = vld [vmem:[#allocation2 + $0x4c0] sm:$0xff]
        %v571 = vld [vmem:[#allocation2 + $0x4c8] sm:$0xff]
        %v572 = vld [vmem:[#allocation2 + $0x4d0] sm:$0xff]
        %v573 = vld [vmem:[#allocation2 + $0x4d8] sm:$0xff]
        %v574 = vld [vmem:[#allocation2 + $0x4e0] sm:$0xff]
        %v575 = vld [vmem:[#allocation2 + $0x4e8] sm:$0xff]
        %v576 = vld [vmem:[#allocation2 + $0x4f0] sm:$0xff]
        %v577 = vld [vmem:[#allocation2 + $0x4f8] sm:$0xff]
        %v578 = vld [vmem:[#allocation2 + $0x500] sm:$0xff]
        %v579 = vld [vmem:[#allocation2 + $0x508] sm:$0xff]
        %v580 = vld [vmem:[#allocation2 + $0x510] sm:$0xff]
        %v581 = vld [vmem:[#allocation2 + $0x518] sm:$0xff]
        %v582 = vld [vmem:[#allocation2 + $0x520] sm:$0xff]
        %v583 = vld [vmem:[#allocation2 + $0x528] sm:$0xff]
        %v584 = vld [vmem:[#allocation2 + $0x530] sm:$0xff]
        %v585 = vld [vmem:[#allocation2 + $0x538] sm:$0xff]
        %v586 = vld [vmem:[#allocation2 + $0x540] sm:$0xff]
        %v587 = vld [vmem:[#allocation2 + $0x548] sm:$0xff]
        %v588 = vld [vmem:[#allocation2 + $0x550] sm:$0xff]
        %v589 = vld [vmem:[#allocation2 + $0x558] sm:$0xff]
        %v590 = vld [vmem:[#allocation2 + $0x560] sm:$0xff]
        %v591 = vld [vmem:[#allocation2 + $0x568] sm:$0xff]
        %v592 = vld [vmem:[#allocation2 + $0x570] sm:$0xff]
        %v593 = vld [vmem:[#allocation2 + $0x578] sm:$0xff]
        %v594 = vld [vmem:[#allocation2 + $0x580] sm:$0xff]
        %v595 = vld [vmem:[#allocation2 + $0x588] sm:$0xff]
        %v596 = vld [vmem:[#allocation2 + $0x590] sm:$0xff]
        %v597 = vld [vmem:[#allocation2 + $0x598] sm:$0xff]
        %v598 = vld [vmem:[#allocation2 + $0x5a0] sm:$0xff]
        %v599 = vld [vmem:[#allocation2 + $0x5a8] sm:$0xff]
        %v600 = vld [vmem:[#allocation2 + $0x5b0] sm:$0xff]
        %v601 = vld [vmem:[#allocation2 + $0x5b8] sm:$0xff]
        %v602 = vld [vmem:[#allocation2 + $0x5c0] sm:$0xff]
        %v603 = vld [vmem:[#allocation2 + $0x5c8] sm:$0xff]
        %v604 = vld [vmem:[#allocation2 + $0x5d0] sm:$0xff]
        %v605 = vld [vmem:[#allocation2 + $0x5d8] sm:$0xff]
        %v606 = vld [vmem:[#allocation2 + $0x5e0] sm:$0xff]
        %v607 = vld [vmem:[#allocation2 + $0x5e8] sm:$0xff]
        %v608 = vld [vmem:[#allocation2 + $0x5f0] sm:$0xff]
        %v609 = vld [vmem:[#allocation2 + $0x5f8] sm:$0xff]
        %v610 = vld [vmem:[#allocation2 + $0x600] sm:$0xff]
        %v611 = vld [vmem:[#allocation2 + $0x608] sm:$0xff]
        %v612 = vld [vmem:[#allocation2 + $0x610] sm:$0xff]
        %v613 = vld [vmem:[#allocation2 + $0x618] sm:$0xff]
        %v614 = vld [vmem:[#allocation2 + $0x620] sm:$0xff]
        %v615 = vld [vmem:[#allocation2 + $0x628] sm:$0xff]
        %v616 = vld [vmem:[#allocation2 + $0x630] sm:$0xff]
        %v617 = vld [vmem:[#allocation2 + $0x638] sm:$0xff]
        %v618 = vld [vmem:[#allocation2 + $0x640] sm:$0xff]
        %v619 = vld [vmem:[#allocation2 + $0x648] sm:$0xff]
        %v620 = vld [vmem:[#allocation2 + $0x650] sm:$0xff]
        %v621 = vld [vmem:[#allocation2 + $0x658] sm:$0xff]
        %v622 = vld [vmem:[#allocation2 + $0x660] sm:$0xff]
        %v623 = vld [vmem:[#allocation2 + $0x668] sm:$0xff]
        %v624 = vld [vmem:[#allocation2 + $0x670] sm:$0xff]
        %v625 = vld [vmem:[#allocation2 + $0x678] sm:$0xff]
        %v626 = vld [vmem:[#allocation2 + $0x680] sm:$0xff]
        %v627 = vld [vmem:[#allocation2 + $0x688] sm:$0xff]
        %v628 = vld [vmem:[#allocation2 + $0x690] sm:$0xff]
        %v629 = vld [vmem:[#allocation2 + $0x698] sm:$0xff]
        %v630 = vld [vmem:[#allocation2 + $0x6a0] sm:$0xff]
        %v631 = vld [vmem:[#allocation2 + $0x6a8] sm:$0xff]
        %v632 = vld [vmem:[#allocation2 + $0x6b0] sm:$0xff]
        %v633 = vld [vmem:[#allocation2 + $0x6b8] sm:$0xff]
        %v634 = vld [vmem:[#allocation2 + $0x6c0] sm:$0xff]
        %v635 = vld [vmem:[#allocation2 + $0x6c8] sm:$0xff]
        %v636 = vld [vmem:[#allocation2 + $0x6d0] sm:$0xff]
        %v637 = vld [vmem:[#allocation2 + $0x6d8] sm:$0xff]
        %v638 = vld [vmem:[#allocation2 + $0x6e0] sm:$0xff]
        %v639 = vld [vmem:[#allocation2 + $0x6e8] sm:$0xff]
        %v640 = vld [vmem:[#allocation2 + $0x6f0] sm:$0xff]
        %v641 = vld [vmem:[#allocation2 + $0x6f8] sm:$0xff]
        %v642 = vld [vmem:[#allocation2 + $0x700] sm:$0xff]
        %v643 = vld [vmem:[#allocation2 + $0x708] sm:$0xff]
        %v644 = vld [vmem:[#allocation2 + $0x710] sm:$0xff]
        %v645 = vld [vmem:[#allocation2 + $0x718] sm:$0xff]
        %v646 = vld [vmem:[#allocation2 + $0x720] sm:$0xff]
        %v647 = vld [vmem:[#allocation2 + $0x728] sm:$0xff]
        %v648 = vld [vmem:[#allocation2 + $0x730] sm:$0xff]
        %v649 = vld [vmem:[#allocation2 + $0x738] sm:$0xff]
        %v650 = vld [vmem:[#allocation2 + $0x740] sm:$0xff]
        %v651 = vld [vmem:[#allocation2 + $0x748] sm:$0xff]
        %v652 = vld [vmem:[#allocation2 + $0x750] sm:$0xff]
        %v653 = vld [vmem:[#allocation2 + $0x758] sm:$0xff]
        %v654 = vld [vmem:[#allocation2 + $0x760] sm:$0xff]
        %v655 = vld [vmem:[#allocation2 + $0x768] sm:$0xff]
        %v656 = vld [vmem:[#allocation2 + $0x770] sm:$0xff]
        %v657 = vld [vmem:[#allocation2 + $0x778] sm:$0xff]
        %v658 = vld [vmem:[#allocation2 + $0x780] sm:$0xff]
        %v659 = vld [vmem:[#allocation2 + $0x788] sm:$0xff]
        %v660 = vld [vmem:[#allocation2 + $0x790] sm:$0xff]
        %v661 = vld [vmem:[#allocation2 + $0x798] sm:$0xff]
        %v662 = vld [vmem:[#allocation2 + $0x7a0] sm:$0xff]
        %v663 = vld [vmem:[#allocation2 + $0x7a8] sm:$0xff]
        %v664 = vld [vmem:[#allocation2 + $0x7b0] sm:$0xff]
        %v665 = vld [vmem:[#allocation2 + $0x7b8] sm:$0xff]
        %v666 = vld [vmem:[#allocation2 + $0x7c0] sm:$0xff]
        %v667 = vld [vmem:[#allocation2 + $0x7c8] sm:$0xff]
        %v668 = vld [vmem:[#allocation2 + $0x7d0] sm:$0xff]
        %v669 = vld [vmem:[#allocation2 + $0x7d8] sm:$0xff]
        %v670 = vld [vmem:[#allocation2 + $0x7e0] sm:$0xff]
        %v671 = vld [vmem:[#allocation2 + $0x7e8] sm:$0xff]
        %v672 = vld [vmem:[#allocation2 + $0x7f0] sm:$0xff]
        %v673 = vld [vmem:[#allocation2 + $0x7f8] sm:$0xff]
        %674 = vmatprep.subr.mxu0 %v419
        %675 = vmatpush1.msra.mxu0 %v418
        %676 = vmatprep.subr.mxu0 %v427
        %677 = vmatpush1.msra.mxu0 %v426
        %678 = vmatprep.subr.mxu0 %v435
        %679 = vmatpush1.msra.mxu0 %v434
        %680 = vmatprep.subr.mxu0 %v443
        %681 = vmatpush1.msra.mxu0 %v442
        %682 = vmatprep.subr.mxu0 %v451
        %683 = vmatpush1.msra.mxu0 %v450
        %684 = vmatprep.subr.mxu0 %v459
        %685 = vmatpush1.msra.mxu0 %v458
        %686 = vmatprep.subr.mxu0 %v467
        %687 = vmatpush1.msra.mxu0 %v466
        %688 = vmatprep.subr.mxu0 %v475
        %689 = vmatpush1.msra.mxu0 %v474
        %690 = vmatprep.subr.mxu0 %v483
        %691 = vmatpush1.msra.mxu0 %v482
        %692 = vmatprep.subr.mxu0 %v491
        %693 = vmatpush1.msra.mxu0 %v490
        %694 = vmatprep.subr.mxu0 %v499
        %695 = vmatpush1.msra.mxu0 %v498
        %696 = vmatprep.subr.mxu0 %v507
        %697 = vmatpush1.msra.mxu0 %v506
        %698 = vmatprep.subr.mxu0 %v515
        %699 = vmatpush1.msra.mxu0 %v514
        %700 = vmatprep.subr.mxu0 %v523
        %701 = vmatpush1.msra.mxu0 %v522
        %702 = vmatprep.subr.mxu0 %v531
        %703 = vmatpush1.msra.mxu0 %v530
        %704 = vmatprep.subr.mxu0 %v539
        %705 = vmatpush1.msra.mxu0 %v538
        %706 = vmatprep.subr.mxu0 %v547
        %707 = vmatpush1.msra.mxu0 %v546
        %708 = vmatprep.subr.mxu0 %v555
        %709 = vmatpush1.msra.mxu0 %v554
        %710 = vmatprep.subr.mxu0 %v563
        %711 = vmatpush1.msra.mxu0 %v562
        %712 = vmatprep.subr.mxu0 %v571
        %713 = vmatpush1.msra.mxu0 %v570
        %714 = vmatprep.subr.mxu0 %v579
        %715 = vmatpush1.msra.mxu0 %v578
        %716 = vmatprep.subr.mxu0 %v587
        %717 = vmatpush1.msra.mxu0 %v586
        %718 = vmatprep.subr.mxu0 %v595
        %719 = vmatpush1.msra.mxu0 %v594
        %720 = vmatprep.subr.mxu0 %v603
        %721 = vmatpush1.msra.mxu0 %v602
        %722 = vmatprep.subr.mxu0 %v611
        %723 = vmatpush1.msra.mxu0 %v610
        %724 = vmatprep.subr.mxu0 %v619
        %725 = vmatpush1.msra.mxu0 %v618
        %726 = vmatprep.subr.mxu0 %v627
        %727 = vmatpush1.msra.mxu0 %v626
        %728 = vmatprep.subr.mxu0 %v635
        %729 = vmatpush1.msra.mxu0 %v634
        %730 = vmatprep.subr.mxu0 %v643
        %731 = vmatpush1.msra.mxu0 %v642
        %732 = vmatprep.subr.mxu0 %v651
        %733 = vmatpush1.msra.mxu0 %v650
        %734 = vmatprep.subr.mxu0 %v659
        %735 = vmatpush1.msra.mxu0 %v658
        %736 = vmatprep.subr.mxu0 %v667
        %737 = vmatpush1.msra.mxu0 %v666
        %738 = vmatprep.mubr.f32.mxu0 %v399
        %739 = vmatmul.mubr.f32.gmra.mrb[0].mxu0 %v398
        %v740 = vpop.f32.mrb[0].mxu0
        %v741 = vadd.f32 0.0, %v740
        %v742 = vpop.f32.mrb[0].mxu0
        %v743 = vadd.f32 0.0, %v742
        %744 = vmatprep.mubr.f32.mxu0 %v417
        %745 = vmatmul.mubr.f32.gmra.mrb[0].mxu0 %v416
        %v746 = vpop.f32.mrb[0].mxu0
        %v747 = vadd.f32 0.0, %v746
        %v748 = vpop.f32.mrb[0].mxu0
        %v749 = vadd.f32 0.0, %v748
        %750 = vdwg.mxu0
        %751 = vmatprep.subr.mxu0 %v421
        %752 = vmatpush1.msra.mxu0 %v420
        %753 = vmatprep.subr.mxu0 %v429
        %754 = vmatpush1.msra.mxu0 %v428
        %755 = vmatprep.subr.mxu0 %v437
        %756 = vmatpush1.msra.mxu0 %v436
        %757 = vmatprep.subr.mxu0 %v445
        %758 = vmatpush1.msra.mxu0 %v444
        %759 = vmatprep.subr.mxu0 %v453
        %760 = vmatpush1.msra.mxu0 %v452
        %761 = vmatprep.subr.mxu0 %v461
        %762 = vmatpush1.msra.mxu0 %v460
        %763 = vmatprep.subr.mxu0 %v469
        %764 = vmatpush1.msra.mxu0 %v468
        %765 = vmatprep.subr.mxu0 %v477
        %766 = vmatpush1.msra.mxu0 %v476
        %767 = vmatprep.subr.mxu0 %v485
        %768 = vmatpush1.msra.mxu0 %v484
        %769 = vmatprep.subr.mxu0 %v493
        %770 = vmatpush1.msra.mxu0 %v492
        %771 = vmatprep.subr.mxu0 %v501
        %772 = vmatpush1.msra.mxu0 %v500
        %773 = vmatprep.subr.mxu0 %v509
        %774 = vmatpush1.msra.mxu0 %v508
        %775 = vmatprep.subr.mxu0 %v517
        %776 = vmatpush1.msra.mxu0 %v516
        %777 = vmatprep.subr.mxu0 %v525
        %778 = vmatpush1.msra.mxu0 %v524
        %779 = vmatprep.subr.mxu0 %v533
        %780 = vmatpush1.msra.mxu0 %v532
        %781 = vmatprep.subr.mxu0 %v541
        %782 = vmatpush1.msra.mxu0 %v540
        %783 = vmatprep.subr.mxu0 %v549
        %784 = vmatpush1.msra.mxu0 %v548
        %785 = vmatprep.subr.mxu0 %v557
        %786 = vmatpush1.msra.mxu0 %v556
        %787 = vmatprep.subr.mxu0 %v565
        %788 = vmatpush1.msra.mxu0 %v564
        %789 = vmatprep.subr.mxu0 %v573
        %790 = vmatpush1.msra.mxu0 %v572
        %791 = vmatprep.subr.mxu0 %v581
        %792 = vmatpush1.msra.mxu0 %v580
        %793 = vmatprep.subr.mxu0 %v589
        %794 = vmatpush1.msra.mxu0 %v588
        %795 = vmatprep.subr.mxu0 %v597
        %796 = vmatpush1.msra.mxu0 %v596
        %797 = vmatprep.subr.mxu0 %v605
        %798 = vmatpush1.msra.mxu0 %v604
        %799 = vmatprep.subr.mxu0 %v613
        %800 = vmatpush1.msra.mxu0 %v612
        %801 = vmatprep.subr.mxu0 %v621
        %802 = vmatpush1.msra.mxu0 %v620
        %803 = vmatprep.subr.mxu0 %v629
        %804 = vmatpush1.msra.mxu0 %v628
        %805 = vmatprep.subr.mxu0 %v637
        %806 = vmatpush1.msra.mxu0 %v636
        %807 = vmatprep.subr.mxu0 %v645
        %808 = vmatpush1.msra.mxu0 %v644
        %809 = vmatprep.subr.mxu0 %v653
        %810 = vmatpush1.msra.mxu0 %v652
        %811 = vmatprep.subr.mxu0 %v661
        %812 = vmatpush1.msra.mxu0 %v660
        %813 = vmatprep.subr.mxu0 %v669
        %814 = vmatpush1.msra.mxu0 %v668
        %815 = vmatprep.mubr.f32.mxu0 %v399
        %816 = vmatmul.mubr.f32.gmra.mrb[0].mxu0 %v398
        %v817 = vpop.f32.mrb[0].mxu0
        %v818 = vadd.f32 0.0, %v817
        %v819 = vpop.f32.mrb[0].mxu0
        %v820 = vadd.f32 0.0, %v819
        %821 = vmatprep.mubr.f32.mxu0 %v417
        %822 = vmatmul.mubr.f32.gmra.mrb[0].mxu0 %v416
        %v823 = vpop.f32.mrb[0].mxu0
        %v824 = vadd.f32 0.0, %v823
        %v825 = vpop.f32.mrb[0].mxu0
        %v826 = vadd.f32 0.0, %v825
        %827 = vdwg.mxu0
        %828 = vmatprep.subr.mxu0 %v423
        %829 = vmatpush1.msra.mxu0 %v422
        %830 = vmatprep.subr.mxu0 %v431
        %831 = vmatpush1.msra.mxu0 %v430
        %832 = vmatprep.subr.mxu0 %v439
        %833 = vmatpush1.msra.mxu0 %v438
        %834 = vmatprep.subr.mxu0 %v447
        %835 = vmatpush1.msra.mxu0 %v446
        %836 = vmatprep.subr.mxu0 %v455
        %837 = vmatpush1.msra.mxu0 %v454
        %838 = vmatprep.subr.mxu0 %v463
        %839 = vmatpush1.msra.mxu0 %v462
        %840 = vmatprep.subr.mxu0 %v471
        %841 = vmatpush1.msra.mxu0 %v470
        %842 = vmatprep.subr.mxu0 %v479
        %843 = vmatpush1.msra.mxu0 %v478
        %844 = vmatprep.subr.mxu0 %v487
        %845 = vmatpush1.msra.mxu0 %v486
        %846 = vmatprep.subr.mxu0 %v495
        %847 = vmatpush1.msra.mxu0 %v494
        %848 = vmatprep.subr.mxu0 %v503
        %849 = vmatpush1.msra.mxu0 %v502
        %850 = vmatprep.subr.mxu0 %v511
        %851 = vmatpush1.msra.mxu0 %v510
        %852 = vmatprep.subr.mxu0 %v519
        %853 = vmatpush1.msra.mxu0 %v518
        %854 = vmatprep.subr.mxu0 %v527
        %855 = vmatpush1.msra.mxu0 %v526
        %856 = vmatprep.subr.mxu0 %v535
        %857 = vmatpush1.msra.mxu0 %v534
        %858 = vmatprep.subr.mxu0 %v543
        %859 = vmatpush1.msra.mxu0 %v542
        %860 = vmatprep.subr.mxu0 %v551
        %861 = vmatpush1.msra.mxu0 %v550
        %862 = vmatprep.subr.mxu0 %v559
        %863 = vmatpush1.msra.mxu0 %v558
        %864 = vmatprep.subr.mxu0 %v567
        %865 = vmatpush1.msra.mxu0 %v566
        %866 = vmatprep.subr.mxu0 %v575
        %867 = vmatpush1.msra.mxu0 %v574
        %868 = vmatprep.subr.mxu0 %v583
        %869 = vmatpush1.msra.mxu0 %v582
        %870 = vmatprep.subr.mxu0 %v591
        %871 = vmatpush1.msra.mxu0 %v590
        %872 = vmatprep.subr.mxu0 %v599
        %873 = vmatpush1.msra.mxu0 %v598
        %874 = vmatprep.subr.mxu0 %v607
        %875 = vmatpush1.msra.mxu0 %v606
        %876 = vmatprep.subr.mxu0 %v615
        %877 = vmatpush1.msra.mxu0 %v614
        %878 = vmatprep.subr.mxu0 %v623
        %879 = vmatpush1.msra.mxu0 %v622
        %880 = vmatprep.subr.mxu0 %v631
        %881 = vmatpush1.msra.mxu0 %v630
        %882 = vmatprep.subr.mxu0 %v639
        %883 = vmatpush1.msra.mxu0 %v638
        %884 = vmatprep.subr.mxu0 %v647
        %885 = vmatpush1.msra.mxu0 %v646
        %886 = vmatprep.subr.mxu0 %v655
        %887 = vmatpush1.msra.mxu0 %v654
        %888 = vmatprep.subr.mxu0 %v663
        %889 = vmatpush1.msra.mxu0 %v662
        %890 = vmatprep.subr.mxu0 %v671
        %891 = vmatpush1.msra.mxu0 %v670
        %892 = vmatprep.mubr.f32.mxu0 %v399
        %893 = vmatmul.mubr.f32.gmra.mrb[0].mxu0 %v398
        %v894 = vpop.f32.mrb[0].mxu0
        %v895 = vadd.f32 0.0, %v894
        %v896 = vpop.f32.mrb[0].mxu0
        %v897 = vadd.f32 0.0, %v896
        %898 = vmatprep.mubr.f32.mxu0 %v417
        %899 = vmatmul.mubr.f32.gmra.mrb[0].mxu0 %v416
        %v900 = vpop.f32.mrb[0].mxu0
        %v901 = vadd.f32 0.0, %v900
        %v902 = vpop.f32.mrb[0].mxu0
        %v903 = vadd.f32 0.0, %v902
        %904 = vdwg.mxu0
        %905 = vmatprep.subr.mxu0 %v425
        %906 = vmatpush1.msra.mxu0 %v424
        %907 = vmatprep.subr.mxu0 %v433
        %908 = vmatpush1.msra.mxu0 %v432
        %909 = vmatprep.subr.mxu0 %v441
        %910 = vmatpush1.msra.mxu0 %v440
        %911 = vmatprep.subr.mxu0 %v449
        %912 = vmatpush1.msra.mxu0 %v448
        %913 = vmatprep.subr.mxu0 %v457
        %914 = vmatpush1.msra.mxu0 %v456
        %915 = vmatprep.subr.mxu0 %v465
        %916 = vmatpush1.msra.mxu0 %v464
        %917 = vmatprep.subr.mxu0 %v473
        %918 = vmatpush1.msra.mxu0 %v472
        %919 = vmatprep.subr.mxu0 %v481
        %920 = vmatpush1.msra.mxu0 %v480
        %921 = vmatprep.subr.mxu0 %v489
        %922 = vmatpush1.msra.mxu0 %v488
        %923 = vmatprep.subr.mxu0 %v497
        %924 = vmatpush1.msra.mxu0 %v496
        %925 = vmatprep.subr.mxu0 %v505
        %926 = vmatpush1.msra.mxu0 %v504
        %927 = vmatprep.subr.mxu0 %v513
        %928 = vmatpush1.msra.mxu0 %v512
        %929 = vmatprep.subr.mxu0 %v521
        %930 = vmatpush1.msra.mxu0 %v520
        %931 = vmatprep.subr.mxu0 %v529
        %932 = vmatpush1.msra.mxu0 %v528
        %933 = vmatprep.subr.mxu0 %v537
        %934 = vmatpush1.msra.mxu0 %v536
        %935 = vmatprep.subr.mxu0 %v545
        %936 = vmatpush1.msra.mxu0 %v544
        %937 = vmatprep.subr.mxu0 %v553
        %938 = vmatpush1.msra.mxu0 %v552
        %939 = vmatprep.subr.mxu0 %v561
        %940 = vmatpush1.msra.mxu0 %v560
        %941 = vmatprep.subr.mxu0 %v569
        %942 = vmatpush1.msra.mxu0 %v568
        %943 = vmatprep.subr.mxu0 %v577
        %944 = vmatpush1.msra.mxu0 %v576
        %945 = vmatprep.subr.mxu0 %v585
        %946 = vmatpush1.msra.mxu0 %v584
        %947 = vmatprep.subr.mxu0 %v593
        %948 = vmatpush1.msra.mxu0 %v592
        %949 = vmatprep.subr.mxu0 %v601
        %950 = vmatpush1.msra.mxu0 %v600
        %951 = vmatprep.subr.mxu0 %v609
        %952 = vmatpush1.msra.mxu0 %v608
        %953 = vmatprep.subr.mxu0 %v617
        %954 = vmatpush1.msra.mxu0 %v616
        %955 = vmatprep.subr.mxu0 %v625
        %956 = vmatpush1.msra.mxu0 %v624
        %957 = vmatprep.subr.mxu0 %v633
        %958 = vmatpush1.msra.mxu0 %v632
        %959 = vmatprep.subr.mxu0 %v641
        %960 = vmatpush1.msra.mxu0 %v640
        %961 = vmatprep.subr.mxu0 %v649
        %962 = vmatpush1.msra.mxu0 %v648
        %963 = vmatprep.subr.mxu0 %v657
        %964 = vmatpush1.msra.mxu0 %v656
        %965 = vmatprep.subr.mxu0 %v665
        %966 = vmatpush1.msra.mxu0 %v664
        %967 = vmatprep.subr.mxu0 %v673
        %968 = vmatpush1.msra.mxu0 %v672
        %969 = vmatprep.mubr.f32.mxu0 %v399
        %970 = vmatmul.mubr.f32.gmra.mrb[0].mxu0 %v398
        %v971 = vpop.f32.mrb[0].mxu0
        %v972 = vadd.f32 0.0, %v971
        %v973 = vpop.f32.mrb[0].mxu0
        %v974 = vadd.f32 0.0, %v973
        %975 = vmatprep.mubr.f32.mxu0 %v417
        %976 = vmatmul.mubr.f32.gmra.mrb[0].mxu0 %v416
        %v977 = vpop.f32.mrb[0].mxu0
        %v978 = vadd.f32 0.0, %v977
        %v979 = vpop.f32.mrb[0].mxu0
        %v980 = vadd.f32 0.0, %v979
        %981 = vdwg.mxu0
        %v982 = vld [vmem:[%s4] sm:$0xff]
        %v983 = vld [vmem:[%s5] sm:$0xff]
        %985 = vset.pattern.permute.xlu0 0
        %986 = vperm.xlu0 %985, %v983
        %v987 = vpop.permute.xlu0 %986
        %vm989 = vcmask 64512
        %v991 = vsel %vm989, %v982, 0
        %993 = vmatprep.subr.mxu0 %v743
        %994 = vmatpush1.msra.mxu0 %v741
        %995 = vmatprep.subr.mxu0 0.0
        %996 = vmatpush1.msra.mxu0 0.0
        %997 = vmatprep.subr.mxu0 0.0
        %998 = vmatpush1.msra.mxu0 0.0
        %999 = vmatprep.subr.mxu0 0.0
        %1000 = vmatpush1.msra.mxu0 0.0
        %1001 = vmatprep.subr.mxu0 0.0
        %1002 = vmatpush1.msra.mxu0 0.0
        %1003 = vmatprep.subr.mxu0 0.0
        %1004 = vmatpush1.msra.mxu0 0.0
        %1005 = vmatprep.subr.mxu0 0.0
        %1006 = vmatpush1.msra.mxu0 0.0
        %1007 = vmatprep.subr.mxu0 0.0
        %1008 = vmatpush1.msra.mxu0 0.0
        %1009 = vmatprep.subr.mxu0 0.0
        %1010 = vmatpush1.msra.mxu0 0.0
        %1011 = vmatprep.subr.mxu0 0.0
        %1012 = vmatpush1.msra.mxu0 0.0
        %1013 = vmatprep.subr.mxu0 0.0
        %1014 = vmatpush1.msra.mxu0 0.0
        %1015 = vmatprep.subr.mxu0 0.0
        %1016 = vmatpush1.msra.mxu0 0.0
        %1017 = vmatprep.subr.mxu0 0.0
        %1018 = vmatpush1.msra.mxu0 0.0
        %1019 = vmatprep.subr.mxu0 0.0
        %1020 = vmatpush1.msra.mxu0 0.0
        %1021 = vmatprep.subr.mxu0 0.0
        %1022 = vmatpush1.msra.mxu0 0.0
        %1023 = vmatprep.subr.mxu0 0.0
        %1024 = vmatpush1.msra.mxu0 0.0
        %1025 = vmatprep.subr.mxu0 0.0
        %1026 = vmatpush1.msra.mxu0 0.0
        %1027 = vmatprep.subr.mxu0 0.0
        %1028 = vmatpush1.msra.mxu0 0.0
        %1029 = vmatprep.subr.mxu0 0.0
        %1030 = vmatpush1.msra.mxu0 0.0
        %1031 = vmatprep.subr.mxu0 0.0
        %1032 = vmatpush1.msra.mxu0 0.0
        %1033 = vmatprep.subr.mxu0 0.0
        %1034 = vmatpush1.msra.mxu0 0.0
        %1035 = vmatprep.subr.mxu0 0.0
        %1036 = vmatpush1.msra.mxu0 0.0
        %1037 = vmatprep.subr.mxu0 0.0
        %1038 = vmatpush1.msra.mxu0 0.0
        %1039 = vmatprep.subr.mxu0 0.0
        %1040 = vmatpush1.msra.mxu0 0.0
        %1041 = vmatprep.subr.mxu0 0.0
        %1042 = vmatpush1.msra.mxu0 0.0
        %1043 = vmatprep.subr.mxu0 0.0
        %1044 = vmatpush1.msra.mxu0 0.0
        %1045 = vmatprep.subr.mxu0 0.0
        %1046 = vmatpush1.msra.mxu0 0.0
        %1047 = vmatprep.subr.mxu0 0.0
        %1048 = vmatpush1.msra.mxu0 0.0
        %1049 = vmatprep.subr.mxu0 0.0
        %1050 = vmatpush1.msra.mxu0 0.0
        %1051 = vmatprep.subr.mxu0 0.0
        %1052 = vmatpush1.msra.mxu0 0.0
        %1053 = vmatprep.subr.mxu0 0.0
        %1054 = vmatpush1.msra.mxu0 0.0
        %1055 = vmatprep.subr.mxu0 0.0
        %1056 = vmatpush1.msra.mxu0 0.0
        %1057 = vmatprep.mubr.f32.mxu0 0.0
        %1058 = vmatmul.mubr.f32.gmra.mrb[0].mxu0 %v991
        %v1059 = vpop.f32.mrb[0].mxu0
        %v1060 = vadd.f32 %v987, %v1059
        %v1061 = vpop.f32.mrb[0].mxu0
        %v1062 = vadd.f32 %v987, %v1061
        %1063 = vdwg.mxu0
        %1064 = vmatprep.subr.mxu0 %v820
        %1065 = vmatpush1.msra.mxu0 %v818
        %1066 = vmatprep.subr.mxu0 0.0
        %1067 = vmatpush1.msra.mxu0 0.0
        %1068 = vmatprep.subr.mxu0 0.0
        %1069 = vmatpush1.msra.mxu0 0.0
        %1070 = vmatprep.subr.mxu0 0.0
        %1071 = vmatpush1.msra.mxu0 0.0
        %1072 = vmatprep.subr.mxu0 0.0
        %1073 = vmatpush1.msra.mxu0 0.0
        %1074 = vmatprep.subr.mxu0 0.0
        %1075 = vmatpush1.msra.mxu0 0.0
        %1076 = vmatprep.subr.mxu0 0.0
        %1077 = vmatpush1.msra.mxu0 0.0
        %1078 = vmatprep.subr.mxu0 0.0
        %1079 = vmatpush1.msra.mxu0 0.0
        %1080 = vmatprep.subr.mxu0 0.0
        %1081 = vmatpush1.msra.mxu0 0.0
        %1082 = vmatprep.subr.mxu0 0.0
        %1083 = vmatpush1.msra.mxu0 0.0
        %1084 = vmatprep.subr.mxu0 0.0
        %1085 = vmatpush1.msra.mxu0 0.0
        %1086 = vmatprep.subr.mxu0 0.0
        %1087 = vmatpush1.msra.mxu0 0.0
        %1088 = vmatprep.subr.mxu0 0.0
        %1089 = vmatpush1.msra.mxu0 0.0
        %1090 = vmatprep.subr.mxu0 0.0
        %1091 = vmatpush1.msra.mxu0 0.0
        %1092 = vmatprep.subr.mxu0 0.0
        %1093 = vmatpush1.msra.mxu0 0.0
        %1094 = vmatprep.subr.mxu0 0.0
        %1095 = vmatpush1.msra.mxu0 0.0
        %1096 = vmatprep.subr.mxu0 0.0
        %1097 = vmatpush1.msra.mxu0 0.0
        %1098 = vmatprep.subr.mxu0 0.0
        %1099 = vmatpush1.msra.mxu0 0.0
        %1100 = vmatprep.subr.mxu0 0.0
        %1101 = vmatpush1.msra.mxu0 0.0
        %1102 = vmatprep.subr.mxu0 0.0
        %1103 = vmatpush1.msra.mxu0 0.0
        %1104 = vmatprep.subr.mxu0 0.0
        %1105 = vmatpush1.msra.mxu0 0.0
        %1106 = vmatprep.subr.mxu0 0.0
        %1107 = vmatpush1.msra.mxu0 0.0
        %1108 = vmatprep.subr.mxu0 0.0
        %1109 = vmatpush1.msra.mxu0 0.0
        %1110 = vmatprep.subr.mxu0 0.0
        %1111 = vmatpush1.msra.mxu0 0.0
        %1112 = vmatprep.subr.mxu0 0.0
        %1113 = vmatpush1.msra.mxu0 0.0
        %1114 = vmatprep.subr.mxu0 0.0
        %1115 = vmatpush1.msra.mxu0 0.0
        %1116 = vmatprep.subr.mxu0 0.0
        %1117 = vmatpush1.msra.mxu0 0.0
        %1118 = vmatprep.subr.mxu0 0.0
        %1119 = vmatpush1.msra.mxu0 0.0
        %1120 = vmatprep.subr.mxu0 0.0
        %1121 = vmatpush1.msra.mxu0 0.0
        %1122 = vmatprep.subr.mxu0 0.0
        %1123 = vmatpush1.msra.mxu0 0.0
        %1124 = vmatprep.subr.mxu0 0.0
        %1125 = vmatpush1.msra.mxu0 0.0
        %1126 = vmatprep.subr.mxu0 0.0
        %1127 = vmatpush1.msra.mxu0 0.0
        %1128 = vmatprep.mubr.f32.mxu0 0.0
        %1129 = vmatmul.mubr.f32.gmra.mrb[0].mxu0 %v991
        %v1130 = vpop.f32.mrb[0].mxu0
        %v1131 = vadd.f32 %v987, %v1130
        %v1132 = vpop.f32.mrb[0].mxu0
        %v1133 = vadd.f32 %v987, %v1132
        %1134 = vdwg.mxu0
        %1135 = vmatprep.subr.mxu0 %v897
        %1136 = vmatpush1.msra.mxu0 %v895
        %1137 = vmatprep.subr.mxu0 0.0
        %1138 = vmatpush1.msra.mxu0 0.0
        %1139 = vmatprep.subr.mxu0 0.0
        %1140 = vmatpush1.msra.mxu0 0.0
        %1141 = vmatprep.subr.mxu0 0.0
        %1142 = vmatpush1.msra.mxu0 0.0
        %1143 = vmatprep.subr.mxu0 0.0
        %1144 = vmatpush1.msra.mxu0 0.0
        %1145 = vmatprep.subr.mxu0 0.0
        %1146 = vmatpush1.msra.mxu0 0.0
        %1147 = vmatprep.subr.mxu0 0.0
        %1148 = vmatpush1.msra.mxu0 0.0
        %1149 = vmatprep.subr.mxu0 0.0
        %1150 = vmatpush1.msra.mxu0 0.0
        %1151 = vmatprep.subr.mxu0 0.0
        %1152 = vmatpush1.msra.mxu0 0.0
        %1153 = vmatprep.subr.mxu0 0.0
        %1154 = vmatpush1.msra.mxu0 0.0
        %1155 = vmatprep.subr.mxu0 0.0
        %1156 = vmatpush1.msra.mxu0 0.0
        %1157 = vmatprep.subr.mxu0 0.0
        %1158 = vmatpush1.msra.mxu0 0.0
        %1159 = vmatprep.subr.mxu0 0.0
        %1160 = vmatpush1.msra.mxu0 0.0
        %1161 = vmatprep.subr.mxu0 0.0
        %1162 = vmatpush1.msra.mxu0 0.0
        %1163 = vmatprep.subr.mxu0 0.0
        %1164 = vmatpush1.msra.mxu0 0.0
        %1165 = vmatprep.subr.mxu0 0.0
        %1166 = vmatpush1.msra.mxu0 0.0
        %1167 = vmatprep.subr.mxu0 0.0
        %1168 = vmatpush1.msra.mxu0 0.0
        %1169 = vmatprep.subr.mxu0 0.0
        %1170 = vmatpush1.msra.mxu0 0.0
        %1171 = vmatprep.subr.mxu0 0.0
        %1172 = vmatpush1.msra.mxu0 0.0
        %1173 = vmatprep.subr.mxu0 0.0
        %1174 = vmatpush1.msra.mxu0 0.0
        %1175 = vmatprep.subr.mxu0 0.0
        %1176 = vmatpush1.msra.mxu0 0.0
        %1177 = vmatprep.subr.mxu0 0.0
        %1178 = vmatpush1.msra.mxu0 0.0
        %1179 = vmatprep.subr.mxu0 0.0
        %1180 = vmatpush1.msra.mxu0 0.0
        %1181 = vmatprep.subr.mxu0 0.0
        %1182 = vmatpush1.msra.mxu0 0.0
        %1183 = vmatprep.subr.mxu0 0.0
        %1184 = vmatpush1.msra.mxu0 0.0
        %1185 = vmatprep.subr.mxu0 0.0
        %1186 = vmatpush1.msra.mxu0 0.0
        %1187 = vmatprep.subr.mxu0 0.0
        %1188 = vmatpush1.msra.mxu0 0.0
        %1189 = vmatprep.subr.mxu0 0.0
        %1190 = vmatpush1.msra.mxu0 0.0
        %1191 = vmatprep.subr.mxu0 0.0
        %1192 = vmatpush1.msra.mxu0 0.0
        %1193 = vmatprep.subr.mxu0 0.0
        %1194 = vmatpush1.msra.mxu0 0.0
        %1195 = vmatprep.subr.mxu0 0.0
        %1196 = vmatpush1.msra.mxu0 0.0
        %1197 = vmatprep.subr.mxu0 0.0
        %1198 = vmatpush1.msra.mxu0 0.0
        %1199 = vmatprep.mubr.f32.mxu0 0.0
        %1200 = vmatmul.mubr.f32.gmra.mrb[0].mxu0 %v991
        %v1201 = vpop.f32.mrb[0].mxu0
        %v1202 = vadd.f32 %v987, %v1201
        %v1203 = vpop.f32.mrb[0].mxu0
        %v1204 = vadd.f32 %v987, %v1203
        %1205 = vdwg.mxu0
        %1206 = vmatprep.subr.mxu0 %v974
        %1207 = vmatpush1.msra.mxu0 %v972
        %1208 = vmatprep.subr.mxu0 0.0
        %1209 = vmatpush1.msra.mxu0 0.0
        %1210 = vmatprep.subr.mxu0 0.0
        %1211 = vmatpush1.msra.mxu0 0.0
        %1212 = vmatprep.subr.mxu0 0.0
        %1213 = vmatpush1.msra.mxu0 0.0
        %1214 = vmatprep.subr.mxu0 0.0
        %1215 = vmatpush1.msra.mxu0 0.0
        %1216 = vmatprep.subr.mxu0 0.0
        %1217 = vmatpush1.msra.mxu0 0.0
        %1218 = vmatprep.subr.mxu0 0.0
        %1219 = vmatpush1.msra.mxu0 0.0
        %1220 = vmatprep.subr.mxu0 0.0
        %1221 = vmatpush1.msra.mxu0 0.0
        %1222 = vmatprep.subr.mxu0 0.0
        %1223 = vmatpush1.msra.mxu0 0.0
        %1224 = vmatprep.subr.mxu0 0.0
        %1225 = vmatpush1.msra.mxu0 0.0
        %1226 = vmatprep.subr.mxu0 0.0
        %1227 = vmatpush1.msra.mxu0 0.0
        %1228 = vmatprep.subr.mxu0 0.0
        %1229 = vmatpush1.msra.mxu0 0.0
        %1230 = vmatprep.subr.mxu0 0.0
        %1231 = vmatpush1.msra.mxu0 0.0
        %1232 = vmatprep.subr.mxu0 0.0
        %1233 = vmatpush1.msra.mxu0 0.0
        %1234 = vmatprep.subr.mxu0 0.0
        %1235 = vmatpush1.msra.mxu0 0.0
        %1236 = vmatprep.subr.mxu0 0.0
        %1237 = vmatpush1.msra.mxu0 0.0
        %1238 = vmatprep.subr.mxu0 0.0
        %1239 = vmatpush1.msra.mxu0 0.0
        %1240 = vmatprep.subr.mxu0 0.0
        %1241 = vmatpush1.msra.mxu0 0.0
        %1242 = vmatprep.subr.mxu0 0.0
        %1243 = vmatpush1.msra.mxu0 0.0
        %1244 = vmatprep.subr.mxu0 0.0
        %1245 = vmatpush1.msra.mxu0 0.0
        %1246 = vmatprep.subr.mxu0 0.0
        %1247 = vmatpush1.msra.mxu0 0.0
        %1248 = vmatprep.subr.mxu0 0.0
        %1249 = vmatpush1.msra.mxu0 0.0
        %1250 = vmatprep.subr.mxu0 0.0
        %1251 = vmatpush1.msra.mxu0 0.0
        %1252 = vmatprep.subr.mxu0 0.0
        %1253 = vmatpush1.msra.mxu0 0.0
        %1254 = vmatprep.subr.mxu0 0.0
        %1255 = vmatpush1.msra.mxu0 0.0
        %1256 = vmatprep.subr.mxu0 0.0
        %1257 = vmatpush1.msra.mxu0 0.0
        %1258 = vmatprep.subr.mxu0 0.0
        %1259 = vmatpush1.msra.mxu0 0.0
        %1260 = vmatprep.subr.mxu0 0.0
        %1261 = vmatpush1.msra.mxu0 0.0
        %1262 = vmatprep.subr.mxu0 0.0
        %1263 = vmatpush1.msra.mxu0 0.0
        %1264 = vmatprep.subr.mxu0 0.0
        %1265 = vmatpush1.msra.mxu0 0.0
        %1266 = vmatprep.subr.mxu0 0.0
        %1267 = vmatpush1.msra.mxu0 0.0
        %1268 = vmatprep.subr.mxu0 0.0
        %1269 = vmatpush1.msra.mxu0 0.0
        %1270 = vmatprep.mubr.f32.mxu0 0.0
        %1271 = vmatmul.mubr.f32.gmra.mrb[0].mxu0 %v991
        %v1272 = vpop.f32.mrb[0].mxu0
        %v1273 = vadd.f32 %v987, %v1272
        %v1274 = vpop.f32.mrb[0].mxu0
        %v1275 = vadd.f32 %v987, %v1274
        %1276 = vdwg.mxu0
        %1277 = vst [vmem:[%s388] sm:$0xff] %v1060
        %1278 = vst [vmem:[%s388 + $0x8] sm:$0xff] %v1062
        %1279 = vst [vmem:[%s388 + $0x10] sm:$0xff] %v1131
        %1280 = vst [vmem:[%s388 + $0x18] sm:$0xff] %v1133
        %1281 = vst [vmem:[%s388 + $0x20] sm:$0xff] %v1202
        %1282 = vst [vmem:[%s388 + $0x28] sm:$0xff] %v1204
        %1283 = vst [vmem:[%s388 + $0x30] sm:$0xff] %v1273
        %1284 = vst [vmem:[%s388 + $0x38] sm:$0xff] %v1275
        %v1285 = vlaneseq
        %v1286 = vand.u32 %v1285, 127
        %v1287 = vadd.s32 %v1286, 128
        %v1288 = vadd.s32 %v1286, 256
        %v1289 = vadd.s32 %v1286, 384
        %v1290 = vadd.s32 %v1286, 512
        %v1291 = vadd.s32 %v1286, 640
        %v1292 = vadd.s32 %v1286, 768
        %v1293 = vadd.s32 %v1286, 896
        %vm1294 = vcmp.lt.s32.totalorder %v1286, 0
        %v1295 = vsub.s32 0, %v1286
        %v1296 = vsel %vm1294, %v1295, %v1286
        %v1297 = vshrl.u32 %v1296, 5
        %v1298 = vand.u32 %v1296, 31
        %v1299 = vsub.s32 0, %v1298
        %v1300 = vsel %vm1294, %v1299, %v1298
        %vm1301 = vcmp.lt.s32.totalorder %v1287, 0
        %v1302 = vsub.s32 0, %v1287
        %v1303 = vsel %vm1301, %v1302, %v1287
        %v1304 = vshrl.u32 %v1303, 5
        %v1305 = vand.u32 %v1303, 31
        %v1306 = vsub.s32 0, %v1305
        %v1307 = vsel %vm1301, %v1306, %v1305
        %vm1308 = vcmp.lt.s32.totalorder %v1288, 0
        %v1309 = vsub.s32 0, %v1288
        %v1310 = vsel %vm1308, %v1309, %v1288
        %v1311 = vshrl.u32 %v1310, 5
        %v1312 = vand.u32 %v1310, 31
        %v1313 = vsub.s32 0, %v1312
        %v1314 = vsel %vm1308, %v1313, %v1312
        %vm1315 = vcmp.lt.s32.totalorder %v1289, 0
        %v1316 = vsub.s32 0, %v1289
        %v1317 = vsel %vm1315, %v1316, %v1289
        %v1318 = vshrl.u32 %v1317, 5
        %v1319 = vand.u32 %v1317, 31
        %v1320 = vsub.s32 0, %v1319
        %v1321 = vsel %vm1315, %v1320, %v1319
        %vm1322 = vcmp.lt.s32.totalorder %v1290, 0
        %v1323 = vsub.s32 0, %v1290
        %v1324 = vsel %vm1322, %v1323, %v1290
        %v1325 = vshrl.u32 %v1324, 5
        %v1326 = vand.u32 %v1324, 31
        %v1327 = vsub.s32 0, %v1326
        %v1328 = vsel %vm1322, %v1327, %v1326
        %vm1329 = vcmp.lt.s32.totalorder %v1291, 0
        %v1330 = vsub.s32 0, %v1291
        %v1331 = vsel %vm1329, %v1330, %v1291
        %v1332 = vshrl.u32 %v1331, 5
        %v1333 = vand.u32 %v1331, 31
        %v1334 = vsub.s32 0, %v1333
        %v1335 = vsel %vm1329, %v1334, %v1333
        %vm1336 = vcmp.lt.s32.totalorder %v1292, 0
        %v1337 = vsub.s32 0, %v1292
        %v1338 = vsel %vm1336, %v1337, %v1292
        %v1339 = vshrl.u32 %v1338, 5
        %v1340 = vand.u32 %v1338, 31
        %v1341 = vsub.s32 0, %v1340
        %v1342 = vsel %vm1336, %v1341, %v1340
        %vm1343 = vcmp.lt.s32.totalorder %v1293, 0
        %v1344 = vsub.s32 0, %v1293
        %v1345 = vsel %vm1343, %v1344, %v1293
        %v1346 = vshrl.u32 %v1345, 5
        %v1347 = vand.u32 %v1345, 31
        %v1348 = vsub.s32 0, %v1347
        %v1349 = vsel %vm1343, %v1348, %v1347
        %vm1350 = vcmp.ne.s32.totalorder %v1300, 0
        %vm1351 = vcmp.ne.s32.totalorder %v1307, 0
        %vm1352 = vcmp.ne.s32.totalorder %v1314, 0
        %vm1353 = vcmp.ne.s32.totalorder %v1321, 0
        %vm1354 = vcmp.ne.s32.totalorder %v1328, 0
        %vm1355 = vcmp.ne.s32.totalorder %v1335, 0
        %vm1356 = vcmp.ne.s32.totalorder %v1342, 0
        %vm1357 = vcmp.ne.s32.totalorder %v1349, 0
        %vm1358 = vcmp.lt.s32.totalorder %v1300, 0
        %vm1359 = vcmp.lt.s32.totalorder %v1307, 0
        %vm1360 = vcmp.lt.s32.totalorder %v1314, 0
        %vm1361 = vcmp.lt.s32.totalorder %v1321, 0
        %vm1362 = vcmp.lt.s32.totalorder %v1328, 0
        %vm1363 = vcmp.lt.s32.totalorder %v1335, 0
        %vm1364 = vcmp.lt.s32.totalorder %v1342, 0
        %vm1365 = vcmp.lt.s32.totalorder %v1349, 0
        %vm1366 = vmand %vm1358, %vm1350
        %vm1367 = vmand %vm1359, %vm1351
        %vm1368 = vmand %vm1360, %vm1352
        %vm1369 = vmand %vm1361, %vm1353
        %vm1370 = vmand %vm1362, %vm1354
        %vm1371 = vmand %vm1363, %vm1355
        %vm1372 = vmand %vm1364, %vm1356
        %vm1373 = vmand %vm1365, %vm1357
        %v1374 = vadd.s32 %v1300, 32
        %v1375 = vadd.s32 %v1307, 32
        %v1376 = vadd.s32 %v1314, 32
        %v1377 = vadd.s32 %v1321, 32
        %v1378 = vadd.s32 %v1328, 32
        %v1379 = vadd.s32 %v1335, 32
        %v1380 = vadd.s32 %v1342, 32
        %v1381 = vadd.s32 %v1349, 32
        %v1382 = vsel %vm1366, %v1374, %v1300
        %v1383 = vsel %vm1367, %v1375, %v1307
        %v1384 = vsel %vm1368, %v1376, %v1314
        %v1385 = vsel %vm1369, %v1377, %v1321
        %v1386 = vsel %vm1370, %v1378, %v1328
        %v1387 = vsel %vm1371, %v1379, %v1335
        %v1388 = vsel %vm1372, %v1380, %v1342
        %v1389 = vsel %vm1373, %v1381, %v1349
        %vm1390 = vcmp.ge.s32.totalorder %v1286, 32
        %vm1391 = vcmp.ge.s32.totalorder %v1287, 32
        %vm1392 = vcmp.ge.s32.totalorder %v1288, 32
        %vm1393 = vcmp.ge.s32.totalorder %v1289, 32
        %vm1394 = vcmp.ge.s32.totalorder %v1290, 32
        %vm1395 = vcmp.ge.s32.totalorder %v1291, 32
        %vm1396 = vcmp.ge.s32.totalorder %v1292, 32
        %vm1397 = vcmp.ge.s32.totalorder %v1293, 32
        %vm1398 = vcmp.lt.s32.totalorder %v1286, 992
        %vm1399 = vcmp.lt.s32.totalorder %v1287, 992
        %vm1400 = vcmp.lt.s32.totalorder %v1288, 992
        %vm1401 = vcmp.lt.s32.totalorder %v1289, 992
        %vm1402 = vcmp.lt.s32.totalorder %v1290, 992
        %vm1403 = vcmp.lt.s32.totalorder %v1291, 992
        %vm1404 = vcmp.lt.s32.totalorder %v1292, 992
        %vm1405 = vcmp.lt.s32.totalorder %v1293, 992
        %vm1406 = vcmp.ge.s32.totalorder %v1382, 1
        %vm1407 = vcmp.ge.s32.totalorder %v1383, 1
        %vm1408 = vcmp.ge.s32.totalorder %v1384, 1
        %vm1409 = vcmp.ge.s32.totalorder %v1385, 1
        %vm1410 = vcmp.ge.s32.totalorder %v1386, 1
        %vm1411 = vcmp.ge.s32.totalorder %v1387, 1
        %vm1412 = vcmp.ge.s32.totalorder %v1388, 1
        %vm1413 = vcmp.ge.s32.totalorder %v1389, 1
        %vm1414 = vcmp.lt.s32.totalorder %v1382, 31
        %vm1415 = vcmp.lt.s32.totalorder %v1383, 31
        %vm1416 = vcmp.lt.s32.totalorder %v1384, 31
        %vm1417 = vcmp.lt.s32.totalorder %v1385, 31
        %vm1418 = vcmp.lt.s32.totalorder %v1386, 31
        %vm1419 = vcmp.lt.s32.totalorder %v1387, 31
        %vm1420 = vcmp.lt.s32.totalorder %v1388, 31
        %vm1421 = vcmp.lt.s32.totalorder %v1389, 31
        %1423 = vrot.lane.b32.xlu0 %v980, 33
        %v1424 = vpop.permute.xlu0 %1423
        %1433 = vrot.lane.b32.xlu0 %v747, 33
        %v1434 = vpop.permute.xlu0 %1433
        %1435 = vrot.lane.b32.xlu0 %v749, 33
        %v1436 = vpop.permute.xlu0 %1435
        %1437 = vrot.lane.b32.xlu0 %v824, 33
        %v1438 = vpop.permute.xlu0 %1437
        %1439 = vrot.lane.b32.xlu0 %v826, 33
        %v1440 = vpop.permute.xlu0 %1439
        %1441 = vrot.lane.b32.xlu0 %v901, 33
        %v1442 = vpop.permute.xlu0 %1441
        %1443 = vrot.lane.b32.xlu0 %v903, 33
        %v1444 = vpop.permute.xlu0 %1443
        %1445 = vrot.lane.b32.xlu0 %v978, 33
        %v1446 = vpop.permute.xlu0 %1445
        %vm1447 = vcmask 269312
        %v1448 = vsel %vm1447, %v1434, %v1436
        %v1449 = vsel %vm1447, %v1436, %v1438
        %v1450 = vsel %vm1447, %v1438, %v1440
        %v1451 = vsel %vm1447, %v1440, %v1442
        %v1452 = vsel %vm1447, %v1442, %v1444
        %v1453 = vsel %vm1447, %v1444, %v1446
        %v1454 = vsel %vm1447, %v1446, %v1424
        %v1463 = vsel %vm1447, %v1424, %v1434
        %vm1464 = vmand %vm1390, %vm1406
        %vm1465 = vmand %vm1391, %vm1407
        %vm1466 = vmand %vm1392, %vm1408
        %vm1467 = vmand %vm1393, %vm1409
        %vm1468 = vmand %vm1394, %vm1410
        %vm1469 = vmand %vm1395, %vm1411
        %vm1470 = vmand %vm1396, %vm1412
        %vm1471 = vmand %vm1397, %vm1413
        %v1472 = vsel %vm1464, %v1463, 0.0
        %v1473 = vsel %vm1465, %v1448, 0.0
        %v1474 = vsel %vm1466, %v1449, 0.0
        %v1475 = vsel %vm1467, %v1450, 0.0
        %v1476 = vsel %vm1468, %v1451, 0.0
        %v1477 = vsel %vm1469, %v1452, 0.0
        %v1478 = vsel %vm1470, %v1453, 0.0
        %v1479 = vsel %vm1471, %v1454, 0.0
        %1480 = vrot.lane.b32.xlu0 %v980, 32
        %v1481 = vpop.permute.xlu0 %1480
        %1483 = vrot.lane.b32.xlu0 %v747, 32
        %v1484 = vpop.permute.xlu0 %1483
        %1485 = vrot.lane.b32.xlu0 %v749, 32
        %v1486 = vpop.permute.xlu0 %1485
        %1487 = vrot.lane.b32.xlu0 %v824, 32
        %v1488 = vpop.permute.xlu0 %1487
        %1489 = vrot.lane.b32.xlu0 %v826, 32
        %v1490 = vpop.permute.xlu0 %1489
        %1491 = vrot.lane.b32.xlu0 %v901, 32
        %v1492 = vpop.permute.xlu0 %1491
        %1493 = vrot.lane.b32.xlu0 %v903, 32
        %v1494 = vpop.permute.xlu0 %1493
        %1495 = vrot.lane.b32.xlu0 %v978, 32
        %v1496 = vpop.permute.xlu0 %1495
        %vm1497 = vcmask 261120
        %v1498 = vsel %vm1497, %v1484, %v1486
        %v1499 = vsel %vm1497, %v1486, %v1488
        %v1500 = vsel %vm1497, %v1488, %v1490
        %v1501 = vsel %vm1497, %v1490, %v1492
        %v1502 = vsel %vm1497, %v1492, %v1494
        %v1503 = vsel %vm1497, %v1494, %v1496
        %v1504 = vsel %vm1497, %v1496, %v1481
        %v1513 = vsel %vm1497, %v1481, %v1484
        %v1514 = vsel %vm1390, %v1513, 0.0
        %v1515 = vsel %vm1391, %v1498, 0.0
        %v1516 = vsel %vm1392, %v1499, 0.0
        %v1517 = vsel %vm1393, %v1500, 0.0
        %v1518 = vsel %vm1394, %v1501, 0.0
        %v1519 = vsel %vm1395, %v1502, 0.0
        %v1520 = vsel %vm1396, %v1503, 0.0
        %v1521 = vsel %vm1397, %v1504, 0.0
        %1522 = vrot.lane.b32.xlu0 %v980, 31
        %v1523 = vpop.permute.xlu0 %1522
        %1525 = vrot.lane.b32.xlu0 %v747, 31
        %v1526 = vpop.permute.xlu0 %1525
        %1527 = vrot.lane.b32.xlu0 %v749, 31
        %v1528 = vpop.permute.xlu0 %1527
        %1529 = vrot.lane.b32.xlu0 %v824, 31
        %v1530 = vpop.permute.xlu0 %1529
        %1531 = vrot.lane.b32.xlu0 %v826, 31
        %v1532 = vpop.permute.xlu0 %1531
        %1533 = vrot.lane.b32.xlu0 %v901, 31
        %v1534 = vpop.permute.xlu0 %1533
        %1535 = vrot.lane.b32.xlu0 %v903, 31
        %v1536 = vpop.permute.xlu0 %1535
        %1537 = vrot.lane.b32.xlu0 %v978, 31
        %v1538 = vpop.permute.xlu0 %1537
        %vm1539 = vcmask 252928
        %v1540 = vsel %vm1539, %v1526, %v1528
        %v1541 = vsel %vm1539, %v1528, %v1530
        %v1542 = vsel %vm1539, %v1530, %v1532
        %v1543 = vsel %vm1539, %v1532, %v1534
        %v1544 = vsel %vm1539, %v1534, %v1536
        %v1545 = vsel %vm1539, %v1536, %v1538
        %v1546 = vsel %vm1539, %v1538, %v1523
        %v1555 = vsel %vm1539, %v1523, %v1526
        %vm1556 = vmand %vm1390, %vm1414
        %vm1557 = vmand %vm1391, %vm1415
        %vm1558 = vmand %vm1392, %vm1416
        %vm1559 = vmand %vm1393, %vm1417
        %vm1560 = vmand %vm1394, %vm1418
        %vm1561 = vmand %vm1395, %vm1419
        %vm1562 = vmand %vm1396, %vm1420
        %vm1563 = vmand %vm1397, %vm1421
        %v1564 = vsel %vm1556, %v1555, 0.0
        %v1565 = vsel %vm1557, %v1540, 0.0
        %v1566 = vsel %vm1558, %v1541, 0.0
        %v1567 = vsel %vm1559, %v1542, 0.0
        %v1568 = vsel %vm1560, %v1543, 0.0
        %v1569 = vsel %vm1561, %v1544, 0.0
        %v1570 = vsel %vm1562, %v1545, 0.0
        %v1571 = vsel %vm1563, %v1546, 0.0
        %1572 = vrot.lane.b32.xlu0 %v980, 1
        %v1573 = vpop.permute.xlu0 %1572
        %1575 = vrot.lane.b32.xlu0 %v747, 1
        %v1576 = vpop.permute.xlu0 %1575
        %1577 = vrot.lane.b32.xlu0 %v749, 1
        %v1578 = vpop.permute.xlu0 %1577
        %1579 = vrot.lane.b32.xlu0 %v824, 1
        %v1580 = vpop.permute.xlu0 %1579
        %1581 = vrot.lane.b32.xlu0 %v826, 1
        %v1582 = vpop.permute.xlu0 %1581
        %1583 = vrot.lane.b32.xlu0 %v901, 1
        %v1584 = vpop.permute.xlu0 %1583
        %1585 = vrot.lane.b32.xlu0 %v903, 1
        %v1586 = vpop.permute.xlu0 %1585
        %1587 = vrot.lane.b32.xlu0 %v978, 1
        %v1588 = vpop.permute.xlu0 %1587
        %vm1589 = vcmask 7168
        %v1590 = vsel %vm1589, %v1576, %v1578
        %v1591 = vsel %vm1589, %v1578, %v1580
        %v1592 = vsel %vm1589, %v1580, %v1582
        %v1593 = vsel %vm1589, %v1582, %v1584
        %v1594 = vsel %vm1589, %v1584, %v1586
        %v1595 = vsel %vm1589, %v1586, %v1588
        %v1596 = vsel %vm1589, %v1588, %v1573
        %v1605 = vsel %vm1589, %v1573, %v1576
        %v1606 = vsel %vm1406, %v1605, 0.0
        %v1607 = vsel %vm1407, %v1590, 0.0
        %v1608 = vsel %vm1408, %v1591, 0.0
        %v1609 = vsel %vm1409, %v1592, 0.0
        %v1610 = vsel %vm1410, %v1593, 0.0
        %v1611 = vsel %vm1411, %v1594, 0.0
        %v1612 = vsel %vm1412, %v1595, 0.0
        %v1613 = vsel %vm1413, %v1596, 0.0
        %1614 = vrot.lane.b32.xlu0 %v747, 127
        %v1615 = vpop.permute.xlu0 %1614
        %1616 = vrot.lane.b32.xlu0 %v749, 127
        %v1617 = vpop.permute.xlu0 %1616
        %1618 = vrot.lane.b32.xlu0 %v824, 127
        %v1619 = vpop.permute.xlu0 %1618
        %1620 = vrot.lane.b32.xlu0 %v826, 127
        %v1621 = vpop.permute.xlu0 %1620
        %1622 = vrot.lane.b32.xlu0 %v901, 127
        %v1623 = vpop.permute.xlu0 %1622
        %1624 = vrot.lane.b32.xlu0 %v903, 127
        %v1625 = vpop.permute.xlu0 %1624
        %1626 = vrot.lane.b32.xlu0 %v978, 127
        %v1627 = vpop.permute.xlu0 %1626
        %1628 = vrot.lane.b32.xlu0 %v980, 127
        %v1629 = vpop.permute.xlu0 %1628
        %vm1630 = vcmask 1039360
        %v1631 = vsel %vm1630, %v1615, %v1617
        %v1632 = vsel %vm1630, %v1617, %v1619
        %v1633 = vsel %vm1630, %v1619, %v1621
        %v1634 = vsel %vm1630, %v1621, %v1623
        %v1635 = vsel %vm1630, %v1623, %v1625
        %v1636 = vsel %vm1630, %v1625, %v1627
        %v1637 = vsel %vm1630, %v1627, %v1629
        %v1647 = vsel %vm1630, %v1629, %v1615
        %v1648 = vsel %vm1414, %v1631, 0.0
        %v1649 = vsel %vm1415, %v1632, 0.0
        %v1650 = vsel %vm1416, %v1633, 0.0
        %v1651 = vsel %vm1417, %v1634, 0.0
        %v1652 = vsel %vm1418, %v1635, 0.0
        %v1653 = vsel %vm1419, %v1636, 0.0
        %v1654 = vsel %vm1420, %v1637, 0.0
        %v1655 = vsel %vm1421, %v1647, 0.0
        %1656 = vrot.lane.b32.xlu0 %v747, 97
        %v1657 = vpop.permute.xlu0 %1656
        %1658 = vrot.lane.b32.xlu0 %v749, 97
        %v1659 = vpop.permute.xlu0 %1658
        %1660 = vrot.lane.b32.xlu0 %v824, 97
        %v1661 = vpop.permute.xlu0 %1660
        %1662 = vrot.lane.b32.xlu0 %v826, 97
        %v1663 = vpop.permute.xlu0 %1662
        %1664 = vrot.lane.b32.xlu0 %v901, 97
        %v1665 = vpop.permute.xlu0 %1664
        %1666 = vrot.lane.b32.xlu0 %v903, 97
        %v1667 = vpop.permute.xlu0 %1666
        %1668 = vrot.lane.b32.xlu0 %v978, 97
        %v1669 = vpop.permute.xlu0 %1668
        %1670 = vrot.lane.b32.xlu0 %v980, 97
        %v1671 = vpop.permute.xlu0 %1670
        %vm1672 = vcmask 793600
        %v1673 = vsel %vm1672, %v1657, %v1659
        %v1674 = vsel %vm1672, %v1659, %v1661
        %v1675 = vsel %vm1672, %v1661, %v1663
        %v1676 = vsel %vm1672, %v1663, %v1665
        %v1677 = vsel %vm1672, %v1665, %v1667
        %v1678 = vsel %vm1672, %v1667, %v1669
        %v1679 = vsel %vm1672, %v1669, %v1671
        %v1689 = vsel %vm1672, %v1671, %v1657
        %vm1690 = vmand %vm1398, %vm1406
        %vm1691 = vmand %vm1399, %vm1407
        %vm1692 = vmand %vm1400, %vm1408
        %vm1693 = vmand %vm1401, %vm1409
        %vm1694 = vmand %vm1402, %vm1410
        %vm1695 = vmand %vm1403, %vm1411
        %vm1696 = vmand %vm1404, %vm1412
        %vm1697 = vmand %vm1405, %vm1413
        %v1698 = vsel %vm1690, %v1673, 0.0
        %v1699 = vsel %vm1691, %v1674, 0.0
        %v1700 = vsel %vm1692, %v1675, 0.0
        %v1701 = vsel %vm1693, %v1676, 0.0
        %v1702 = vsel %vm1694, %v1677, 0.0
        %v1703 = vsel %vm1695, %v1678, 0.0
        %v1704 = vsel %vm1696, %v1679, 0.0
        %v1705 = vsel %vm1697, %v1689, 0.0
        %1706 = vrot.lane.b32.xlu0 %v747, 96
        %v1707 = vpop.permute.xlu0 %1706
        %1708 = vrot.lane.b32.xlu0 %v749, 96
        %v1709 = vpop.permute.xlu0 %1708
        %1710 = vrot.lane.b32.xlu0 %v824, 96
        %v1711 = vpop.permute.xlu0 %1710
        %1712 = vrot.lane.b32.xlu0 %v826, 96
        %v1713 = vpop.permute.xlu0 %1712
        %1714 = vrot.lane.b32.xlu0 %v901, 96
        %v1715 = vpop.permute.xlu0 %1714
        %1716 = vrot.lane.b32.xlu0 %v903, 96
        %v1717 = vpop.permute.xlu0 %1716
        %1718 = vrot.lane.b32.xlu0 %v978, 96
        %v1719 = vpop.permute.xlu0 %1718
        %1720 = vrot.lane.b32.xlu0 %v980, 96
        %v1721 = vpop.permute.xlu0 %1720
        %vm1722 = vcmask 785408
        %v1723 = vsel %vm1722, %v1707, %v1709
        %v1724 = vsel %vm1722, %v1709, %v1711
        %v1725 = vsel %vm1722, %v1711, %v1713
        %v1726 = vsel %vm1722, %v1713, %v1715
        %v1727 = vsel %vm1722, %v1715, %v1717
        %v1728 = vsel %vm1722, %v1717, %v1719
        %v1729 = vsel %vm1722, %v1719, %v1721
        %v1739 = vsel %vm1722, %v1721, %v1707
        %v1740 = vsel %vm1398, %v1723, 0.0
        %v1741 = vsel %vm1399, %v1724, 0.0
        %v1742 = vsel %vm1400, %v1725, 0.0
        %v1743 = vsel %vm1401, %v1726, 0.0
        %v1744 = vsel %vm1402, %v1727, 0.0
        %v1745 = vsel %vm1403, %v1728, 0.0
        %v1746 = vsel %vm1404, %v1729, 0.0
        %v1747 = vsel %vm1405, %v1739, 0.0
        %1748 = vrot.lane.b32.xlu0 %v747, 95
        %v1749 = vpop.permute.xlu0 %1748
        %1750 = vrot.lane.b32.xlu0 %v749, 95
        %v1751 = vpop.permute.xlu0 %1750
        %1752 = vrot.lane.b32.xlu0 %v824, 95
        %v1753 = vpop.permute.xlu0 %1752
        %1754 = vrot.lane.b32.xlu0 %v826, 95
        %v1755 = vpop.permute.xlu0 %1754
        %1756 = vrot.lane.b32.xlu0 %v901, 95
        %v1757 = vpop.permute.xlu0 %1756
        %1758 = vrot.lane.b32.xlu0 %v903, 95
        %v1759 = vpop.permute.xlu0 %1758
        %1760 = vrot.lane.b32.xlu0 %v978, 95
        %v1761 = vpop.permute.xlu0 %1760
        %1762 = vrot.lane.b32.xlu0 %v980, 95
        %v1763 = vpop.permute.xlu0 %1762
        %vm1764 = vcmask 777216
        %v1765 = vsel %vm1764, %v1749, %v1751
        %v1766 = vsel %vm1764, %v1751, %v1753
        %v1767 = vsel %vm1764, %v1753, %v1755
        %v1768 = vsel %vm1764, %v1755, %v1757
        %v1769 = vsel %vm1764, %v1757, %v1759
        %v1770 = vsel %vm1764, %v1759, %v1761
        %v1771 = vsel %vm1764, %v1761, %v1763
        %v1781 = vsel %vm1764, %v1763, %v1749
        %vm1782 = vmand %vm1398, %vm1414
        %vm1783 = vmand %vm1399, %vm1415
        %vm1784 = vmand %vm1400, %vm1416
        %vm1785 = vmand %vm1401, %vm1417
        %vm1786 = vmand %vm1402, %vm1418
        %vm1787 = vmand %vm1403, %vm1419
        %vm1788 = vmand %vm1404, %vm1420
        %vm1789 = vmand %vm1405, %vm1421
        %v1790 = vsel %vm1782, %v1765, 0.0
        %v1791 = vsel %vm1783, %v1766, 0.0
        %v1792 = vsel %vm1784, %v1767, 0.0
        %v1793 = vsel %vm1785, %v1768, 0.0
        %v1794 = vsel %vm1786, %v1769, 0.0
        %v1795 = vsel %vm1787, %v1770, 0.0
        %v1796 = vsel %vm1788, %v1771, 0.0
        %v1797 = vsel %vm1789, %v1781, 0.0
        %v1798 = vld [vmem:[%s6] sm:$0xff]
        %v1799 = vld [vmem:[%s7] sm:$0xff]
        %1801 = vset.pattern.permute.xlu0 0
        %1802 = vperm.xlu0 %1801, %v1799
        %v1803 = vpop.permute.xlu0 %1802
        %vm1805 = vcmask 588800
        %v1807 = vsel %vm1805, %v1798, 0
        %1809 = vmatprep.subr.mxu0 %v1473
        %1810 = vmatpush1.msra.mxu0 %v1472
        %1811 = vmatprep.subr.mxu0 %v1515
        %1812 = vmatpush1.msra.mxu0 %v1514
        %1813 = vmatprep.subr.mxu0 %v1565
        %1814 = vmatpush1.msra.mxu0 %v1564
        %1815 = vmatprep.subr.mxu0 %v1607
        %1816 = vmatpush1.msra.mxu0 %v1606
        %1817 = vmatprep.subr.mxu0 %v749
        %1818 = vmatpush1.msra.mxu0 %v747
        %1819 = vmatprep.subr.mxu0 %v1649
        %1820 = vmatpush1.msra.mxu0 %v1648
        %1821 = vmatprep.subr.mxu0 %v1699
        %1822 = vmatpush1.msra.mxu0 %v1698
        %1823 = vmatprep.subr.mxu0 %v1741
        %1824 = vmatpush1.msra.mxu0 %v1740
        %1825 = vmatprep.subr.mxu0 %v1791
        %1826 = vmatpush1.msra.mxu0 %v1790
        %1827 = vmatprep.subr.mxu0 0.0
        %1828 = vmatpush1.msra.mxu0 0.0
        %1829 = vmatprep.subr.mxu0 0.0
        %1830 = vmatpush1.msra.mxu0 0.0
        %1831 = vmatprep.subr.mxu0 0.0
        %1832 = vmatpush1.msra.mxu0 0.0
        %1833 = vmatprep.subr.mxu0 0.0
        %1834 = vmatpush1.msra.mxu0 0.0
        %1835 = vmatprep.subr.mxu0 0.0
        %1836 = vmatpush1.msra.mxu0 0.0
        %1837 = vmatprep.subr.mxu0 0.0
        %1838 = vmatpush1.msra.mxu0 0.0
        %1839 = vmatprep.subr.mxu0 0.0
        %1840 = vmatpush1.msra.mxu0 0.0
        %1841 = vmatprep.subr.mxu0 0.0
        %1842 = vmatpush1.msra.mxu0 0.0
        %1843 = vmatprep.subr.mxu0 0.0
        %1844 = vmatpush1.msra.mxu0 0.0
        %1845 = vmatprep.subr.mxu0 0.0
        %1846 = vmatpush1.msra.mxu0 0.0
        %1847 = vmatprep.subr.mxu0 0.0
        %1848 = vmatpush1.msra.mxu0 0.0
        %1849 = vmatprep.subr.mxu0 0.0
        %1850 = vmatpush1.msra.mxu0 0.0
        %1851 = vmatprep.subr.mxu0 0.0
        %1852 = vmatpush1.msra.mxu0 0.0
        %1853 = vmatprep.subr.mxu0 0.0
        %1854 = vmatpush1.msra.mxu0 0.0
        %1855 = vmatprep.subr.mxu0 0.0
        %1856 = vmatpush1.msra.mxu0 0.0
        %1857 = vmatprep.subr.mxu0 0.0
        %1858 = vmatpush1.msra.mxu0 0.0
        %1859 = vmatprep.subr.mxu0 0.0
        %1860 = vmatpush1.msra.mxu0 0.0
        %1861 = vmatprep.subr.mxu0 0.0
        %1862 = vmatpush1.msra.mxu0 0.0
        %1863 = vmatprep.subr.mxu0 0.0
        %1864 = vmatpush1.msra.mxu0 0.0
        %1865 = vmatprep.subr.mxu0 0.0
        %1866 = vmatpush1.msra.mxu0 0.0
        %1867 = vmatprep.subr.mxu0 0.0
        %1868 = vmatpush1.msra.mxu0 0.0
        %1869 = vmatprep.subr.mxu0 0.0
        %1870 = vmatpush1.msra.mxu0 0.0
        %1871 = vmatprep.subr.mxu0 0.0
        %1872 = vmatpush1.msra.mxu0 0.0
        %1873 = vmatprep.mubr.f32.mxu0 0.0
        %1874 = vmatmul.mubr.f32.gmra.mrb[0].mxu0 %v1807
        %v1875 = vpop.f32.mrb[0].mxu0
        %v1876 = vadd.f32 %v1803, %v1875
        %v1877 = vpop.f32.mrb[0].mxu0
        %v1878 = vadd.f32 %v1803, %v1877
        %1879 = vdwg.mxu0
        %1880 = vmatprep.subr.mxu0 %v1475
        %1881 = vmatpush1.msra.mxu0 %v1474
        %1882 = vmatprep.subr.mxu0 %v1517
        %1883 = vmatpush1.msra.mxu0 %v1516
        %1884 = vmatprep.subr.mxu0 %v1567
        %1885 = vmatpush1.msra.mxu0 %v1566
        %1886 = vmatprep.subr.mxu0 %v1609
        %1887 = vmatpush1.msra.mxu0 %v1608
        %1888 = vmatprep.subr.mxu0 %v826
        %1889 = vmatpush1.msra.mxu0 %v824
        %1890 = vmatprep.subr.mxu0 %v1651
        %1891 = vmatpush1.msra.mxu0 %v1650
        %1892 = vmatprep.subr.mxu0 %v1701
        %1893 = vmatpush1.msra.mxu0 %v1700
        %1894 = vmatprep.subr.mxu0 %v1743
        %1895 = vmatpush1.msra.mxu0 %v1742
        %1896 = vmatprep.subr.mxu0 %v1793
        %1897 = vmatpush1.msra.mxu0 %v1792
        %1898 = vmatprep.subr.mxu0 0.0
        %1899 = vmatpush1.msra.mxu0 0.0
        %1900 = vmatprep.subr.mxu0 0.0
        %1901 = vmatpush1.msra.mxu0 0.0
        %1902 = vmatprep.subr.mxu0 0.0
        %1903 = vmatpush1.msra.mxu0 0.0
        %1904 = vmatprep.subr.mxu0 0.0
        %1905 = vmatpush1.msra.mxu0 0.0
        %1906 = vmatprep.subr.mxu0 0.0
        %1907 = vmatpush1.msra.mxu0 0.0
        %1908 = vmatprep.subr.mxu0 0.0
        %1909 = vmatpush1.msra.mxu0 0.0
        %1910 = vmatprep.subr.mxu0 0.0
        %1911 = vmatpush1.msra.mxu0 0.0
        %1912 = vmatprep.subr.mxu0 0.0
        %1913 = vmatpush1.msra.mxu0 0.0
        %1914 = vmatprep.subr.mxu0 0.0
        %1915 = vmatpush1.msra.mxu0 0.0
        %1916 = vmatprep.subr.mxu0 0.0
        %1917 = vmatpush1.msra.mxu0 0.0
        %1918 = vmatprep.subr.mxu0 0.0
        %1919 = vmatpush1.msra.mxu0 0.0
        %1920 = vmatprep.subr.mxu0 0.0
        %1921 = vmatpush1.msra.mxu0 0.0
        %1922 = vmatprep.subr.mxu0 0.0
        %1923 = vmatpush1.msra.mxu0 0.0
        %1924 = vmatprep.subr.mxu0 0.0
        %1925 = vmatpush1.msra.mxu0 0.0
        %1926 = vmatprep.subr.mxu0 0.0
        %1927 = vmatpush1.msra.mxu0 0.0
        %1928 = vmatprep.subr.mxu0 0.0
        %1929 = vmatpush1.msra.mxu0 0.0
        %1930 = vmatprep.subr.mxu0 0.0
        %1931 = vmatpush1.msra.mxu0 0.0
        %1932 = vmatprep.subr.mxu0 0.0
        %1933 = vmatpush1.msra.mxu0 0.0
        %1934 = vmatprep.subr.mxu0 0.0
        %1935 = vmatpush1.msra.mxu0 0.0
        %1936 = vmatprep.subr.mxu0 0.0
        %1937 = vmatpush1.msra.mxu0 0.0
        %1938 = vmatprep.subr.mxu0 0.0
        %1939 = vmatpush1.msra.mxu0 0.0
        %1940 = vmatprep.subr.mxu0 0.0
        %1941 = vmatpush1.msra.mxu0 0.0
        %1942 = vmatprep.subr.mxu0 0.0
        %1943 = vmatpush1.msra.mxu0 0.0
        %1944 = vmatprep.mubr.f32.mxu0 0.0
        %1945 = vmatmul.mubr.f32.gmra.mrb[0].mxu0 %v1807
        %v1946 = vpop.f32.mrb[0].mxu0
        %v1947 = vadd.f32 %v1803, %v1946
        %v1948 = vpop.f32.mrb[0].mxu0
        %v1949 = vadd.f32 %v1803, %v1948
        %1950 = vdwg.mxu0
        %1951 = vmatprep.subr.mxu0 %v1477
        %1952 = vmatpush1.msra.mxu0 %v1476
        %1953 = vmatprep.subr.mxu0 %v1519
        %1954 = vmatpush1.msra.mxu0 %v1518
        %1955 = vmatprep.subr.mxu0 %v1569
        %1956 = vmatpush1.msra.mxu0 %v1568
        %1957 = vmatprep.subr.mxu0 %v1611
        %1958 = vmatpush1.msra.mxu0 %v1610
        %1959 = vmatprep.subr.mxu0 %v903
        %1960 = vmatpush1.msra.mxu0 %v901
        %1961 = vmatprep.subr.mxu0 %v1653
        %1962 = vmatpush1.msra.mxu0 %v1652
        %1963 = vmatprep.subr.mxu0 %v1703
        %1964 = vmatpush1.msra.mxu0 %v1702
        %1965 = vmatprep.subr.mxu0 %v1745
        %1966 = vmatpush1.msra.mxu0 %v1744
        %1967 = vmatprep.subr.mxu0 %v1795
        %1968 = vmatpush1.msra.mxu0 %v1794
        %1969 = vmatprep.subr.mxu0 0.0
        %1970 = vmatpush1.msra.mxu0 0.0
        %1971 = vmatprep.subr.mxu0 0.0
        %1972 = vmatpush1.msra.mxu0 0.0
        %1973 = vmatprep.subr.mxu0 0.0
        %1974 = vmatpush1.msra.mxu0 0.0
        %1975 = vmatprep.subr.mxu0 0.0
        %1976 = vmatpush1.msra.mxu0 0.0
        %1977 = vmatprep.subr.mxu0 0.0
        %1978 = vmatpush1.msra.mxu0 0.0
        %1979 = vmatprep.subr.mxu0 0.0
        %1980 = vmatpush1.msra.mxu0 0.0
        %1981 = vmatprep.subr.mxu0 0.0
        %1982 = vmatpush1.msra.mxu0 0.0
        %1983 = vmatprep.subr.mxu0 0.0
        %1984 = vmatpush1.msra.mxu0 0.0
        %1985 = vmatprep.subr.mxu0 0.0
        %1986 = vmatpush1.msra.mxu0 0.0
        %1987 = vmatprep.subr.mxu0 0.0
        %1988 = vmatpush1.msra.mxu0 0.0
        %1989 = vmatprep.subr.mxu0 0.0
        %1990 = vmatpush1.msra.mxu0 0.0
        %1991 = vmatprep.subr.mxu0 0.0
        %1992 = vmatpush1.msra.mxu0 0.0
        %1993 = vmatprep.subr.mxu0 0.0
        %1994 = vmatpush1.msra.mxu0 0.0
        %1995 = vmatprep.subr.mxu0 0.0
        %1996 = vmatpush1.msra.mxu0 0.0
        %1997 = vmatprep.subr.mxu0 0.0
        %1998 = vmatpush1.msra.mxu0 0.0
        %1999 = vmatprep.subr.mxu0 0.0
        %2000 = vmatpush1.msra.mxu0 0.0
        %2001 = vmatprep.subr.mxu0 0.0
        %2002 = vmatpush1.msra.mxu0 0.0
        %2003 = vmatprep.subr.mxu0 0.0
        %2004 = vmatpush1.msra.mxu0 0.0
        %2005 = vmatprep.subr.mxu0 0.0
        %2006 = vmatpush1.msra.mxu0 0.0
        %2007 = vmatprep.subr.mxu0 0.0
        %2008 = vmatpush1.msra.mxu0 0.0
        %2009 = vmatprep.subr.mxu0 0.0
        %2010 = vmatpush1.msra.mxu0 0.0
        %2011 = vmatprep.subr.mxu0 0.0
        %2012 = vmatpush1.msra.mxu0 0.0
        %2013 = vmatprep.subr.mxu0 0.0
        %2014 = vmatpush1.msra.mxu0 0.0
        %2015 = vmatprep.mubr.f32.mxu0 0.0
        %2016 = vmatmul.mubr.f32.gmra.mrb[0].mxu0 %v1807
        %v2017 = vpop.f32.mrb[0].mxu0
        %v2018 = vadd.f32 %v1803, %v2017
        %v2019 = vpop.f32.mrb[0].mxu0
        %v2020 = vadd.f32 %v1803, %v2019
        %2021 = vdwg.mxu0
        %2022 = vmatprep.subr.mxu0 %v1479
        %2023 = vmatpush1.msra.mxu0 %v1478
        %2024 = vmatprep.subr.mxu0 %v1521
        %2025 = vmatpush1.msra.mxu0 %v1520
        %2026 = vmatprep.subr.mxu0 %v1571
        %2027 = vmatpush1.msra.mxu0 %v1570
        %2028 = vmatprep.subr.mxu0 %v1613
        %2029 = vmatpush1.msra.mxu0 %v1612
        %2030 = vmatprep.subr.mxu0 %v980
        %2031 = vmatpush1.msra.mxu0 %v978
        %2032 = vmatprep.subr.mxu0 %v1655
        %2033 = vmatpush1.msra.mxu0 %v1654
        %2034 = vmatprep.subr.mxu0 %v1705
        %2035 = vmatpush1.msra.mxu0 %v1704
        %2036 = vmatprep.subr.mxu0 %v1747
        %2037 = vmatpush1.msra.mxu0 %v1746
        %2038 = vmatprep.subr.mxu0 %v1797
        %2039 = vmatpush1.msra.mxu0 %v1796
        %2040 = vmatprep.subr.mxu0 0.0
        %2041 = vmatpush1.msra.mxu0 0.0
        %2042 = vmatprep.subr.mxu0 0.0
        %2043 = vmatpush1.msra.mxu0 0.0
        %2044 = vmatprep.subr.mxu0 0.0
        %2045 = vmatpush1.msra.mxu0 0.0
        %2046 = vmatprep.subr.mxu0 0.0
        %2047 = vmatpush1.msra.mxu0 0.0
        %2048 = vmatprep.subr.mxu0 0.0
        %2049 = vmatpush1.msra.mxu0 0.0
        %2050 = vmatprep.subr.mxu0 0.0
        %2051 = vmatpush1.msra.mxu0 0.0
        %2052 = vmatprep.subr.mxu0 0.0
        %2053 = vmatpush1.msra.mxu0 0.0
        %2054 = vmatprep.subr.mxu0 0.0
        %2055 = vmatpush1.msra.mxu0 0.0
        %2056 = vmatprep.subr.mxu0 0.0
        %2057 = vmatpush1.msra.mxu0 0.0
        %2058 = vmatprep.subr.mxu0 0.0
        %2059 = vmatpush1.msra.mxu0 0.0
        %2060 = vmatprep.subr.mxu0 0.0
        %2061 = vmatpush1.msra.mxu0 0.0
        %2062 = vmatprep.subr.mxu0 0.0
        %2063 = vmatpush1.msra.mxu0 0.0
        %2064 = vmatprep.subr.mxu0 0.0
        %2065 = vmatpush1.msra.mxu0 0.0
        %2066 = vmatprep.subr.mxu0 0.0
        %2067 = vmatpush1.msra.mxu0 0.0
        %2068 = vmatprep.subr.mxu0 0.0
        %2069 = vmatpush1.msra.mxu0 0.0
        %2070 = vmatprep.subr.mxu0 0.0
        %2071 = vmatpush1.msra.mxu0 0.0
        %2072 = vmatprep.subr.mxu0 0.0
        %2073 = vmatpush1.msra.mxu0 0.0
        %2074 = vmatprep.subr.mxu0 0.0
        %2075 = vmatpush1.msra.mxu0 0.0
        %2076 = vmatprep.subr.mxu0 0.0
        %2077 = vmatpush1.msra.mxu0 0.0
        %2078 = vmatprep.subr.mxu0 0.0
        %2079 = vmatpush1.msra.mxu0 0.0
        %2080 = vmatprep.subr.mxu0 0.0
        %2081 = vmatpush1.msra.mxu0 0.0
        %2082 = vmatprep.subr.mxu0 0.0
        %2083 = vmatpush1.msra.mxu0 0.0
        %2084 = vmatprep.subr.mxu0 0.0
        %2085 = vmatpush1.msra.mxu0 0.0
        %2086 = vmatprep.mubr.f32.mxu0 0.0
        %2087 = vmatmul.mubr.f32.gmra.mrb[0].mxu0 %v1807
        %v2088 = vpop.f32.mrb[0].mxu0
        %v2089 = vadd.f32 %v1803, %v2088
        %v2090 = vpop.f32.mrb[0].mxu0
        %v2091 = vadd.f32 %v1803, %v2090
        %2092 = vdwg.mxu0
        %2093 = vst [vmem:[%s393] sm:$0xff] %v1876
        %2094 = vst [vmem:[%s393 + $0x8] sm:$0xff] %v1878
        %2095 = vst [vmem:[%s393 + $0x10] sm:$0xff] %v1947
        %2096 = vst [vmem:[%s393 + $0x18] sm:$0xff] %v1949
        %2097 = vst [vmem:[%s393 + $0x20] sm:$0xff] %v2018
        %2098 = vst [vmem:[%s393 + $0x28] sm:$0xff] %v2020
        %2099 = vst [vmem:[%s393 + $0x30] sm:$0xff] %v2089
        %2100 = vst [vmem:[%s393 + $0x38] sm:$0xff] %v2091
        %v2101 = vadd.f32 %v1876, %v1878
        %v2102 = vadd.f32 %v2101, %v1947
        %v2103 = vadd.f32 %v2102, %v1949
        %v2104 = vadd.f32 %v2103, %v2018
        %v2105 = vadd.f32 %v2104, %v2020
        %v2106 = vadd.f32 %v2105, %v2089
        %v2107 = vadd.f32 %v2106, %v2091
        %2108 = vadd.xlane.f32.xlu0 %v2107
        %v2109 = vpop.xlane.xlu0 %2108
        %v2110 = vmul.f32 %v1876, %v1876
        %v2111 = vmul.f32 %v1878, %v1878
        %v2112 = vmul.f32 %v1947, %v1947
        %v2113 = vmul.f32 %v1949, %v1949
        %v2114 = vmul.f32 %v2018, %v2018
        %v2115 = vmul.f32 %v2020, %v2020
        %v2116 = vmul.f32 %v2089, %v2089
        %v2117 = vmul.f32 %v2091, %v2091
        %v2118 = vadd.f32 %v2110, %v2111
        %v2119 = vadd.f32 %v2118, %v2112
        %v2120 = vadd.f32 %v2119, %v2113
        %v2121 = vadd.f32 %v2120, %v2114
        %v2122 = vadd.f32 %v2121, %v2115
        %v2123 = vadd.f32 %v2122, %v2116
        %v2124 = vadd.f32 %v2123, %v2117
        %2125 = vadd.xlane.f32.xlu0 %v2124
        %v2126 = vpop.xlane.xlu0 %2125
        %v2127 = vsel %vm1589, %v2109, %v2126
        %vm2128 = vcmask 15360
        %2129 = vst.msk [vmem:[%s397] sm:$0xff] %vm2128, %v2127
        %p2130 = scmp.lt.s32.totalorder %s23, 1
        %s2131 = scalar_select %p2130, %s23, 1
        %s2132 = smul.addr %s2131, 8
        %s2133 = smul.addr %s2132, 8
        %s2134 = scalar_lea.vmem %s8, %s2133
        %p2135 = scmp.lt.s32.totalorder %s23, 1
        %s2136 = scalar_select %p2135, %s23, 1
        %s2137 = smul.addr %s2136, 8
        %s2138 = smul.addr %s2137, 8
        %s2139 = scalar_lea.vmem %s9, %s2138
        %p2140 = scmp.lt.s32.totalorder %s23, 1
        %s2141 = scalar_select %p2140, %s23, 1
        %s2142 = smul.addr %s2141, 8
        %s2143 = scalar_lea.vmem %s10, %s2142
        // Predicated region
        $region57: #{gblock_up_forward.4} parent=51 // pred_check
          %p2144 = pneg %p214
        $region58: #{gblock_up_forward.4} parent=51 // pred_check_branch
          %2146 = sbr.rel (%p2144) target = $region60
        $region59: #{gblock_up_forward.4} parent=51 // pred_region
          _
        $region60: #{gblock_up_forward.4} parent=51 // pred_fallthru
          _
        // Predicated region
        $region61: #{gblock_up_forward.4} parent=51 // pred_check
          %p2147 = pneg %p240
        $region62: #{gblock_up_forward.4} parent=51 // pred_check_branch
          %2149 = sbr.rel (%p2147) target = $region64
        $region63: #{gblock_up_forward.4} parent=51 // pred_region
          _
        $region64: #{gblock_up_forward.4} parent=51 // pred_fallthru
          _
        // Predicated region
        $region65: #{gblock_up_forward.4} parent=51 // pred_check
          %p2150 = pneg %p266
        $region66: #{gblock_up_forward.4} parent=51 // pred_check_branch
          %2152 = sbr.rel (%p2150) target = $region68
        $region67: #{gblock_up_forward.4} parent=51 // pred_region
          _
        $region68: #{gblock_up_forward.4} parent=51 // pred_fallthru
          _
      $region52: #{gblock_up_forward.4} parent=5 // pred_fallthru
        _
      %p2153 = scmp.le.s32.totalorder 2, %s18
      // Predicated region
      $region69: #{gblock_up_forward.4} parent=5 // pred_check
        %p2154 = pneg %p2153
      $region70: #{gblock_up_forward.4} parent=5 // pred_check_branch
        %2156 = sbr.rel (%p2154) target = $region72
      $region71: #{gblock_up_forward.4} parent=5 // pred_region
        %s2157 = ssub.s32 %s18, 2
        // Predicated region
        $region73: #{gblock_up_forward.4} parent=71 // pred_check
          %p2158 = pneg %p220
        $region74: #{gblock_up_forward.4} parent=71 // pred_check_branch
          %2160 = sbr.rel (%p2158) target = $region76
        $region75: #{gblock_up_forward.4} parent=71 // pred_region
          %p2161 = scmp.lt.s32.totalorder %s24, 1
          %s2162 = scalar_select %p2161, %s24, 1
          %s2163 = smul.addr %s2162, 8
          %s2164 = smul.addr %s2163, 8
          %s2165 = scalar_lea.vmem %s8, %s2164
        $region76: #{gblock_up_forward.4} parent=71 // pred_fallthru
          _
        // Predicated region
        $region77: #{gblock_up_forward.4} parent=71 // pred_check
          %p2166 = pneg %p246
        $region78: #{gblock_up_forward.4} parent=71 // pred_check_branch
          %2168 = sbr.rel (%p2166) target = $region80
        $region79: #{gblock_up_forward.4} parent=71 // pred_region
          %p2169 = scmp.lt.s32.totalorder %s24, 1
          %s2170 = scalar_select %p2169, %s24, 1
          %s2171 = smul.addr %s2170, 8
          %s2172 = smul.addr %s2171, 8
          %s2173 = scalar_lea.vmem %s9, %s2172
        $region80: #{gblock_up_forward.4} parent=71 // pred_fallthru
          _
        // Predicated region
        $region81: #{gblock_up_forward.4} parent=71 // pred_check
          %p2174 = pneg %p272
        $region82: #{gblock_up_forward.4} parent=71 // pred_check_branch
          %2176 = sbr.rel (%p2174) target = $region84
        $region83: #{gblock_up_forward.4} parent=71 // pred_region
          %p2177 = scmp.lt.s32.totalorder %s24, 1
          %s2178 = scalar_select %p2177, %s24, 1
          %s2179 = smul.addr %s2178, 8
          %s2180 = scalar_lea.vmem %s10, %s2179
        $region84: #{gblock_up_forward.4} parent=71 // pred_fallthru
          _
      $region72: #{gblock_up_forward.4} parent=5 // pred_fallthru
        _
    $region6: #{gblock_up_forward.4} parent=1 // loop_footer
      %s22 = sadd.s32 1, %s18
    $region7: #{gblock_up_forward.4} parent=1 // loop_footer_branch
      %17 = sbr.rel target = $region3
    $region8: #{gblock_up_forward.4} parent=1 // loop_exit
      _
    %2181 = vsyncpa [#allocation3], 1
    %s2182 = scalar_lea.sflag [#allocation3], 1
    %2183 = vsyncpa %s2182, 1

// kernel: gblock_up_forward.5
$region0: #{gblock_up_forward.5}
  #allocation0 [shape = 'u32[]', space=smem, size = 0x4, offset = 0x4, fixed_abs, tag = 'smem constant byte address 0x4 - core index']
  #allocation1 [shape = 'u32[144,128]{1,0:T(1,128)}', space=vmem, size = 0x12000, scoped, tag = 'internal scratch']
  %s0 = inlined_call_operand.vmem [shape: f32[2,8,1024], index: 0, kind: input, shape index: {}]
  %s1 = inlined_call_operand.vmem [shape: f32[8,1], index: 1, kind: input, shape index: {}]
  %s2 = inlined_call_operand.vmem [shape: f32[8,1], index: 2, kind: input, shape index: {}]
  %s3 = inlined_call_operand.vmem [shape: f32[8,72], index: 3, kind: input, shape index: {}]
  %s4 = inlined_call_operand.vmem [shape: f32[8,1], index: 4, kind: input, shape index: {}]
  %s5 = inlined_call_operand.vmem [shape: f32[2,8,1024], index: 5, kind: input, shape index: {}, may-alias: {5,6}]
  %s6 = inlined_call_operand.vmem [shape: f32[2,8,1024], index: 6, kind: output, shape index: {}, may-alias: {5,6}]
  %s7 = sld [smem:[#allocation0]]
  $region57: #{gblock_up_forward.5} parent=0
    _
  %s9 = ssub.s32 1, %s7
  %s10 = scalar_select 0, %s9, %s7
  loop: start=0, step=1, limit=4
  $region2: #{gblock_up_forward.5} parent=0 // loop_pre_header
    _
  $region3: #{gblock_up_forward.5} parent=0 // loop_header
    %s12 = sphi 0, %s16
    %p13 = scmp.ge.s32.totalorder %s12, 4
    %s22 = sphi 0, %s24
    %s25 = sphi 0, %s22
    %s26 = sphi 0, %s25
    %s42 = sphi 0, %s26
    %s46 = sphi 0, %s46
    %s48 = sphi 0, %s46
    %s49 = sphi 0, %s48
    %s63 = sphi 0, %s49
    %s67 = sphi 0, %s67
    %s69 = sphi 0, %s67
    %s70 = sphi 0, %s69
    %s84 = sphi 0, %s70
    %s88 = sphi 0, %s88
    %s90 = sphi 0, %s88
    %s91 = sphi 0, %s90
    %s105 = sphi 0, %s91
    %s109 = sphi 0, %s109
    %s111 = sphi 0, %s109
    %s112 = sphi 0, %s111
    %s126 = sphi 0, %s112
    %s132 = sphi 0, %s134
    %s135 = sphi 0, %s132
    %s136 = sphi 0, %s135
    %s152 = sphi 0, %s136
    %s158 = sphi 0, %s160
    %s161 = sphi 0, %s158
    %s162 = sphi 0, %s161
    %s178 = sphi 0, %s162
  $region4: #{gblock_up_forward.5} parent=0 // loop_header_branch
    %15 = sbr.rel (%p13) target = $region8
  $region5: #{gblock_up_forward.5} parent=0 // loop_body
    %s17 = ssub.s32 %s12, 1
    %s18 = ssub.s32 %s12, 2
    %s19 = sadd.s32 %s12, 1
    %s20 = ssub.s32 %s12, %s19
    %p21 = scmp.eq.s32.totalorder %s20, 0
    %s23 = sadd.s32 %s22, 1
    %s24 = scalar_select %p21, %s22, %s23
    %p27 = pneg %p21
    %p28 = scmp.eq.s32.totalorder %s12, 1
    %p29 = por %p27, %p28
    %p30 = scmp.ne.s32.totalorder %s22, %s25
    %p31 = scmp.eq.s32.totalorder %s12, 0
    %p32 = por %p30, %p31
    %p33 = scmp.ne.s32.totalorder %s22, %s25
    %p34 = scmp.eq.s32.totalorder %s17, 1
    %p35 = por %p33, %p34
    %p36 = scmp.ne.s32.totalorder %s25, %s26
    %p37 = scmp.eq.s32.totalorder %s17, 0
    %p38 = por %p36, %p37
    %p39 = scmp.ne.s32.totalorder %s25, %s26
    %p40 = scmp.eq.s32.totalorder %s18, 1
    %p41 = por %p39, %p40
    %p43 = scmp.ne.s32.totalorder %s26, %s42
    %p44 = scmp.eq.s32.totalorder %s18, 0
    %p45 = por %p43, %p44
    %s47 = sadd.s32 %s46, 1
    %p50 = scmp.eq.s32.totalorder %s12, 1
    %p51 = scmp.ne.s32.totalorder %s46, %s48
    %p52 = scmp.eq.s32.totalorder %s12, 0
    %p53 = por %p51, %p52
    %p54 = scmp.ne.s32.totalorder %s46, %s48
    %p55 = scmp.eq.s32.totalorder %s17, 1
    %p56 = por %p54, %p55
    %p57 = scmp.ne.s32.totalorder %s48, %s49
    %p58 = scmp.eq.s32.totalorder %s17, 0
    %p59 = por %p57, %p58
    %p60 = scmp.ne.s32.totalorder %s48, %s49
    %p61 = scmp.eq.s32.totalorder %s18, 1
    %p62 = por %p60, %p61
    %p64 = scmp.ne.s32.totalorder %s49, %s63
    %p65 = scmp.eq.s32.totalorder %s18, 0
    %p66 = por %p64, %p65
    %s68 = sadd.s32 %s67, 1
    %p71 = scmp.eq.s32.totalorder %s12, 1
    %p72 = scmp.ne.s32.totalorder %s67, %s69
    %p73 = scmp.eq.s32.totalorder %s12, 0
    %p74 = por %p72, %p73
    %p75 = scmp.ne.s32.totalorder %s67, %s69
    %p76 = scmp.eq.s32.totalorder %s17, 1
    %p77 = por %p75, %p76
    %p78 = scmp.ne.s32.totalorder %s69, %s70
    %p79 = scmp.eq.s32.totalorder %s17, 0
    %p80 = por %p78, %p79
    %p81 = scmp.ne.s32.totalorder %s69, %s70
    %p82 = scmp.eq.s32.totalorder %s18, 1
    %p83 = por %p81, %p82
    %p85 = scmp.ne.s32.totalorder %s70, %s84
    %p86 = scmp.eq.s32.totalorder %s18, 0
    %p87 = por %p85, %p86
    %s89 = sadd.s32 %s88, 1
    %p92 = scmp.eq.s32.totalorder %s12, 1
    %p93 = scmp.ne.s32.totalorder %s88, %s90
    %p94 = scmp.eq.s32.totalorder %s12, 0
    %p95 = por %p93, %p94
    %p96 = scmp.ne.s32.totalorder %s88, %s90
    %p97 = scmp.eq.s32.totalorder %s17, 1
    %p98 = por %p96, %p97
    %p99 = scmp.ne.s32.totalorder %s90, %s91
    %p100 = scmp.eq.s32.totalorder %s17, 0
    %p101 = por %p99, %p100
    %p102 = scmp.ne.s32.totalorder %s90, %s91
    %p103 = scmp.eq.s32.totalorder %s18, 1
    %p104 = por %p102, %p103
    %p106 = scmp.ne.s32.totalorder %s91, %s105
    %p107 = scmp.eq.s32.totalorder %s18, 0
    %p108 = por %p106, %p107
    %s110 = sadd.s32 %s109, 1
    %p113 = scmp.eq.s32.totalorder %s12, 1
    %p114 = scmp.ne.s32.totalorder %s109, %s111
    %p115 = scmp.eq.s32.totalorder %s12, 0
    %p116 = por %p114, %p115
    %p117 = scmp.ne.s32.totalorder %s109, %s111
    %p118 = scmp.eq.s32.totalorder %s17, 1
    %p119 = por %p117, %p118
    %p120 = scmp.ne.s32.totalorder %s111, %s112
    %p121 = scmp.eq.s32.totalorder %s17, 0
    %p122 = por %p120, %p121
    %p123 = scmp.ne.s32.totalorder %s111, %s112
    %p124 = scmp.eq.s32.totalorder %s18, 1
    %p125 = por %p123, %p124
    %p127 = scmp.ne.s32.totalorder %s112, %s126
    %p128 = scmp.eq.s32.totalorder %s18, 0
    %p129 = por %p127, %p128
    %s130 = ssub.s32 %s12, %s19
    %p131 = scmp.eq.s32.totalorder %s130, 0
    %s133 = sadd.s32 %s132, 1
    %s134 = scalar_select %p131, %s132, %s133
    %p137 = pneg %p131
    %p138 = scmp.eq.s32.totalorder %s12, 1
    %p139 = por %p137, %p138
    %p140 = scmp.ne.s32.totalorder %s132, %s135
    %p141 = scmp.eq.s32.totalorder %s12, 0
    %p142 = por %p140, %p141
    %p143 = scmp.ne.s32.totalorder %s132, %s135
    %p144 = scmp.eq.s32.totalorder %s17, 1
    %p145 = por %p143, %p144
    %p146 = scmp.ne.s32.totalorder %s135, %s136
    %p147 = scmp.eq.s32.totalorder %s17, 0
    %p148 = por %p146, %p147
    %p149 = scmp.ne.s32.totalorder %s135, %s136
    %p150 = scmp.eq.s32.totalorder %s18, 1
    %p151 = por %p149, %p150
    %p153 = scmp.ne.s32.totalorder %s136, %s152
    %p154 = scmp.eq.s32.totalorder %s18, 0
    %p155 = por %p153, %p154
    %s156 = ssub.s32 %s12, %s19
    %p157 = scmp.eq.s32.totalorder %s156, 0
    %s159 = sadd.s32 %s158, 1
    %s160 = scalar_select %p157, %s158, %s159
    %p163 = pneg %p157
    %p164 = scmp.eq.s32.totalorder %s12, 1
    %p165 = por %p163, %p164
    %p166 = scmp.ne.s32.totalorder %s158, %s161
    %p167 = scmp.eq.s32.totalorder %s12, 0
    %p168 = por %p166, %p167
    %p169 = scmp.ne.s32.totalorder %s158, %s161
    %p170 = scmp.eq.s32.totalorder %s17, 1
    %p171 = por %p169, %p170
    %p172 = scmp.ne.s32.totalorder %s161, %s162
    %p173 = scmp.eq.s32.totalorder %s17, 0
    %p174 = por %p172, %p173
    %p175 = scmp.ne.s32.totalorder %s161, %s162
    %p176 = scmp.eq.s32.totalorder %s18, 1
    %p177 = por %p175, %p176
    %p179 = scmp.ne.s32.totalorder %s162, %s178
    %p180 = scmp.eq.s32.totalorder %s18, 0
    %p181 = por %p179, %p180
    %p182 = scmp.le.s32.totalorder 1, %s12
    %p183 = scmp.lt.s32.totalorder %s12, 3
    %p184 = pnand %p182, %p183
    %p185 = pneg %p184
    // Predicated region
    $region9: #{gblock_up_forward.5} parent=5 // pred_check
      _
    $region10: #{gblock_up_forward.5} parent=5 // pred_check_branch
      %187 = sbr.rel (%p184) target = $region12
    $region11: #{gblock_up_forward.5} parent=5 // pred_region
      %s188 = ssub.s32 %s12, 1
      // Predicated region
      $region13: #{gblock_up_forward.5} parent=11 // pred_check
        %p189 = pneg %p59
      $region14: #{gblock_up_forward.5} parent=11 // pred_check_branch
        %191 = sbr.rel (%p189) target = $region16
      $region15: #{gblock_up_forward.5} parent=11 // pred_region
        _
      $region16: #{gblock_up_forward.5} parent=11 // pred_fallthru
        _
      // Predicated region
      $region17: #{gblock_up_forward.5} parent=11 // pred_check
        %p192 = pneg %p80
      $region18: #{gblock_up_forward.5} parent=11 // pred_check_branch
        %194 = sbr.rel (%p192) target = $region20
      $region19: #{gblock_up_forward.5} parent=11 // pred_region
        _
      $region20: #{gblock_up_forward.5} parent=11 // pred_fallthru
        _
      // Predicated region
      $region21: #{gblock_up_forward.5} parent=11 // pred_check
        %p195 = pneg %p101
      $region22: #{gblock_up_forward.5} parent=11 // pred_check_branch
        %197 = sbr.rel (%p195) target = $region24
      $region23: #{gblock_up_forward.5} parent=11 // pred_region
        _
      $region24: #{gblock_up_forward.5} parent=11 // pred_fallthru
        _
      // Predicated region
      $region25: #{gblock_up_forward.5} parent=11 // pred_check
        %p198 = pneg %p122
      $region26: #{gblock_up_forward.5} parent=11 // pred_check_branch
        %200 = sbr.rel (%p198) target = $region28
      $region27: #{gblock_up_forward.5} parent=11 // pred_region
        _
      $region28: #{gblock_up_forward.5} parent=11 // pred_fallthru
        _
    $region12: #{gblock_up_forward.5} parent=5 // pred_fallthru
      _
    %p201 = scmp.lt.s32.totalorder %s12, 2
    // Predicated region
    $region29: #{gblock_up_forward.5} parent=5 // pred_check
      %p202 = pneg %p201
    $region30: #{gblock_up_forward.5} parent=5 // pred_check_branch
      %204 = sbr.rel (%p202) target = $region32
    $region31: #{gblock_up_forward.5} parent=5 // pred_region
      // Predicated region
      $region33: #{gblock_up_forward.5} parent=31 // pred_check
        %p205 = pneg %p32
      $region34: #{gblock_up_forward.5} parent=31 // pred_check_branch
        %207 = sbr.rel (%p205) target = $region36
      $region35: #{gblock_up_forward.5} parent=31 // pred_region
        %p208 = scmp.lt.s32.totalorder %s12, 1
        %s209 = scalar_select %p208, %s12, 1
        %s210 = smul.addr %s209, 8
        %s211 = smul.addr %s210, 8
        %s212 = scalar_lea.vmem %s0, %s211
      $region36: #{gblock_up_forward.5} parent=31 // pred_fallthru
        _
      // Predicated region
      $region37: #{gblock_up_forward.5} parent=31 // pred_check
        %p213 = pneg %p142
      $region38: #{gblock_up_forward.5} parent=31 // pred_check_branch
        %215 = sbr.rel (%p213) target = $region40
      $region39: #{gblock_up_forward.5} parent=31 // pred_region
        %p216 = scmp.lt.s32.totalorder %s12, 1
        %s217 = scalar_select %p216, %s12, 1
        %s218 = smul.addr %s217, 8
        %s219 = smul.addr %s218, 8
        %s220 = scalar_lea.vmem %s5, %s219
      $region40: #{gblock_up_forward.5} parent=31 // pred_fallthru
        _
    $region32: #{gblock_up_forward.5} parent=5 // pred_fallthru
      _
    %p221 = scmp.le.s32.totalorder 1, %s12
    %p222 = scmp.lt.s32.totalorder %s12, 3
    %p223 = pnand %p221, %p222
    %p224 = pneg %p223
    // Predicated region
    $region41: #{gblock_up_forward.5} parent=5 // pred_check
      _
    $region42: #{gblock_up_forward.5} parent=5 // pred_check_branch
      %226 = sbr.rel (%p223) target = $region44
    $region43: #{gblock_up_forward.5} parent=5 // pred_region
      %s227 = ssub.s32 %s12, 1
      %p228 = scmp.lt.s32.totalorder %s17, 1
      %s229 = scalar_select %p228, %s17, 1
      %s230 = smul.addr %s229, 8
      %s231 = smul.addr %s230, 8
      %s232 = scalar_lea.vmem %s0, %s231
      %p233 = pneg %p38
      %p234 = pneg %p35
      %p235 = pneg %p59
      %p236 = pneg %p56
      %p237 = pneg %p80
      %p238 = pneg %p77
      %p239 = pneg %p101
      %p240 = pneg %p98
      %p241 = pneg %p122
      %p242 = pneg %p119
      %p243 = scmp.lt.s32.totalorder %s17, 1
      %s244 = scalar_select %p243, %s17, 1
      %s245 = smul.addr %s244, 8
      %s246 = smul.addr %s245, 8
      %s247 = scalar_lea.vmem %s5, %s246
      %p248 = pneg %p148
      %p249 = pneg %p145
      %p250 = pneg %p174
      %p251 = pneg %p171
      %p252 = scmp.lt.s32.totalorder %s17, 1
      %s253 = scalar_select %p252, %s17, 1
      %s254 = smul.addr %s253, 8
      %s255 = smul.addr %s254, 8
      %s256 = scalar_lea.vmem %s6, %s255
      %p257 = scmp.lt.s32.totalorder %s17, 1
      %s258 = scalar_select %p257, %s17, 1
      %s259 = smul.addr %s258, 8
      %s260 = smul.addr %s259, 8
      %s261 = scalar_lea.vmem %s0, %s260
      %p262 = scmp.lt.s32.totalorder %s17, 1
      %s263 = scalar_select %p262, %s17, 1
      %s264 = smul.addr %s263, 8
      %s265 = smul.addr %s264, 8
      %s266 = scalar_lea.vmem %s5, %s265
      %p267 = scmp.lt.s32.totalorder %s17, 1
      %s268 = scalar_select %p267, %s17, 1
      %s269 = smul.addr %s268, 8
      %s270 = smul.addr %s269, 8
      %s271 = scalar_lea.vmem %s6, %s270
      %v272 = vld [vmem:[%s261] sm:$0xff]
      %v273 = vld [vmem:[%s261 + $0x8] sm:$0xff]
      %v274 = vld [vmem:[%s261 + $0x10] sm:$0xff]
      %v275 = vld [vmem:[%s261 + $0x18] sm:$0xff]
      %v276 = vld [vmem:[%s261 + $0x20] sm:$0xff]
      %v277 = vld [vmem:[%s261 + $0x28] sm:$0xff]
      %v278 = vld [vmem:[%s261 + $0x30] sm:$0xff]
      %v279 = vld [vmem:[%s261 + $0x38] sm:$0xff]
      %v280 = vld [vmem:[%s1] sm:$0xff]
      %282 = vset.pattern.permute.xlu0 0
      %283 = vperm.xlu0 %282, %v280
      %v284 = vpop.permute.xlu0 %283
      %v286 = vmul.f32 %v272, %v284
      %v287 = vmul.f32 %v273, %v284
      %v288 = vmul.f32 %v274, %v284
      %v289 = vmul.f32 %v275, %v284
      %v290 = vmul.f32 %v276, %v284
      %v291 = vmul.f32 %v277, %v284
      %v292 = vmul.f32 %v278, %v284
      %v293 = vmul.f32 %v279, %v284
      %v294 = vld [vmem:[%s2] sm:$0xff]
      %296 = vset.pattern.permute.xlu0 0
      %297 = vperm.xlu0 %296, %v294
      %v298 = vpop.permute.xlu0 %297
      %v300 = vadd.f32 %v286, %v298
      %v301 = vadd.f32 %v287, %v298
      %v302 = vadd.f32 %v288, %v298
      %v303 = vadd.f32 %v289, %v298
      %v304 = vadd.f32 %v290, %v298
      %v305 = vadd.f32 %v291, %v298
      %v306 = vadd.f32 %v292, %v298
      %v307 = vadd.f32 %v293, %v298
      %v308 = vmax.f32 %v300, 0.0
      %v309 = vmax.f32 %v301, 0.0
      %v310 = vmax.f32 %v302, 0.0
      %v311 = vmax.f32 %v303, 0.0
      %v312 = vmax.f32 %v304, 0.0
      %v313 = vmax.f32 %v305, 0.0
      %v314 = vmax.f32 %v306, 0.0
      %v315 = vmax.f32 %v307, 0.0
      %v316 = vlaneseq
      %v317 = vand.u32 %v316, 127
      %v318 = vadd.s32 %v317, 128
      %v319 = vadd.s32 %v317, 256
      %v320 = vadd.s32 %v317, 384
      %v321 = vadd.s32 %v317, 512
      %v322 = vadd.s32 %v317, 640
      %v323 = vadd.s32 %v317, 768
      %v324 = vadd.s32 %v317, 896
      %vm325 = vcmp.lt.s32.totalorder %v317, 0
      %v326 = vsub.s32 0, %v317
      %v327 = vsel %vm325, %v326, %v317
      %v328 = vshrl.u32 %v327, 5
      %v329 = vand.u32 %v327, 31
      %v330 = vsub.s32 0, %v329
      %v331 = vsel %vm325, %v330, %v329
      %vm332 = vcmp.lt.s32.totalorder %v318, 0
      %v333 = vsub.s32 0, %v318
      %v334 = vsel %vm332, %v333, %v318
      %v335 = vshrl.u32 %v334, 5
      %v336 = vand.u32 %v334, 31
      %v337 = vsub.s32 0, %v336
      %v338 = vsel %vm332, %v337, %v336
      %vm339 = vcmp.lt.s32.totalorder %v319, 0
      %v340 = vsub.s32 0, %v319
      %v341 = vsel %vm339, %v340, %v319
      %v342 = vshrl.u32 %v341, 5
      %v343 = vand.u32 %v341, 31
      %v344 = vsub.s32 0, %v343
      %v345 = vsel %vm339, %v344, %v343
      %vm346 = vcmp.lt.s32.totalorder %v320, 0
      %v347 = vsub.s32 0, %v320
      %v348 = vsel %vm346, %v347, %v320
      %v349 = vshrl.u32 %v348, 5
      %v350 = vand.u32 %v348, 31
      %v351 = vsub.s32 0, %v350
      %v352 = vsel %vm346, %v351, %v350
      %vm353 = vcmp.lt.s32.totalorder %v321, 0
      %v354 = vsub.s32 0, %v321
      %v355 = vsel %vm353, %v354, %v321
      %v356 = vshrl.u32 %v355, 5
      %v357 = vand.u32 %v355, 31
      %v358 = vsub.s32 0, %v357
      %v359 = vsel %vm353, %v358, %v357
      %vm360 = vcmp.lt.s32.totalorder %v322, 0
      %v361 = vsub.s32 0, %v322
      %v362 = vsel %vm360, %v361, %v322
      %v363 = vshrl.u32 %v362, 5
      %v364 = vand.u32 %v362, 31
      %v365 = vsub.s32 0, %v364
      %v366 = vsel %vm360, %v365, %v364
      %vm367 = vcmp.lt.s32.totalorder %v323, 0
      %v368 = vsub.s32 0, %v323
      %v369 = vsel %vm367, %v368, %v323
      %v370 = vshrl.u32 %v369, 5
      %v371 = vand.u32 %v369, 31
      %v372 = vsub.s32 0, %v371
      %v373 = vsel %vm367, %v372, %v371
      %vm374 = vcmp.lt.s32.totalorder %v324, 0
      %v375 = vsub.s32 0, %v324
      %v376 = vsel %vm374, %v375, %v324
      %v377 = vshrl.u32 %v376, 5
      %v378 = vand.u32 %v376, 31
      %v379 = vsub.s32 0, %v378
      %v380 = vsel %vm374, %v379, %v378
      %vm381 = vcmp.ne.s32.totalorder %v331, 0
      %vm382 = vcmp.ne.s32.totalorder %v338, 0
      %vm383 = vcmp.ne.s32.totalorder %v345, 0
      %vm384 = vcmp.ne.s32.totalorder %v352, 0
      %vm385 = vcmp.ne.s32.totalorder %v359, 0
      %vm386 = vcmp.ne.s32.totalorder %v366, 0
      %vm387 = vcmp.ne.s32.totalorder %v373, 0
      %vm388 = vcmp.ne.s32.totalorder %v380, 0
      %vm389 = vcmp.lt.s32.totalorder %v331, 0
      %vm390 = vcmp.lt.s32.totalorder %v338, 0
      %vm391 = vcmp.lt.s32.totalorder %v345, 0
      %vm392 = vcmp.lt.s32.totalorder %v352, 0
      %vm393 = vcmp.lt.s32.totalorder %v359, 0
      %vm394 = vcmp.lt.s32.totalorder %v366, 0
      %vm395 = vcmp.lt.s32.totalorder %v373, 0
      %vm396 = vcmp.lt.s32.totalorder %v380, 0
      %vm397 = vmand %vm389, %vm381
      %vm398 = vmand %vm390, %vm382
      %vm399 = vmand %vm391, %vm383
      %vm400 = vmand %vm392, %vm384
      %vm401 = vmand %vm393, %vm385
      %vm402 = vmand %vm394, %vm386
      %vm403 = vmand %vm395, %vm387
      %vm404 = vmand %vm396, %vm388
      %v405 = vadd.s32 %v331, 32
      %v406 = vadd.s32 %v338, 32
      %v407 = vadd.s32 %v345, 32
      %v408 = vadd.s32 %v352, 32
      %v409 = vadd.s32 %v359, 32
      %v410 = vadd.s32 %v366, 32
      %v411 = vadd.s32 %v373, 32
      %v412 = vadd.s32 %v380, 32
      %v413 = vsel %vm397, %v405, %v331
      %v414 = vsel %vm398, %v406, %v338
      %v415 = vsel %vm399, %v407, %v345
      %v416 = vsel %vm400, %v408, %v352
      %v417 = vsel %vm401, %v409, %v359
      %v418 = vsel %vm402, %v410, %v366
      %v419 = vsel %vm403, %v411, %v373
      %v420 = vsel %vm404, %v412, %v380
      %vm421 = vcmp.ge.s32.totalorder %v317, 32
      %vm422 = vcmp.ge.s32.totalorder %v318, 32
      %vm423 = vcmp.ge.s32.totalorder %v319, 32
      %vm424 = vcmp.ge.s32.totalorder %v320, 32
      %vm425 = vcmp.ge.s32.totalorder %v321, 32
      %vm426 = vcmp.ge.s32.totalorder %v322, 32
      %vm427 = vcmp.ge.s32.totalorder %v323, 32
      %vm428 = vcmp.ge.s32.totalorder %v324, 32
      %vm429 = vcmp.lt.s32.totalorder %v317, 992
      %vm430 = vcmp.lt.s32.totalorder %v318, 992
      %vm431 = vcmp.lt.s32.totalorder %v319, 992
      %vm432 = vcmp.lt.s32.totalorder %v320, 992
      %vm433 = vcmp.lt.s32.totalorder %v321, 992
      %vm434 = vcmp.lt.s32.totalorder %v322, 992
      %vm435 = vcmp.lt.s32.totalorder %v323, 992
      %vm436 = vcmp.lt.s32.totalorder %v324, 992
      %vm437 = vcmp.ge.s32.totalorder %v413, 1
      %vm438 = vcmp.ge.s32.totalorder %v414, 1
      %vm439 = vcmp.ge.s32.totalorder %v415, 1
      %vm440 = vcmp.ge.s32.totalorder %v416, 1
      %vm441 = vcmp.ge.s32.totalorder %v417, 1
      %vm442 = vcmp.ge.s32.totalorder %v418, 1
      %vm443 = vcmp.ge.s32.totalorder %v419, 1
      %vm444 = vcmp.ge.s32.totalorder %v420, 1
      %vm445 = vcmp.lt.s32.totalorder %v413, 31
      %vm446 = vcmp.lt.s32.totalorder %v414, 31
      %vm447 = vcmp.lt.s32.totalorder %v415, 31
      %vm448 = vcmp.lt.s32.totalorder %v416, 31
      %vm449 = vcmp.lt.s32.totalorder %v417, 31
      %vm450 = vcmp.lt.s32.totalorder %v418, 31
      %vm451 = vcmp.lt.s32.totalorder %v419, 31
      %vm452 = vcmp.lt.s32.totalorder %v420, 31
      %454 = vrot.lane.b32.xlu0 %v315, 33
      %v455 = vpop.permute.xlu0 %454
      %464 = vrot.lane.b32.xlu0 %v308, 33
      %v465 = vpop.permute.xlu0 %464
      %466 = vrot.lane.b32.xlu0 %v309, 33
      %v467 = vpop.permute.xlu0 %466
      %468 = vrot.lane.b32.xlu0 %v310, 33
      %v469 = vpop.permute.xlu0 %468
      %470 = vrot.lane.b32.xlu0 %v311, 33
      %v471 = vpop.permute.xlu0 %470
      %472 = vrot.lane.b32.xlu0 %v312, 33
      %v473 = vpop.permute.xlu0 %472
      %474 = vrot.lane.b32.xlu0 %v313, 33
      %v475 = vpop.permute.xlu0 %474
      %476 = vrot.lane.b32.xlu0 %v314, 33
      %v477 = vpop.permute.xlu0 %476
      %vm478 = vcmask 269312
      %v479 = vsel %vm478, %v465, %v467
      %v480 = vsel %vm478, %v467, %v469
      %v481 = vsel %vm478, %v469, %v471
      %v482 = vsel %vm478, %v471, %v473
      %v483 = vsel %vm478, %v473, %v475
      %v484 = vsel %vm478, %v475, %v477
      %v485 = vsel %vm478, %v477, %v455
      %v494 = vsel %vm478, %v455, %v465
      %vm495 = vmand %vm421, %vm437
      %vm496 = vmand %vm422, %vm438
      %vm497 = vmand %vm423, %vm439
      %vm498 = vmand %vm424, %vm440
      %vm499 = vmand %vm425, %vm441
      %vm500 = vmand %vm426, %vm442
      %vm501 = vmand %vm427, %vm443
      %vm502 = vmand %vm428, %vm444
      %v503 = vsel %vm495, %v494, 0.0
      %v504 = vsel %vm496, %v479, 0.0
      %v505 = vsel %vm497, %v480, 0.0
      %v506 = vsel %vm498, %v481, 0.0
      %v507 = vsel %vm499, %v482, 0.0
      %v508 = vsel %vm500, %v483, 0.0
      %v509 = vsel %vm501, %v484, 0.0
      %v510 = vsel %vm502, %v485, 0.0
      %511 = vrot.lane.b32.xlu0 %v315, 32
      %v512 = vpop.permute.xlu0 %511
      %514 = vrot.lane.b32.xlu0 %v308, 32
      %v515 = vpop.permute.xlu0 %514
      %516 = vrot.lane.b32.xlu0 %v309, 32
      %v517 = vpop.permute.xlu0 %516
      %518 = vrot.lane.b32.xlu0 %v310, 32
      %v519 = vpop.permute.xlu0 %518
      %520 = vrot.lane.b32.xlu0 %v311, 32
      %v521 = vpop.permute.xlu0 %520
      %522 = vrot.lane.b32.xlu0 %v312, 32
      %v523 = vpop.permute.xlu0 %522
      %524 = vrot.lane.b32.xlu0 %v313, 32
      %v525 = vpop.permute.xlu0 %524
      %526 = vrot.lane.b32.xlu0 %v314, 32
      %v527 = vpop.permute.xlu0 %526
      %vm528 = vcmask 261120
      %v529 = vsel %vm528, %v515, %v517
      %v530 = vsel %vm528, %v517, %v519
      %v531 = vsel %vm528, %v519, %v521
      %v532 = vsel %vm528, %v521, %v523
      %v533 = vsel %vm528, %v523, %v525
      %v534 = vsel %vm528, %v525, %v527
      %v535 = vsel %vm528, %v527, %v512
      %v544 = vsel %vm528, %v512, %v515
      %v545 = vsel %vm421, %v544, 0.0
      %v546 = vsel %vm422, %v529, 0.0
      %v547 = vsel %vm423, %v530, 0.0
      %v548 = vsel %vm424, %v531, 0.0
      %v549 = vsel %vm425, %v532, 0.0
      %v550 = vsel %vm426, %v533, 0.0
      %v551 = vsel %vm427, %v534, 0.0
      %v552 = vsel %vm428, %v535, 0.0
      %553 = vrot.lane.b32.xlu0 %v315, 31
      %v554 = vpop.permute.xlu0 %553
      %556 = vrot.lane.b32.xlu0 %v308, 31
      %v557 = vpop.permute.xlu0 %556
      %558 = vrot.lane.b32.xlu0 %v309, 31
      %v559 = vpop.permute.xlu0 %558
      %560 = vrot.lane.b32.xlu0 %v310, 31
      %v561 = vpop.permute.xlu0 %560
      %562 = vrot.lane.b32.xlu0 %v311, 31
      %v563 = vpop.permute.xlu0 %562
      %564 = vrot.lane.b32.xlu0 %v312, 31
      %v565 = vpop.permute.xlu0 %564
      %566 = vrot.lane.b32.xlu0 %v313, 31
      %v567 = vpop.permute.xlu0 %566
      %568 = vrot.lane.b32.xlu0 %v314, 31
      %v569 = vpop.permute.xlu0 %568
      %vm570 = vcmask 252928
      %v571 = vsel %vm570, %v557, %v559
      %v572 = vsel %vm570, %v559, %v561
      %v573 = vsel %vm570, %v561, %v563
      %v574 = vsel %vm570, %v563, %v565
      %v575 = vsel %vm570, %v565, %v567
      %v576 = vsel %vm570, %v567, %v569
      %v577 = vsel %vm570, %v569, %v554
      %v586 = vsel %vm570, %v554, %v557
      %vm587 = vmand %vm421, %vm445
      %vm588 = vmand %vm422, %vm446
      %vm589 = vmand %vm423, %vm447
      %vm590 = vmand %vm424, %vm448
      %vm591 = vmand %vm425, %vm449
      %vm592 = vmand %vm426, %vm450
      %vm593 = vmand %vm427, %vm451
      %vm594 = vmand %vm428, %vm452
      %v595 = vsel %vm587, %v586, 0.0
      %v596 = vsel %vm588, %v571, 0.0
      %v597 = vsel %vm589, %v572, 0.0
      %v598 = vsel %vm590, %v573, 0.0
      %v599 = vsel %vm591, %v574, 0.0
      %v600 = vsel %vm592, %v575, 0.0
      %v601 = vsel %vm593, %v576, 0.0
      %v602 = vsel %vm594, %v577, 0.0
      %603 = vrot.lane.b32.xlu0 %v315, 1
      %v604 = vpop.permute.xlu0 %603
      %606 = vrot.lane.b32.xlu0 %v308, 1
      %v607 = vpop.permute.xlu0 %606
      %608 = vrot.lane.b32.xlu0 %v309, 1
      %v609 = vpop.permute.xlu0 %608
      %610 = vrot.lane.b32.xlu0 %v310, 1
      %v611 = vpop.permute.xlu0 %610
      %612 = vrot.lane.b32.xlu0 %v311, 1
      %v613 = vpop.permute.xlu0 %612
      %614 = vrot.lane.b32.xlu0 %v312, 1
      %v615 = vpop.permute.xlu0 %614
      %616 = vrot.lane.b32.xlu0 %v313, 1
      %v617 = vpop.permute.xlu0 %616
      %618 = vrot.lane.b32.xlu0 %v314, 1
      %v619 = vpop.permute.xlu0 %618
      %vm620 = vcmask 7168
      %v621 = vsel %vm620, %v607, %v609
      %v622 = vsel %vm620, %v609, %v611
      %v623 = vsel %vm620, %v611, %v613
      %v624 = vsel %vm620, %v613, %v615
      %v625 = vsel %vm620, %v615, %v617
      %v626 = vsel %vm620, %v617, %v619
      %v627 = vsel %vm620, %v619, %v604
      %v636 = vsel %vm620, %v604, %v607
      %v637 = vsel %vm437, %v636, 0.0
      %v638 = vsel %vm438, %v621, 0.0
      %v639 = vsel %vm439, %v622, 0.0
      %v640 = vsel %vm440, %v623, 0.0
      %v641 = vsel %vm441, %v624, 0.0
      %v642 = vsel %vm442, %v625, 0.0
      %v643 = vsel %vm443, %v626, 0.0
      %v644 = vsel %vm444, %v627, 0.0
      %645 = vrot.lane.b32.xlu0 %v308, 127
      %v646 = vpop.permute.xlu0 %645
      %647 = vrot.lane.b32.xlu0 %v309, 127
      %v648 = vpop.permute.xlu0 %647
      %649 = vrot.lane.b32.xlu0 %v310, 127
      %v650 = vpop.permute.xlu0 %649
      %651 = vrot.lane.b32.xlu0 %v311, 127
      %v652 = vpop.permute.xlu0 %651
      %653 = vrot.lane.b32.xlu0 %v312, 127
      %v654 = vpop.permute.xlu0 %653
      %655 = vrot.lane.b32.xlu0 %v313, 127
      %v656 = vpop.permute.xlu0 %655
      %657 = vrot.lane.b32.xlu0 %v314, 127
      %v658 = vpop.permute.xlu0 %657
      %659 = vrot.lane.b32.xlu0 %v315, 127
      %v660 = vpop.permute.xlu0 %659
      %vm661 = vcmask 1039360
      %v662 = vsel %vm661, %v646, %v648
      %v663 = vsel %vm661, %v648, %v650
      %v664 = vsel %vm661, %v650, %v652
      %v665 = vsel %vm661, %v652, %v654
      %v666 = vsel %vm661, %v654, %v656
      %v667 = vsel %vm661, %v656, %v658
      %v668 = vsel %vm661, %v658, %v660
      %v678 = vsel %vm661, %v660, %v646
      %v679 = vsel %vm445, %v662, 0.0
      %v680 = vsel %vm446, %v663, 0.0
      %v681 = vsel %vm447, %v664, 0.0
      %v682 = vsel %vm448, %v665, 0.0
      %v683 = vsel %vm449, %v666, 0.0
      %v684 = vsel %vm450, %v667, 0.0
      %v685 = vsel %vm451, %v668, 0.0
      %v686 = vsel %vm452, %v678, 0.0
      %687 = vrot.lane.b32.xlu0 %v308, 97
      %v688 = vpop.permute.xlu0 %687
      %689 = vrot.lane.b32.xlu0 %v309, 97
      %v690 = vpop.permute.xlu0 %689
      %691 = vrot.lane.b32.xlu0 %v310, 97
      %v692 = vpop.permute.xlu0 %691
      %693 = vrot.lane.b32.xlu0 %v311, 97
      %v694 = vpop.permute.xlu0 %693
      %695 = vrot.lane.b32.xlu0 %v312, 97
      %v696 = vpop.permute.xlu0 %695
      %697 = vrot.lane.b32.xlu0 %v313, 97
      %v698 = vpop.permute.xlu0 %697
      %699 = vrot.lane.b32.xlu0 %v314, 97
      %v700 = vpop.permute.xlu0 %699
      %701 = vrot.lane.b32.xlu0 %v315, 97
      %v702 = vpop.permute.xlu0 %701
      %vm703 = vcmask 793600
      %v704 = vsel %vm703, %v688, %v690
      %v705 = vsel %vm703, %v690, %v692
      %v706 = vsel %vm703, %v692, %v694
      %v707 = vsel %vm703, %v694, %v696
      %v708 = vsel %vm703, %v696, %v698
      %v709 = vsel %vm703, %v698, %v700
      %v710 = vsel %vm703, %v700, %v702
      %v720 = vsel %vm703, %v702, %v688
      %vm721 = vmand %vm429, %vm437
      %vm722 = vmand %vm430, %vm438
      %vm723 = vmand %vm431, %vm439
      %vm724 = vmand %vm432, %vm440
      %vm725 = vmand %vm433, %vm441
      %vm726 = vmand %vm434, %vm442
      %vm727 = vmand %vm435, %vm443
      %vm728 = vmand %vm436, %vm444
      %v729 = vsel %vm721, %v704, 0.0
      %v730 = vsel %vm722, %v705, 0.0
      %v731 = vsel %vm723, %v706, 0.0
      %v732 = vsel %vm724, %v707, 0.0
      %v733 = vsel %vm725, %v708, 0.0
      %v734 = vsel %vm726, %v709, 0.0
      %v735 = vsel %vm727, %v710, 0.0
      %v736 = vsel %vm728, %v720, 0.0
      %737 = vrot.lane.b32.xlu0 %v308, 96
      %v738 = vpop.permute.xlu0 %737
      %739 = vrot.lane.b32.xlu0 %v309, 96
      %v740 = vpop.permute.xlu0 %739
      %741 = vrot.lane.b32.xlu0 %v310, 96
      %v742 = vpop.permute.xlu0 %741
      %743 = vrot.lane.b32.xlu0 %v311, 96
      %v744 = vpop.permute.xlu0 %743
      %745 = vrot.lane.b32.xlu0 %v312, 96
      %v746 = vpop.permute.xlu0 %745
      %747 = vrot.lane.b32.xlu0 %v313, 96
      %v748 = vpop.permute.xlu0 %747
      %749 = vrot.lane.b32.xlu0 %v314, 96
      %v750 = vpop.permute.xlu0 %749
      %751 = vrot.lane.b32.xlu0 %v315, 96
      %v752 = vpop.permute.xlu0 %751
      %vm753 = vcmask 785408
      %v754 = vsel %vm753, %v738, %v740
      %v755 = vsel %vm753, %v740, %v742
      %v756 = vsel %vm753, %v742, %v744
      %v757 = vsel %vm753, %v744, %v746
      %v758 = vsel %vm753, %v746, %v748
      %v759 = vsel %vm753, %v748, %v750
      %v760 = vsel %vm753, %v750, %v752
      %v770 = vsel %vm753, %v752, %v738
      %v771 = vsel %vm429, %v754, 0.0
      %v772 = vsel %vm430, %v755, 0.0
      %v773 = vsel %vm431, %v756, 0.0
      %v774 = vsel %vm432, %v757, 0.0
      %v775 = vsel %vm433, %v758, 0.0
      %v776 = vsel %vm434, %v759, 0.0
      %v777 = vsel %vm435, %v760, 0.0
      %v778 = vsel %vm436, %v770, 0.0
      %779 = vrot.lane.b32.xlu0 %v308, 95
      %v780 = vpop.permute.xlu0 %779
      %781 = vrot.lane.b32.xlu0 %v309, 95
      %v782 = vpop.permute.xlu0 %781
      %783 = vrot.lane.b32.xlu0 %v310, 95
      %v784 = vpop.permute.xlu0 %783
      %785 = vrot.lane.b32.xlu0 %v311, 95
      %v786 = vpop.permute.xlu0 %785
      %787 = vrot.lane.b32.xlu0 %v312, 95
      %v788 = vpop.permute.xlu0 %787
      %789 = vrot.lane.b32.xlu0 %v313, 95
      %v790 = vpop.permute.xlu0 %789
      %791 = vrot.lane.b32.xlu0 %v314, 95
      %v792 = vpop.permute.xlu0 %791
      %793 = vrot.lane.b32.xlu0 %v315, 95
      %v794 = vpop.permute.xlu0 %793
      %vm795 = vcmask 777216
      %v796 = vsel %vm795, %v780, %v782
      %v797 = vsel %vm795, %v782, %v784
      %v798 = vsel %vm795, %v784, %v786
      %v799 = vsel %vm795, %v786, %v788
      %v800 = vsel %vm795, %v788, %v790
      %v801 = vsel %vm795, %v790, %v792
      %v802 = vsel %vm795, %v792, %v794
      %v812 = vsel %vm795, %v794, %v780
      %vm813 = vmand %vm429, %vm445
      %vm814 = vmand %vm430, %vm446
      %vm815 = vmand %vm431, %vm447
      %vm816 = vmand %vm432, %vm448
      %vm817 = vmand %vm433, %vm449
      %vm818 = vmand %vm434, %vm450
      %vm819 = vmand %vm435, %vm451
      %vm820 = vmand %vm436, %vm452
      %v821 = vsel %vm813, %v796, 0.0
      %v822 = vsel %vm814, %v797, 0.0
      %v823 = vsel %vm815, %v798, 0.0
      %v824 = vsel %vm816, %v799, 0.0
      %v825 = vsel %vm817, %v800, 0.0
      %v826 = vsel %vm818, %v801, 0.0
      %v827 = vsel %vm819, %v802, 0.0
      %v828 = vsel %vm820, %v812, 0.0
      %v829 = vld [vmem:[%s3] sm:$0xff]
      %v830 = vld [vmem:[%s4] sm:$0xff]
      %832 = vset.pattern.permute.xlu0 0
      %833 = vperm.xlu0 %832, %v830
      %v834 = vpop.permute.xlu0 %833
      %vm836 = vcmask 588800
      %v838 = vsel %vm836, %v829, 0
      %840 = vmatprep.subr.mxu0 %v504
      %841 = vmatpush1.msra.mxu0 %v503
      %842 = vmatprep.subr.mxu0 %v546
      %843 = vmatpush1.msra.mxu0 %v545
      %844 = vmatprep.subr.mxu0 %v596
      %845 = vmatpush1.msra.mxu0 %v595
      %846 = vmatprep.subr.mxu0 %v638
      %847 = vmatpush1.msra.mxu0 %v637
      %848 = vmatprep.subr.mxu0 %v309
      %849 = vmatpush1.msra.mxu0 %v308
      %850 = vmatprep.subr.mxu0 %v680
      %851 = vmatpush1.msra.mxu0 %v679
      %852 = vmatprep.subr.mxu0 %v730
      %853 = vmatpush1.msra.mxu0 %v729
      %854 = vmatprep.subr.mxu0 %v772
      %855 = vmatpush1.msra.mxu0 %v771
      %856 = vmatprep.subr.mxu0 %v822
      %857 = vmatpush1.msra.mxu0 %v821
      %858 = vmatprep.subr.mxu0 0.0
      %859 = vmatpush1.msra.mxu0 0.0
      %860 = vmatprep.subr.mxu0 0.0
      %861 = vmatpush1.msra.mxu0 0.0
      %862 = vmatprep.subr.mxu0 0.0
      %863 = vmatpush1.msra.mxu0 0.0
      %864 = vmatprep.subr.mxu0 0.0
      %865 = vmatpush1.msra.mxu0 0.0
      %866 = vmatprep.subr.mxu0 0.0
      %867 = vmatpush1.msra.mxu0 0.0
      %868 = vmatprep.subr.mxu0 0.0
      %869 = vmatpush1.msra.mxu0 0.0
      %870 = vmatprep.subr.mxu0 0.0
      %871 = vmatpush1.msra.mxu0 0.0
      %872 = vmatprep.subr.mxu0 0.0
      %873 = vmatpush1.msra.mxu0 0.0
      %874 = vmatprep.subr.mxu0 0.0
      %875 = vmatpush1.msra.mxu0 0.0
      %876 = vmatprep.subr.mxu0 0.0
      %877 = vmatpush1.msra.mxu0 0.0
      %878 = vmatprep.subr.mxu0 0.0
      %879 = vmatpush1.msra.mxu0 0.0
      %880 = vmatprep.subr.mxu0 0.0
      %881 = vmatpush1.msra.mxu0 0.0
      %882 = vmatprep.subr.mxu0 0.0
      %883 = vmatpush1.msra.mxu0 0.0
      %884 = vmatprep.subr.mxu0 0.0
      %885 = vmatpush1.msra.mxu0 0.0
      %886 = vmatprep.subr.mxu0 0.0
      %887 = vmatpush1.msra.mxu0 0.0
      %888 = vmatprep.subr.mxu0 0.0
      %889 = vmatpush1.msra.mxu0 0.0
      %890 = vmatprep.subr.mxu0 0.0
      %891 = vmatpush1.msra.mxu0 0.0
      %892 = vmatprep.subr.mxu0 0.0
      %893 = vmatpush1.msra.mxu0 0.0
      %894 = vmatprep.subr.mxu0 0.0
      %895 = vmatpush1.msra.mxu0 0.0
      %896 = vmatprep.subr.mxu0 0.0
      %897 = vmatpush1.msra.mxu0 0.0
      %898 = vmatprep.subr.mxu0 0.0
      %899 = vmatpush1.msra.mxu0 0.0
      %900 = vmatprep.subr.mxu0 0.0
      %901 = vmatpush1.msra.mxu0 0.0
      %902 = vmatprep.subr.mxu0 0.0
      %903 = vmatpush1.msra.mxu0 0.0
      %904 = vmatprep.mubr.f32.mxu0 0.0
      %905 = vmatmul.mubr.f32.gmra.mrb[0].mxu0 %v838
      %v906 = vpop.f32.mrb[0].mxu0
      %v907 = vadd.f32 %v834, %v906
      %v908 = vpop.f32.mrb[0].mxu0
      %v909 = vadd.f32 %v834, %v908
      %910 = vdwg.mxu0
      %911 = vmatprep.subr.mxu0 %v506
      %912 = vmatpush1.msra.mxu0 %v505
      %913 = vmatprep.subr.mxu0 %v548
      %914 = vmatpush1.msra.mxu0 %v547
      %915 = vmatprep.subr.mxu0 %v598
      %916 = vmatpush1.msra.mxu0 %v597
      %917 = vmatprep.subr.mxu0 %v640
      %918 = vmatpush1.msra.mxu0 %v639
      %919 = vmatprep.subr.mxu0 %v311
      %920 = vmatpush1.msra.mxu0 %v310
      %921 = vmatprep.subr.mxu0 %v682
      %922 = vmatpush1.msra.mxu0 %v681
      %923 = vmatprep.subr.mxu0 %v732
      %924 = vmatpush1.msra.mxu0 %v731
      %925 = vmatprep.subr.mxu0 %v774
      %926 = vmatpush1.msra.mxu0 %v773
      %927 = vmatprep.subr.mxu0 %v824
      %928 = vmatpush1.msra.mxu0 %v823
      %929 = vmatprep.subr.mxu0 0.0
      %930 = vmatpush1.msra.mxu0 0.0
      %931 = vmatprep.subr.mxu0 0.0
      %932 = vmatpush1.msra.mxu0 0.0
      %933 = vmatprep.subr.mxu0 0.0
      %934 = vmatpush1.msra.mxu0 0.0
      %935 = vmatprep.subr.mxu0 0.0
      %936 = vmatpush1.msra.mxu0 0.0
      %937 = vmatprep.subr.mxu0 0.0
      %938 = vmatpush1.msra.mxu0 0.0
      %939 = vmatprep.subr.mxu0 0.0
      %940 = vmatpush1.msra.mxu0 0.0
      %941 = vmatprep.subr.mxu0 0.0
      %942 = vmatpush1.msra.mxu0 0.0
      %943 = vmatprep.subr.mxu0 0.0
      %944 = vmatpush1.msra.mxu0 0.0
      %945 = vmatprep.subr.mxu0 0.0
      %946 = vmatpush1.msra.mxu0 0.0
      %947 = vmatprep.subr.mxu0 0.0
      %948 = vmatpush1.msra.mxu0 0.0
      %949 = vmatprep.subr.mxu0 0.0
      %950 = vmatpush1.msra.mxu0 0.0
      %951 = vmatprep.subr.mxu0 0.0
      %952 = vmatpush1.msra.mxu0 0.0
      %953 = vmatprep.subr.mxu0 0.0
      %954 = vmatpush1.msra.mxu0 0.0
      %955 = vmatprep.subr.mxu0 0.0
      %956 = vmatpush1.msra.mxu0 0.0
      %957 = vmatprep.subr.mxu0 0.0
      %958 = vmatpush1.msra.mxu0 0.0
      %959 = vmatprep.subr.mxu0 0.0
      %960 = vmatpush1.msra.mxu0 0.0
      %961 = vmatprep.subr.mxu0 0.0
      %962 = vmatpush1.msra.mxu0 0.0
      %963 = vmatprep.subr.mxu0 0.0
      %964 = vmatpush1.msra.mxu0 0.0
      %965 = vmatprep.subr.mxu0 0.0
      %966 = vmatpush1.msra.mxu0 0.0
      %967 = vmatprep.subr.mxu0 0.0
      %968 = vmatpush1.msra.mxu0 0.0
      %969 = vmatprep.subr.mxu0 0.0
      %970 = vmatpush1.msra.mxu0 0.0
      %971 = vmatprep.subr.mxu0 0.0
      %972 = vmatpush1.msra.mxu0 0.0
      %973 = vmatprep.subr.mxu0 0.0
      %974 = vmatpush1.msra.mxu0 0.0
      %975 = vmatprep.mubr.f32.mxu0 0.0
      %976 = vmatmul.mubr.f32.gmra.mrb[0].mxu0 %v838
      %v977 = vpop.f32.mrb[0].mxu0
      %v978 = vadd.f32 %v834, %v977
      %v979 = vpop.f32.mrb[0].mxu0
      %v980 = vadd.f32 %v834, %v979
      %981 = vdwg.mxu0
      %982 = vmatprep.subr.mxu0 %v508
      %983 = vmatpush1.msra.mxu0 %v507
      %984 = vmatprep.subr.mxu0 %v550
      %985 = vmatpush1.msra.mxu0 %v549
      %986 = vmatprep.subr.mxu0 %v600
      %987 = vmatpush1.msra.mxu0 %v599
      %988 = vmatprep.subr.mxu0 %v642
      %989 = vmatpush1.msra.mxu0 %v641
      %990 = vmatprep.subr.mxu0 %v313
      %991 = vmatpush1.msra.mxu0 %v312
      %992 = vmatprep.subr.mxu0 %v684
      %993 = vmatpush1.msra.mxu0 %v683
      %994 = vmatprep.subr.mxu0 %v734
      %995 = vmatpush1.msra.mxu0 %v733
      %996 = vmatprep.subr.mxu0 %v776
      %997 = vmatpush1.msra.mxu0 %v775
      %998 = vmatprep.subr.mxu0 %v826
      %999 = vmatpush1.msra.mxu0 %v825
      %1000 = vmatprep.subr.mxu0 0.0
      %1001 = vmatpush1.msra.mxu0 0.0
      %1002 = vmatprep.subr.mxu0 0.0
      %1003 = vmatpush1.msra.mxu0 0.0
      %1004 = vmatprep.subr.mxu0 0.0
      %1005 = vmatpush1.msra.mxu0 0.0
      %1006 = vmatprep.subr.mxu0 0.0
      %1007 = vmatpush1.msra.mxu0 0.0
      %1008 = vmatprep.subr.mxu0 0.0
      %1009 = vmatpush1.msra.mxu0 0.0
      %1010 = vmatprep.subr.mxu0 0.0
      %1011 = vmatpush1.msra.mxu0 0.0
      %1012 = vmatprep.subr.mxu0 0.0
      %1013 = vmatpush1.msra.mxu0 0.0
      %1014 = vmatprep.subr.mxu0 0.0
      %1015 = vmatpush1.msra.mxu0 0.0
      %1016 = vmatprep.subr.mxu0 0.0
      %1017 = vmatpush1.msra.mxu0 0.0
      %1018 = vmatprep.subr.mxu0 0.0
      %1019 = vmatpush1.msra.mxu0 0.0
      %1020 = vmatprep.subr.mxu0 0.0
      %1021 = vmatpush1.msra.mxu0 0.0
      %1022 = vmatprep.subr.mxu0 0.0
      %1023 = vmatpush1.msra.mxu0 0.0
      %1024 = vmatprep.subr.mxu0 0.0
      %1025 = vmatpush1.msra.mxu0 0.0
      %1026 = vmatprep.subr.mxu0 0.0
      %1027 = vmatpush1.msra.mxu0 0.0
      %1028 = vmatprep.subr.mxu0 0.0
      %1029 = vmatpush1.msra.mxu0 0.0
      %1030 = vmatprep.subr.mxu0 0.0
      %1031 = vmatpush1.msra.mxu0 0.0
      %1032 = vmatprep.subr.mxu0 0.0
      %1033 = vmatpush1.msra.mxu0 0.0
      %1034 = vmatprep.subr.mxu0 0.0
      %1035 = vmatpush1.msra.mxu0 0.0
      %1036 = vmatprep.subr.mxu0 0.0
      %1037 = vmatpush1.msra.mxu0 0.0
      %1038 = vmatprep.subr.mxu0 0.0
      %1039 = vmatpush1.msra.mxu0 0.0
      %1040 = vmatprep.subr.mxu0 0.0
      %1041 = vmatpush1.msra.mxu0 0.0
      %1042 = vmatprep.subr.mxu0 0.0
      %1043 = vmatpush1.msra.mxu0 0.0
      %1044 = vmatprep.subr.mxu0 0.0
      %1045 = vmatpush1.msra.mxu0 0.0
      %1046 = vmatprep.mubr.f32.mxu0 0.0
      %1047 = vmatmul.mubr.f32.gmra.mrb[0].mxu0 %v838
      %v1048 = vpop.f32.mrb[0].mxu0
      %v1049 = vadd.f32 %v834, %v1048
      %v1050 = vpop.f32.mrb[0].mxu0
      %v1051 = vadd.f32 %v834, %v1050
      %1052 = vdwg.mxu0
      %1053 = vmatprep.subr.mxu0 %v510
      %1054 = vmatpush1.msra.mxu0 %v509
      %1055 = vmatprep.subr.mxu0 %v552
      %1056 = vmatpush1.msra.mxu0 %v551
      %1057 = vmatprep.subr.mxu0 %v602
      %1058 = vmatpush1.msra.mxu0 %v601
      %1059 = vmatprep.subr.mxu0 %v644
      %1060 = vmatpush1.msra.mxu0 %v643
      %1061 = vmatprep.subr.mxu0 %v315
      %1062 = vmatpush1.msra.mxu0 %v314
      %1063 = vmatprep.subr.mxu0 %v686
      %1064 = vmatpush1.msra.mxu0 %v685
      %1065 = vmatprep.subr.mxu0 %v736
      %1066 = vmatpush1.msra.mxu0 %v735
      %1067 = vmatprep.subr.mxu0 %v778
      %1068 = vmatpush1.msra.mxu0 %v777
      %1069 = vmatprep.subr.mxu0 %v828
      %1070 = vmatpush1.msra.mxu0 %v827
      %1071 = vmatprep.subr.mxu0 0.0
      %1072 = vmatpush1.msra.mxu0 0.0
      %1073 = vmatprep.subr.mxu0 0.0
      %1074 = vmatpush1.msra.mxu0 0.0
      %1075 = vmatprep.subr.mxu0 0.0
      %1076 = vmatpush1.msra.mxu0 0.0
      %1077 = vmatprep.subr.mxu0 0.0
      %1078 = vmatpush1.msra.mxu0 0.0
      %1079 = vmatprep.subr.mxu0 0.0
      %1080 = vmatpush1.msra.mxu0 0.0
      %1081 = vmatprep.subr.mxu0 0.0
      %1082 = vmatpush1.msra.mxu0 0.0
      %1083 = vmatprep.subr.mxu0 0.0
      %1084 = vmatpush1.msra.mxu0 0.0
      %1085 = vmatprep.subr.mxu0 0.0
      %1086 = vmatpush1.msra.mxu0 0.0
      %1087 = vmatprep.subr.mxu0 0.0
      %1088 = vmatpush1.msra.mxu0 0.0
      %1089 = vmatprep.subr.mxu0 0.0
      %1090 = vmatpush1.msra.mxu0 0.0
      %1091 = vmatprep.subr.mxu0 0.0
      %1092 = vmatpush1.msra.mxu0 0.0
      %1093 = vmatprep.subr.mxu0 0.0
      %1094 = vmatpush1.msra.mxu0 0.0
      %1095 = vmatprep.subr.mxu0 0.0
      %1096 = vmatpush1.msra.mxu0 0.0
      %1097 = vmatprep.subr.mxu0 0.0
      %1098 = vmatpush1.msra.mxu0 0.0
      %1099 = vmatprep.subr.mxu0 0.0
      %1100 = vmatpush1.msra.mxu0 0.0
      %1101 = vmatprep.subr.mxu0 0.0
      %1102 = vmatpush1.msra.mxu0 0.0
      %1103 = vmatprep.subr.mxu0 0.0
      %1104 = vmatpush1.msra.mxu0 0.0
      %1105 = vmatprep.subr.mxu0 0.0
      %1106 = vmatpush1.msra.mxu0 0.0
      %1107 = vmatprep.subr.mxu0 0.0
      %1108 = vmatpush1.msra.mxu0 0.0
      %1109 = vmatprep.subr.mxu0 0.0
      %1110 = vmatpush1.msra.mxu0 0.0
      %1111 = vmatprep.subr.mxu0 0.0
      %1112 = vmatpush1.msra.mxu0 0.0
      %1113 = vmatprep.subr.mxu0 0.0
      %1114 = vmatpush1.msra.mxu0 0.0
      %1115 = vmatprep.subr.mxu0 0.0
      %1116 = vmatpush1.msra.mxu0 0.0
      %1117 = vmatprep.mubr.f32.mxu0 0.0
      %1118 = vmatmul.mubr.f32.gmra.mrb[0].mxu0 %v838
      %v1119 = vpop.f32.mrb[0].mxu0
      %v1120 = vadd.f32 %v834, %v1119
      %v1121 = vpop.f32.mrb[0].mxu0
      %v1122 = vadd.f32 %v834, %v1121
      %1123 = vdwg.mxu0
      %v1124 = vld [vmem:[%s266] sm:$0xff]
      %v1125 = vld [vmem:[%s266 + $0x8] sm:$0xff]
      %v1126 = vld [vmem:[%s266 + $0x10] sm:$0xff]
      %v1127 = vld [vmem:[%s266 + $0x18] sm:$0xff]
      %v1128 = vld [vmem:[%s266 + $0x20] sm:$0xff]
      %v1129 = vld [vmem:[%s266 + $0x28] sm:$0xff]
      %v1130 = vld [vmem:[%s266 + $0x30] sm:$0xff]
      %v1131 = vld [vmem:[%s266 + $0x38] sm:$0xff]
      %v1132 = vadd.f32 %v907, %v1124
      %v1133 = vadd.f32 %v909, %v1125
      %v1134 = vadd.f32 %v978, %v1126
      %v1135 = vadd.f32 %v980, %v1127
      %v1136 = vadd.f32 %v1049, %v1128
      %v1137 = vadd.f32 %v1051, %v1129
      %v1138 = vadd.f32 %v1120, %v1130
      %v1139 = vadd.f32 %v1122, %v1131
      %1140 = vst [vmem:[%s271] sm:$0xff] %v1132
      %1141 = vst [vmem:[%s271 + $0x8] sm:$0xff] %v1133
      %1142 = vst [vmem:[%s271 + $0x10] sm:$0xff] %v1134
      %1143 = vst [vmem:[%s271 + $0x18] sm:$0xff] %v1135
      %1144 = vst [vmem:[%s271 + $0x20] sm:$0xff] %v1136
      %1145 = vst [vmem:[%s271 + $0x28] sm:$0xff] %v1137
      %1146 = vst [vmem:[%s271 + $0x30] sm:$0xff] %v1138
      %1147 = vst [vmem:[%s271 + $0x38] sm:$0xff] %v1139
      %p1148 = scmp.lt.s32.totalorder %s17, 1
      %s1149 = scalar_select %p1148, %s17, 1
      %s1150 = smul.addr %s1149, 8
      %s1151 = smul.addr %s1150, 8
      %s1152 = scalar_lea.vmem %s6, %s1151
      // Predicated region
      $region45: #{gblock_up_forward.5} parent=43 // pred_check
        %p1153 = pneg %p171
      $region46: #{gblock_up_forward.5} parent=43 // pred_check_branch
        %1155 = sbr.rel (%p1153) target = $region48
      $region47: #{gblock_up_forward.5} parent=43 // pred_region
        _
      $region48: #{gblock_up_forward.5} parent=43 // pred_fallthru
        _
    $region44: #{gblock_up_forward.5} parent=5 // pred_fallthru
      _
    %p1156 = scmp.le.s32.totalorder 2, %s12
    // Predicated region
    $region49: #{gblock_up_forward.5} parent=5 // pred_check
      %p1157 = pneg %p1156
    $region50: #{gblock_up_forward.5} parent=5 // pred_check_branch
      %1159 = sbr.rel (%p1157) target = $region52
    $region51: #{gblock_up_forward.5} parent=5 // pred_region
      %s1160 = ssub.s32 %s12, 2
      // Predicated region
      $region53: #{gblock_up_forward.5} parent=51 // pred_check
        %p1161 = pneg %p177
      $region54: #{gblock_up_forward.5} parent=51 // pred_check_branch
        %1163 = sbr.rel (%p1161) target = $region56
      $region55: #{gblock_up_forward.5} parent=51 // pred_region
        %p1164 = scmp.lt.s32.totalorder %s18, 1
        %s1165 = scalar_select %p1164, %s18, 1
        %s1166 = smul.addr %s1165, 8
        %s1167 = smul.addr %s1166, 8
        %s1168 = scalar_lea.vmem %s6, %s1167
      $region56: #{gblock_up_forward.5} parent=51 // pred_fallthru
        _
    $region52: #{gblock_up_forward.5} parent=5 // pred_fallthru
      _
  $region6: #{gblock_up_forward.5} parent=0 // loop_footer
    %s16 = sadd.s32 1, %s12
  $region7: #{gblock_up_forward.5} parent=0 // loop_footer_branch
    %11 = sbr.rel target = $region3
  $region8: #{gblock_up_forward.5} parent=0 // loop_exit
    _

</llo_original>
